<compile_context>
chip_gen: v7x
topology: tpu7x:2x2x1
jax: 0.10.0
libtpu: 0.0.40
codegen_flags: <defaults>
</compile_context>

<pallas_src>
import functools
import math

import jax
import jax.numpy as jnp
from jax.experimental import pallas as pl
from jax.experimental.pallas import tpu as pltpu  # noqa: F401  (kept for TPU-specific params if scaled up)


# ----------------------------- config ---------------------------------------
B = 2                      # batch
C = 3                      # image channels (RGB, as the ISIC model expects)
IMG = 16                   # spatial size
PATCH = 8                  # patch size -> 4 patches
D = 32                     # embed dim
HEADS = 2
DEPTH = 2
MLP = 4 * D
NUM_CLASSES = 2            # ISICModel default num_classes=2
EPS = 1e-6

N_PATCHES = (IMG // PATCH) ** 2      # 4
T = N_PATCHES + 1                    # cls + patches = 5 tokens
T_PAD = 8                            # sublane-aligned per-image token count
BT = B * T_PAD                       # 16 rows: batch folded onto sublanes
CPP = C * PATCH * PATCH              # 192
CPP_PAD = 256                        # whole-vreg-aligned patch feature width
DH = D // HEADS                      # 16
HEAD_PAD = 128                       # lane-dense logits width (classes 2 -> 128)


# ----------------------------- kernel helpers --------------------------------
def _layernorm(x, gamma, beta):
    mu = jnp.mean(x, axis=-1, keepdims=True)
    var = jnp.mean((x - mu) ** 2, axis=-1, keepdims=True)
    return (x - mu) * jax.lax.rsqrt(var + EPS) * gamma + beta


# ----------------------------- fused kernel ----------------------------------
def fused_vit_kernel(
        patches_ref,                                  # [BT, CPP_PAD] f32
        patch_w_ref,                                  # [CPP_PAD, D]  bf16
        pos_adj_ref,                                  # [BT, D]       f32 (cls+pos+patch_b folded)
        key_bias_ref,                                 # [BT, BT]      f32 block-diag mask
        ln1_g_ref, ln1_b_ref,                         # [DEPTH, 1, D] f32
        w_q_ref, b_q_ref,                             # [DEPTH*HEADS, D, DH] bf16 / [DEPTH*HEADS, 1, DH] f32
        w_k_ref, b_k_ref,
        w_v_ref, b_v_ref,
        w_proj_ref,                                   # [DEPTH*HEADS, DH, D] bf16
        b_proj_ref,                                   # [DEPTH, 1, D] f32
        ln2_g_ref, ln2_b_ref,                         # [DEPTH, 1, D] f32
        w_fc1_ref, b_fc1_ref,                         # [DEPTH, D, MLP] bf16 / [DEPTH, 1, MLP] f32
        w_fc2_ref, b_fc2_ref,                         # [DEPTH, MLP, D] bf16 / [DEPTH, 1, D] f32
        norm_g_ref, norm_b_ref,                       # [1, D] f32
        head_w_ref, head_b_ref,                       # [D, HEAD_PAD] bf16 / [1, HEAD_PAD] f32
        logits_ref,                                   # [BT, HEAD_PAD] f32
        *, depth, heads, scale):
    f32, bf16 = jnp.float32, jnp.bfloat16

    # ---- patch embed for all B*T_PAD rows at once (cls / pad rows are zero
    #      patches); cls token, pos embed and patch bias are folded in pos_adj.
    x = jnp.dot(patches_ref[...].astype(bf16), patch_w_ref[...],
                preferred_element_type=f32) + pos_adj_ref[...]              # [BT, D]

    key_bias = key_bias_ref[...]                                            # [BT, BT]

    # ---- transformer encoder blocks (statically unrolled) ----
    for layer in range(depth):
        # --- attention ---
        xn = _layernorm(x, ln1_g_ref[layer], ln1_b_ref[layer]).astype(bf16)
        ctx = None
        for h in range(heads):                        # static head loop
            idx = layer * heads + h
            q = jnp.dot(xn, w_q_ref[idx], preferred_element_type=f32) + b_q_ref[idx]
            k = jnp.dot(xn, w_k_ref[idx], preferred_element_type=f32) + b_k_ref[idx]
            v = jnp.dot(xn, w_v_ref[idx], preferred_element_type=f32) + b_v_ref[idx]
            att = jax.lax.dot_general(                # q @ k.T, f32 accumulation
                q.astype(bf16), k.astype(bf16),
                (((1,), (1,)), ((), ())),
                preferred_element_type=f32) * scale + key_bias              # [BT, BT]
            att = att - jnp.max(att, axis=-1, keepdims=True)
            p = jnp.exp(att)
            p = p * pl.reciprocal(jnp.sum(p, axis=-1, keepdims=True), approx=True)
            ctx_h = jnp.dot(p.astype(bf16), v.astype(bf16),
                            preferred_element_type=f32)                     # [BT, DH]
            proj_h = jnp.dot(ctx_h.astype(bf16), w_proj_ref[idx],
                             preferred_element_type=f32)                    # [BT, D]
            ctx = proj_h if ctx is None else ctx + proj_h
        x = x + ctx + b_proj_ref[layer]

        # --- MLP ---
        xn = _layernorm(x, ln2_g_ref[layer], ln2_b_ref[layer]).astype(bf16)
        hid = jnp.dot(xn, w_fc1_ref[layer],
                      preferred_element_type=f32) + b_fc1_ref[layer]        # [BT, MLP]
        # TODO(synk): timm ViT's nn.GELU is exact erf; tanh approximation used here.
        hid = jax.nn.gelu(hid, approximate=True)
        hid = jnp.dot(hid.astype(bf16), w_fc2_ref[layer],
                      preferred_element_type=f32) + b_fc2_ref[layer]
        x = x + hid

    # ---- final LayerNorm + head (lane-dense padded-class tile, all rows;
    #      wrapper pools the cls row and unpads classes) ----
    feats = _layernorm(x, norm_g_ref[...], norm_b_ref[...])
    logits = jnp.dot(feats.astype(bf16), head_w_ref[...],
                     preferred_element_type=f32) + head_b_ref[...]
    logits_ref[...] = logits.astype(logits_ref.dtype)


# ----------------------------- parameters ------------------------------------
def init_params(key):
    keys = iter(jax.random.split(key, 32))

    def nrm(shape, std=0.02):
        return jax.random.normal(next(keys), shape, jnp.float32) * std

    params = {
        "patch_w": nrm((CPP, D)),                   # Conv2d(C, D, PATCH, stride=PATCH) == matmul
        "patch_b": jnp.zeros((1, D), jnp.float32),
        "cls_token": nrm((1, D)),
        "pos_embed": nrm((T, D)),
        "norm_g": jnp.ones((1, D), jnp.float32),
        "norm_b": jnp.zeros((1, D), jnp.float32),
        "head_w": nrm((D, NUM_CLASSES)),
        "head_b": jnp.zeros((1, NUM_CLASSES), jnp.float32),
        "blocks": [],
    }
    for _ in range(DEPTH):
        params["blocks"].append({
            "ln1_g": jnp.ones((1, D), jnp.float32),
            "ln1_b": jnp.zeros((1, D), jnp.float32),
            "w_qkv": nrm((D, 3 * D)),
            "b_qkv": jnp.zeros((1, 3 * D), jnp.float32),
            "w_proj": nrm((D, D)),
            "b_proj": jnp.zeros((1, D), jnp.float32),
            "ln2_g": jnp.ones((1, D), jnp.float32),
            "ln2_b": jnp.zeros((1, D), jnp.float32),
            "w_fc1": nrm((D, MLP)),
            "b_fc1": jnp.zeros((1, MLP), jnp.float32),
            "w_fc2": nrm((MLP, D)),
            "b_fc2": jnp.zeros((1, D), jnp.float32),
        })
    return params


# --------------------- one-time weight preparation ----------------------------
def prepare_weights(params, batch=B):
    """Pad / stack / split / cast all weights ONCE (hoisted out of the forward)."""
    bf16, f32 = jnp.bfloat16, jnp.float32

    # patch-embed weight: pad input-feature rows CPP -> CPP_PAD (whole-vreg lanes)
    patch_w = jnp.pad(params["patch_w"], ((0, CPP_PAD - CPP), (0, 0))).astype(bf16)

    # fold cls token + pos embed + patch bias into one additive slab, tiled per image
    pos_img = jnp.zeros((T_PAD, D), f32)
    pos_img = pos_img.at[0].set(params["cls_token"][0] + params["pos_embed"][0])
    pos_img = pos_img.at[1:T].set(params["pos_embed"][1:T] + params["patch_b"][0])
    pos_adj = jnp.tile(pos_img, (batch, 1))                                  # [BT, D]

    # per-image block-diagonal key mask (padded token columns never attended to)
    bt = batch * T_PAD
    img = jnp.arange(bt) // T_PAD
    tok = jnp.arange(bt) % T_PAD
    valid = (img[:, None] == img[None, :]) & (tok[None, :] < T)
    key_bias = jnp.where(valid, 0.0, -1e30).astype(f32)                     # [BT, BT]

    def stack(name, dtype=None):
        a = jnp.stack([blk[name] for blk in params["blocks"]], axis=0)
        return a.astype(dtype) if dtype is not None else a

    # per-head Q/K/V/proj splits (avoids in-kernel lane slicing / lane concat)
    w_q, b_q, w_k, b_k, w_v, b_v, w_p = [], [], [], [], [], [], []
    for blk in params["blocks"]:
        wqkv, bqkv, wproj = blk["w_qkv"], blk["b_qkv"], blk["w_proj"]
        for h in range(HEADS):
            sl = slice(h * DH, (h + 1) * DH)
            w_q.append(wqkv[:, 0 * D:1 * D][:, sl]); b_q.append(bqkv[:, 0 * D:1 * D][:, sl])
            w_k.append(wqkv[:, 1 * D:2 * D][:, sl]); b_k.append(bqkv[:, 1 * D:2 * D][:, sl])
            w_v.append(wqkv[:, 2 * D:3 * D][:, sl]); b_v.append(bqkv[:, 2 * D:3 * D][:, sl])
            w_p.append(wproj[sl, :])

    head_w = jnp.pad(params["head_w"],
                     ((0, 0), (0, HEAD_PAD - NUM_CLASSES))).astype(bf16)
    head_b = jnp.pad(params["head_b"], ((0, 0), (0, HEAD_PAD - NUM_CLASSES)))

    return (
        patch_w, pos_adj, key_bias,
        stack("ln1_g"), stack("ln1_b"),
        jnp.stack(w_q).astype(bf16), jnp.stack(b_q),
        jnp.stack(w_k).astype(bf16), jnp.stack(b_k),
        jnp.stack(w_v).astype(bf16), jnp.stack(b_v),
        jnp.stack(w_p).astype(bf16), stack("b_proj"),
        stack("ln2_g"), stack("ln2_b"),
        stack("w_fc1", bf16), stack("b_fc1"),
        stack("w_fc2", bf16), stack("b_fc2"),
        params["norm_g"], params["norm_b"],
        head_w, head_b,
    )


# ----------------------------- forward ----------------------------------------
def isic_model_forward(x_nchw, prepped):
    """ISICModel.forward (forward_features -> forward_head) -> logits [B, 2].

    `prepped` is the output of prepare_weights() — all weight glue is one-time.
    The only per-call wrapper work is input patch extraction + padding.
    """
    b, c, hgt, wdt = x_nchw.shape
    gh, gw = hgt // PATCH, wdt // PATCH
    n = gh * gw
    cpp = c * PATCH * PATCH

    # patch extraction (NCHW -> [B, N, CPP]), then: cls row + token padding on the
    # sublane axis, lane padding CPP -> CPP_PAD, batch folded onto sublanes.
    patches = x_nchw.reshape(b, c, gh, PATCH, gw, PATCH)
    patches = patches.transpose(0, 2, 4, 1, 3, 5).reshape(b, n, cpp)
    patches = jnp.pad(patches, ((0, 0), (1, T_PAD - (n + 1)), (0, CPP_PAD - cpp)))
    patches = patches.reshape(b * T_PAD, CPP_PAD)

    # Single-step fused kernel (no grid): whole batch in one invocation.
    logits_pad = pl.pallas_call(
        functools.partial(fused_vit_kernel, depth=DEPTH, heads=HEADS,
                          scale=1.0 / math.sqrt(DH)),
        out_shape=jax.ShapeDtypeStruct((b * T_PAD, HEAD_PAD), jnp.float32),
    )(patches, *prepped)

    # cls-token pool + unpad classes (PyTorch ISICModel.forward returns logits only;
    # features are stored on self.features in the reference — not returned here).
    return logits_pad.reshape(b, T_PAD, HEAD_PAD)[:, 0, :NUM_CLASSES]


if __name__ == "__main__":
    key = jax.random.PRNGKey(0)
    k_params, k_x = jax.random.split(key)
    params = init_params(k_params)

    # one-time weight preparation (hoisted out of the per-call forward path)
    prepped = prepare_weights(params)
    prepped = jax.block_until_ready(prepped)

    x = jax.random.normal(k_x, (B, C, IMG, IMG), jnp.float32)   # NCHW input

    fwd = jax.jit(isic_model_forward)
    logits = fwd(x, prepped)
    jax.block_until_ready(logits)

    assert logits.shape == (B, NUM_CLASSES)
    assert bool(jnp.all(jnp.isfinite(logits)))
    print("KERNEL_OK")
</pallas_src>

<mosaic_0001>
module attributes {stable_mosaic.version = 11 : i64} {
  func.func @fused_vit_kernel(%arg0: memref<16x256xf32, #tpu.memory_space<vmem>>, %arg1: memref<256x32xbf16, #tpu.memory_space<vmem>>, %arg2: memref<16x32xf32, #tpu.memory_space<vmem>>, %arg3: memref<16x16xf32, #tpu.memory_space<vmem>>, %arg4: memref<2x1x32xf32, #tpu.memory_space<vmem>>, %arg5: memref<2x1x32xf32, #tpu.memory_space<vmem>>, %arg6: memref<4x32x16xbf16, #tpu.memory_space<vmem>>, %arg7: memref<4x1x16xf32, #tpu.memory_space<vmem>>, %arg8: memref<4x32x16xbf16, #tpu.memory_space<vmem>>, %arg9: memref<4x1x16xf32, #tpu.memory_space<vmem>>, %arg10: memref<4x32x16xbf16, #tpu.memory_space<vmem>>, %arg11: memref<4x1x16xf32, #tpu.memory_space<vmem>>, %arg12: memref<4x16x32xbf16, #tpu.memory_space<vmem>>, %arg13: memref<2x1x32xf32, #tpu.memory_space<vmem>>, %arg14: memref<2x1x32xf32, #tpu.memory_space<vmem>>, %arg15: memref<2x1x32xf32, #tpu.memory_space<vmem>>, %arg16: memref<2x32x128xbf16, #tpu.memory_space<vmem>>, %arg17: memref<2x1x128xf32, #tpu.memory_space<vmem>>, %arg18: memref<2x128x32xbf16, #tpu.memory_space<vmem>>, %arg19: memref<2x1x32xf32, #tpu.memory_space<vmem>>, %arg20: memref<1x32xf32, #tpu.memory_space<vmem>>, %arg21: memref<1x32xf32, #tpu.memory_space<vmem>>, %arg22: memref<32x128xbf16, #tpu.memory_space<vmem>>, %arg23: memref<1x128xf32, #tpu.memory_space<vmem>>, %arg24: memref<16x128xf32, #tpu.memory_space<vmem>>) attributes {dimension_semantics = [], scalar_prefetch = 0 : i64, scratch_operands = 0 : i64, tpu.core_type = #tpu.core_type<tc>} {
    %c0 = arith.constant 0 : index
    %c0_0 = arith.constant 0 : index
    %0 = vector.load %arg0[%c0, %c0_0] : memref<16x256xf32, #tpu.memory_space<vmem>>, vector<16x256xf32>
    %1 = arith.truncf %0 : vector<16x256xf32> to vector<16x256xbf16>
    %c0_1 = arith.constant 0 : index
    %c0_2 = arith.constant 0 : index
    %2 = vector.load %arg1[%c0_1, %c0_2] : memref<256x32xbf16, #tpu.memory_space<vmem>>, vector<256x32xbf16>
    %cst = arith.constant dense<0.000000e+00> : vector<16x32xf32>
    %3 = tpu.matmul %1, %2, %cst {dimension_numbers = #tpu.dot_dimension_numbers<[1], [0], [0], [1], [0, 0, 1, 1], [], []>} : vector<16x256xbf16>, vector<256x32xbf16>, vector<16x32xf32> -> vector<16x32xf32>
    %c0_3 = arith.constant 0 : index
    %c0_4 = arith.constant 0 : index
    %4 = vector.load %arg2[%c0_3, %c0_4] : memref<16x32xf32, #tpu.memory_space<vmem>>, vector<16x32xf32>
    %5 = arith.addf %3, %4 : vector<16x32xf32>
    %c0_5 = arith.constant 0 : index
    %c0_6 = arith.constant 0 : index
    %6 = vector.load %arg3[%c0_5, %c0_6] : memref<16x16xf32, #tpu.memory_space<vmem>>, vector<16x16xf32>
    %c0_7 = arith.constant 0 : index
    %c0_8 = arith.constant 0 : index
    %c0_9 = arith.constant 0 : index
    %7 = vector.load %arg4[%c0_7, %c0_8, %c0_9] : memref<2x1x32xf32, #tpu.memory_space<vmem>>, vector<1x1x32xf32>
    %8 = vector.shape_cast %7 : vector<1x1x32xf32> to vector<1x32xf32>
    %c0_10 = arith.constant 0 : index
    %c0_11 = arith.constant 0 : index
    %c0_12 = arith.constant 0 : index
    %9 = vector.load %arg5[%c0_10, %c0_11, %c0_12] : memref<2x1x32xf32, #tpu.memory_space<vmem>>, vector<1x1x32xf32>
    %10 = vector.shape_cast %9 : vector<1x1x32xf32> to vector<1x32xf32>
    %cst_13 = arith.constant dense<0.000000e+00> : vector<16xf32>
    %11 = vector.multi_reduction <add>, %5, %cst_13 [1] : vector<16x32xf32> to vector<16xf32>
    %12 = vector.shape_cast %11 : vector<16xf32> to vector<16x1xf32>
    %cst_14 = arith.constant 3.200000e+01 : f32
    %13 = vector.broadcast %cst_14 : f32 to vector<16x1xf32>
    %14 = arith.divf %12, %13 : vector<16x1xf32>
    %15 = vector.broadcast %14 : vector<16x1xf32> to vector<16x32xf32>
    %16 = arith.subf %5, %15 : vector<16x32xf32>
    %17 = arith.mulf %16, %16 : vector<16x32xf32>
    %cst_15 = arith.constant dense<0.000000e+00> : vector<16xf32>
    %18 = vector.multi_reduction <add>, %17, %cst_15 [1] : vector<16x32xf32> to vector<16xf32>
    %19 = vector.shape_cast %18 : vector<16xf32> to vector<16x1xf32>
    %cst_16 = arith.constant 3.200000e+01 : f32
    %20 = vector.broadcast %cst_16 : f32 to vector<16x1xf32>
    %21 = arith.divf %19, %20 : vector<16x1xf32>
    %22 = vector.broadcast %14 : vector<16x1xf32> to vector<16x32xf32>
    %23 = arith.subf %5, %22 : vector<16x32xf32>
    %cst_17 = arith.constant 9.99999997E-7 : f32
    %24 = vector.broadcast %cst_17 : f32 to vector<16x1xf32>
    %25 = arith.addf %21, %24 : vector<16x1xf32>
    %26 = math.rsqrt %25 : vector<16x1xf32>
    %27 = vector.broadcast %26 : vector<16x1xf32> to vector<16x32xf32>
    %28 = arith.mulf %23, %27 : vector<16x32xf32>
    %29 = vector.broadcast %8 : vector<1x32xf32> to vector<16x32xf32>
    %30 = arith.mulf %28, %29 : vector<16x32xf32>
    %31 = vector.broadcast %10 : vector<1x32xf32> to vector<16x32xf32>
    %32 = arith.addf %30, %31 : vector<16x32xf32>
    %33 = arith.truncf %32 : vector<16x32xf32> to vector<16x32xbf16>
    %c0_18 = arith.constant 0 : index
    %c0_19 = arith.constant 0 : index
    %c0_20 = arith.constant 0 : index
    %34 = vector.load %arg6[%c0_18, %c0_19, %c0_20] : memref<4x32x16xbf16, #tpu.memory_space<vmem>>, vector<1x32x16xbf16>
    %35 = vector.shape_cast %34 : vector<1x32x16xbf16> to vector<32x16xbf16>
    %cst_21 = arith.constant dense<0.000000e+00> : vector<16x16xf32>
    %36 = tpu.matmul %33, %35, %cst_21 {dimension_numbers = #tpu.dot_dimension_numbers<[1], [0], [0], [1], [0, 0, 1, 1], [], []>} : vector<16x32xbf16>, vector<32x16xbf16>, vector<16x16xf32> -> vector<16x16xf32>
    %c0_22 = arith.constant 0 : index
    %c0_23 = arith.constant 0 : index
    %c0_24 = arith.constant 0 : index
    %37 = vector.load %arg7[%c0_22, %c0_23, %c0_24] : memref<4x1x16xf32, #tpu.memory_space<vmem>>, vector<1x1x16xf32>
    %38 = vector.shape_cast %37 : vector<1x1x16xf32> to vector<1x16xf32>
    %39 = vector.broadcast %38 : vector<1x16xf32> to vector<16x16xf32>
    %40 = arith.addf %36, %39 : vector<16x16xf32>
    %c0_25 = arith.constant 0 : index
    %c0_26 = arith.constant 0 : index
    %c0_27 = arith.constant 0 : index
    %41 = vector.load %arg8[%c0_25, %c0_26, %c0_27] : memref<4x32x16xbf16, #tpu.memory_space<vmem>>, vector<1x32x16xbf16>
    %42 = vector.shape_cast %41 : vector<1x32x16xbf16> to vector<32x16xbf16>
    %cst_28 = arith.constant dense<0.000000e+00> : vector<16x16xf32>
    %43 = tpu.matmul %33, %42, %cst_28 {dimension_numbers = #tpu.dot_dimension_numbers<[1], [0], [0], [1], [0, 0, 1, 1], [], []>} : vector<16x32xbf16>, vector<32x16xbf16>, vector<16x16xf32> -> vector<16x16xf32>
    %c0_29 = arith.constant 0 : index
    %c0_30 = arith.constant 0 : index
    %c0_31 = arith.constant 0 : index
    %44 = vector.load %arg9[%c0_29, %c0_30, %c0_31] : memref<4x1x16xf32, #tpu.memory_space<vmem>>, vector<1x1x16xf32>
    %45 = vector.shape_cast %44 : vector<1x1x16xf32> to vector<1x16xf32>
    %46 = vector.broadcast %45 : vector<1x16xf32> to vector<16x16xf32>
    %47 = arith.addf %43, %46 : vector<16x16xf32>
    %c0_32 = arith.constant 0 : index
    %c0_33 = arith.constant 0 : index
    %c0_34 = arith.constant 0 : index
    %48 = vector.load %arg10[%c0_32, %c0_33, %c0_34] : memref<4x32x16xbf16, #tpu.memory_space<vmem>>, vector<1x32x16xbf16>
    %49 = vector.shape_cast %48 : vector<1x32x16xbf16> to vector<32x16xbf16>
    %cst_35 = arith.constant dense<0.000000e+00> : vector<16x16xf32>
    %50 = tpu.matmul %33, %49, %cst_35 {dimension_numbers = #tpu.dot_dimension_numbers<[1], [0], [0], [1], [0, 0, 1, 1], [], []>} : vector<16x32xbf16>, vector<32x16xbf16>, vector<16x16xf32> -> vector<16x16xf32>
    %c0_36 = arith.constant 0 : index
    %c0_37 = arith.constant 0 : index
    %c0_38 = arith.constant 0 : index
    %51 = vector.load %arg11[%c0_36, %c0_37, %c0_38] : memref<4x1x16xf32, #tpu.memory_space<vmem>>, vector<1x1x16xf32>
    %52 = vector.shape_cast %51 : vector<1x1x16xf32> to vector<1x16xf32>
    %53 = vector.broadcast %52 : vector<1x16xf32> to vector<16x16xf32>
    %54 = arith.addf %50, %53 : vector<16x16xf32>
    %55 = arith.truncf %40 : vector<16x16xf32> to vector<16x16xbf16>
    %56 = arith.truncf %47 : vector<16x16xf32> to vector<16x16xbf16>
    %cst_39 = arith.constant dense<0.000000e+00> : vector<16x16xf32>
    %57 = tpu.matmul %55, %56, %cst_39 {dimension_numbers = #tpu.dot_dimension_numbers<[1], [1], [0], [0], [0, 0, 1, 0], [], []>} : vector<16x16xbf16>, vector<16x16xbf16>, vector<16x16xf32> -> vector<16x16xf32>
    %cst_40 = arith.constant 2.500000e-01 : f32
    %58 = vector.broadcast %cst_40 : f32 to vector<16x16xf32>
    %59 = arith.mulf %57, %58 : vector<16x16xf32>
    %60 = arith.addf %59, %6 : vector<16x16xf32>
    %cst_41 = arith.constant dense<0xFF800000> : vector<16xf32>
    %61 = vector.multi_reduction <maximumf>, %60, %cst_41 [1] : vector<16x16xf32> to vector<16xf32>
    %62 = vector.shape_cast %61 : vector<16xf32> to vector<16x1xf32>
    %63 = vector.broadcast %62 : vector<16x1xf32> to vector<16x16xf32>
    %64 = arith.subf %60, %63 : vector<16x16xf32>
    %65 = math.exp %64 : vector<16x16xf32>
    %cst_42 = arith.constant dense<0.000000e+00> : vector<16xf32>
    %66 = vector.multi_reduction <add>, %65, %cst_42 [1] : vector<16x16xf32> to vector<16xf32>
    %67 = vector.shape_cast %66 : vector<16xf32> to vector<16x1xf32>
    %68 = tpu.reciprocal %67 {approx = true} : vector<16x1xf32> -> vector<16x1xf32>
    %69 = vector.broadcast %68 : vector<16x1xf32> to vector<16x16xf32>
    %70 = arith.mulf %65, %69 : vector<16x16xf32>
    %71 = arith.truncf %70 : vector<16x16xf32> to vector<16x16xbf16>
    %72 = arith.truncf %54 : vector<16x16xf32> to vector<16x16xbf16>
    %cst_43 = arith.constant dense<0.000000e+00> : vector<16x16xf32>
    %73 = tpu.matmul %71, %72, %cst_43 {dimension_numbers = #tpu.dot_dimension_numbers<[1], [0], [0], [1], [0, 0, 1, 1], [], []>} : vector<16x16xbf16>, vector<16x16xbf16>, vector<16x16xf32> -> vector<16x16xf32>
    %74 = arith.truncf %73 : vector<16x16xf32> to vector<16x16xbf16>
    %c0_44 = arith.constant 0 : index
    %c0_45 = arith.constant 0 : index
    %c0_46 = arith.constant 0 : index
    %75 = vector.load %arg12[%c0_44, %c0_45, %c0_46] : memref<4x16x32xbf16, #tpu.memory_space<vmem>>, vector<1x16x32xbf16>
    %76 = vector.shape_cast %75 : vector<1x16x32xbf16> to vector<16x32xbf16>
    %cst_47 = arith.constant dense<0.000000e+00> : vector<16x32xf32>
    %77 = tpu.matmul %74, %76, %cst_47 {dimension_numbers = #tpu.dot_dimension_numbers<[1], [0], [0], [1], [0, 0, 1, 1], [], []>} : vector<16x16xbf16>, vector<16x32xbf16>, vector<16x32xf32> -> vector<16x32xf32>
    %c1 = arith.constant 1 : index
    %c0_48 = arith.constant 0 : index
    %c0_49 = arith.constant 0 : index
    %78 = vector.load %arg6[%c1, %c0_48, %c0_49] : memref<4x32x16xbf16, #tpu.memory_space<vmem>>, vector<1x32x16xbf16>
    %79 = vector.shape_cast %78 : vector<1x32x16xbf16> to vector<32x16xbf16>
    %cst_50 = arith.constant dense<0.000000e+00> : vector<16x16xf32>
    %80 = tpu.matmul %33, %79, %cst_50 {dimension_numbers = #tpu.dot_dimension_numbers<[1], [0], [0], [1], [0, 0, 1, 1], [], []>} : vector<16x32xbf16>, vector<32x16xbf16>, vector<16x16xf32> -> vector<16x16xf32>
    %c1_51 = arith.constant 1 : index
    %c0_52 = arith.constant 0 : index
    %c0_53 = arith.constant 0 : index
    %81 = vector.load %arg7[%c1_51, %c0_52, %c0_53] : memref<4x1x16xf32, #tpu.memory_space<vmem>>, vector<1x1x16xf32>
    %82 = vector.shape_cast %81 : vector<1x1x16xf32> to vector<1x16xf32>
    %83 = vector.broadcast %82 : vector<1x16xf32> to vector<16x16xf32>
    %84 = arith.addf %80, %83 : vector<16x16xf32>
    %c1_54 = arith.constant 1 : index
    %c0_55 = arith.constant 0 : index
    %c0_56 = arith.constant 0 : index
    %85 = vector.load %arg8[%c1_54, %c0_55, %c0_56] : memref<4x32x16xbf16, #tpu.memory_space<vmem>>, vector<1x32x16xbf16>
    %86 = vector.shape_cast %85 : vector<1x32x16xbf16> to vector<32x16xbf16>
    %cst_57 = arith.constant dense<0.000000e+00> : vector<16x16xf32>
    %87 = tpu.matmul %33, %86, %cst_57 {dimension_numbers = #tpu.dot_dimension_numbers<[1], [0], [0], [1], [0, 0, 1, 1], [], []>} : vector<16x32xbf16>, vector<32x16xbf16>, vector<16x16xf32> -> vector<16x16xf32>
    %c1_58 = arith.constant 1 : index
    %c0_59 = arith.constant 0 : index
    %c0_60 = arith.constant 0 : index
    %88 = vector.load %arg9[%c1_58, %c0_59, %c0_60] : memref<4x1x16xf32, #tpu.memory_space<vmem>>, vector<1x1x16xf32>
    %89 = vector.shape_cast %88 : vector<1x1x16xf32> to vector<1x16xf32>
    %90 = vector.broadcast %89 : vector<1x16xf32> to vector<16x16xf32>
    %91 = arith.addf %87, %90 : vector<16x16xf32>
    %c1_61 = arith.constant 1 : index
    %c0_62 = arith.constant 0 : index
    %c0_63 = arith.constant 0 : index
    %92 = vector.load %arg10[%c1_61, %c0_62, %c0_63] : memref<4x32x16xbf16, #tpu.memory_space<vmem>>, vector<1x32x16xbf16>
    %93 = vector.shape_cast %92 : vector<1x32x16xbf16> to vector<32x16xbf16>
    %cst_64 = arith.constant dense<0.000000e+00> : vector<16x16xf32>
    %94 = tpu.matmul %33, %93, %cst_64 {dimension_numbers = #tpu.dot_dimension_numbers<[1], [0], [0], [1], [0, 0, 1, 1], [], []>} : vector<16x32xbf16>, vector<32x16xbf16>, vector<16x16xf32> -> vector<16x16xf32>
    %c1_65 = arith.constant 1 : index
    %c0_66 = arith.constant 0 : index
    %c0_67 = arith.constant 0 : index
    %95 = vector.load %arg11[%c1_65, %c0_66, %c0_67] : memref<4x1x16xf32, #tpu.memory_space<vmem>>, vector<1x1x16xf32>
    %96 = vector.shape_cast %95 : vector<1x1x16xf32> to vector<1x16xf32>
    %97 = vector.broadcast %96 : vector<1x16xf32> to vector<16x16xf32>
    %98 = arith.addf %94, %97 : vector<16x16xf32>
    %99 = arith.truncf %84 : vector<16x16xf32> to vector<16x16xbf16>
    %100 = arith.truncf %91 : vector<16x16xf32> to vector<16x16xbf16>
    %cst_68 = arith.constant dense<0.000000e+00> : vector<16x16xf32>
    %101 = tpu.matmul %99, %100, %cst_68 {dimension_numbers = #tpu.dot_dimension_numbers<[1], [1], [0], [0], [0, 0, 1, 0], [], []>} : vector<16x16xbf16>, vector<16x16xbf16>, vector<16x16xf32> -> vector<16x16xf32>
    %cst_69 = arith.constant 2.500000e-01 : f32
    %102 = vector.broadcast %cst_69 : f32 to vector<16x16xf32>
    %103 = arith.mulf %101, %102 : vector<16x16xf32>
    %104 = arith.addf %103, %6 : vector<16x16xf32>
    %cst_70 = arith.constant dense<0xFF800000> : vector<16xf32>
    %105 = vector.multi_reduction <maximumf>, %104, %cst_70 [1] : vector<16x16xf32> to vector<16xf32>
    %106 = vector.shape_cast %105 : vector<16xf32> to vector<16x1xf32>
    %107 = vector.broadcast %106 : vector<16x1xf32> to vector<16x16xf32>
    %108 = arith.subf %104, %107 : vector<16x16xf32>
    %109 = math.exp %108 : vector<16x16xf32>
    %cst_71 = arith.constant dense<0.000000e+00> : vector<16xf32>
    %110 = vector.multi_reduction <add>, %109, %cst_71 [1] : vector<16x16xf32> to vector<16xf32>
    %111 = vector.shape_cast %110 : vector<16xf32> to vector<16x1xf32>
    %112 = tpu.reciprocal %111 {approx = true} : vector<16x1xf32> -> vector<16x1xf32>
    %113 = vector.broadcast %112 : vector<16x1xf32> to vector<16x16xf32>
    %114 = arith.mulf %109, %113 : vector<16x16xf32>
    %115 = arith.truncf %114 : vector<16x16xf32> to vector<16x16xbf16>
    %116 = arith.truncf %98 : vector<16x16xf32> to vector<16x16xbf16>
    %cst_72 = arith.constant dense<0.000000e+00> : vector<16x16xf32>
    %117 = tpu.matmul %115, %116, %cst_72 {dimension_numbers = #tpu.dot_dimension_numbers<[1], [0], [0], [1], [0, 0, 1, 1], [], []>} : vector<16x16xbf16>, vector<16x16xbf16>, vector<16x16xf32> -> vector<16x16xf32>
    %118 = arith.truncf %117 : vector<16x16xf32> to vector<16x16xbf16>
    %c1_73 = arith.constant 1 : index
    %c0_74 = arith.constant 0 : index
    %c0_75 = arith.constant 0 : index
    %119 = vector.load %arg12[%c1_73, %c0_74, %c0_75] : memref<4x16x32xbf16, #tpu.memory_space<vmem>>, vector<1x16x32xbf16>
    %120 = vector.shape_cast %119 : vector<1x16x32xbf16> to vector<16x32xbf16>
    %cst_76 = arith.constant dense<0.000000e+00> : vector<16x32xf32>
    %121 = tpu.matmul %118, %120, %cst_76 {dimension_numbers = #tpu.dot_dimension_numbers<[1], [0], [0], [1], [0, 0, 1, 1], [], []>} : vector<16x16xbf16>, vector<16x32xbf16>, vector<16x32xf32> -> vector<16x32xf32>
    %122 = arith.addf %77, %121 : vector<16x32xf32>
    %123 = arith.addf %5, %122 : vector<16x32xf32>
    %c0_77 = arith.constant 0 : index
    %c0_78 = arith.constant 0 : index
    %c0_79 = arith.constant 0 : index
    %124 = vector.load %arg13[%c0_77, %c0_78, %c0_79] : memref<2x1x32xf32, #tpu.memory_space<vmem>>, vector<1x1x32xf32>
    %125 = vector.shape_cast %124 : vector<1x1x32xf32> to vector<1x32xf32>
    %126 = vector.broadcast %125 : vector<1x32xf32> to vector<16x32xf32>
    %127 = arith.addf %123, %126 : vector<16x32xf32>
    %c0_80 = arith.constant 0 : index
    %c0_81 = arith.constant 0 : index
    %c0_82 = arith.constant 0 : index
    %128 = vector.load %arg14[%c0_80, %c0_81, %c0_82] : memref<2x1x32xf32, #tpu.memory_space<vmem>>, vector<1x1x32xf32>
    %129 = vector.shape_cast %128 : vector<1x1x32xf32> to vector<1x32xf32>
    %c0_83 = arith.constant 0 : index
    %c0_84 = arith.constant 0 : index
    %c0_85 = arith.constant 0 : index
    %130 = vector.load %arg15[%c0_83, %c0_84, %c0_85] : memref<2x1x32xf32, #tpu.memory_space<vmem>>, vector<1x1x32xf32>
    %131 = vector.shape_cast %130 : vector<1x1x32xf32> to vector<1x32xf32>
    %cst_86 = arith.constant dense<0.000000e+00> : vector<16xf32>
    %132 = vector.multi_reduction <add>, %127, %cst_86 [1] : vector<16x32xf32> to vector<16xf32>
    %133 = vector.shape_cast %132 : vector<16xf32> to vector<16x1xf32>
    %cst_87 = arith.constant 3.200000e+01 : f32
    %134 = vector.broadcast %cst_87 : f32 to vector<16x1xf32>
    %135 = arith.divf %133, %134 : vector<16x1xf32>
    %136 = vector.broadcast %135 : vector<16x1xf32> to vector<16x32xf32>
    %137 = arith.subf %127, %136 : vector<16x32xf32>
    %138 = arith.mulf %137, %137 : vector<16x32xf32>
    %cst_88 = arith.constant dense<0.000000e+00> : vector<16xf32>
    %139 = vector.multi_reduction <add>, %138, %cst_88 [1] : vector<16x32xf32> to vector<16xf32>
    %140 = vector.shape_cast %139 : vector<16xf32> to vector<16x1xf32>
    %cst_89 = arith.constant 3.200000e+01 : f32
    %141 = vector.broadcast %cst_89 : f32 to vector<16x1xf32>
    %142 = arith.divf %140, %141 : vector<16x1xf32>
    %143 = vector.broadcast %135 : vector<16x1xf32> to vector<16x32xf32>
    %144 = arith.subf %127, %143 : vector<16x32xf32>
    %cst_90 = arith.constant 9.99999997E-7 : f32
    %145 = vector.broadcast %cst_90 : f32 to vector<16x1xf32>
    %146 = arith.addf %142, %145 : vector<16x1xf32>
    %147 = math.rsqrt %146 : vector<16x1xf32>
    %148 = vector.broadcast %147 : vector<16x1xf32> to vector<16x32xf32>
    %149 = arith.mulf %144, %148 : vector<16x32xf32>
    %150 = vector.broadcast %129 : vector<1x32xf32> to vector<16x32xf32>
    %151 = arith.mulf %149, %150 : vector<16x32xf32>
    %152 = vector.broadcast %131 : vector<1x32xf32> to vector<16x32xf32>
    %153 = arith.addf %151, %152 : vector<16x32xf32>
    %154 = arith.truncf %153 : vector<16x32xf32> to vector<16x32xbf16>
    %c0_91 = arith.constant 0 : index
    %c0_92 = arith.constant 0 : index
    %c0_93 = arith.constant 0 : index
    %155 = vector.load %arg16[%c0_91, %c0_92, %c0_93] : memref<2x32x128xbf16, #tpu.memory_space<vmem>>, vector<1x32x128xbf16>
    %156 = vector.shape_cast %155 : vector<1x32x128xbf16> to vector<32x128xbf16>
    %cst_94 = arith.constant dense<0.000000e+00> : vector<16x128xf32>
    %157 = tpu.matmul %154, %156, %cst_94 {dimension_numbers = #tpu.dot_dimension_numbers<[1], [0], [0], [1], [0, 0, 1, 1], [], []>} : vector<16x32xbf16>, vector<32x128xbf16>, vector<16x128xf32> -> vector<16x128xf32>
    %c0_95 = arith.constant 0 : index
    %c0_96 = arith.constant 0 : index
    %c0_97 = arith.constant 0 : index
    %158 = vector.load %arg17[%c0_95, %c0_96, %c0_97] : memref<2x1x128xf32, #tpu.memory_space<vmem>>, vector<1x1x128xf32>
    %159 = vector.shape_cast %158 : vector<1x1x128xf32> to vector<1x128xf32>
    %160 = vector.broadcast %159 : vector<1x128xf32> to vector<16x128xf32>
    %161 = arith.addf %157, %160 : vector<16x128xf32>
    %162 = arith.mulf %161, %161 : vector<16x128xf32>
    %163 = arith.mulf %161, %162 : vector<16x128xf32>
    %cst_98 = arith.constant 4.471500e-02 : f32
    %164 = vector.broadcast %cst_98 : f32 to vector<16x128xf32>
    %165 = arith.mulf %164, %163 : vector<16x128xf32>
    %166 = arith.addf %161, %165 : vector<16x128xf32>
    %cst_99 = arith.constant 0.797884583 : f32
    %167 = vector.broadcast %cst_99 : f32 to vector<16x128xf32>
    %168 = arith.mulf %167, %166 : vector<16x128xf32>
    %169 = math.tanh %168 : vector<16x128xf32>
    %cst_100 = arith.constant 1.000000e+00 : f32
    %170 = vector.broadcast %cst_100 : f32 to vector<16x128xf32>
    %171 = arith.addf %170, %169 : vector<16x128xf32>
    %cst_101 = arith.constant 5.000000e-01 : f32
    %172 = vector.broadcast %cst_101 : f32 to vector<16x128xf32>
    %173 = arith.mulf %172, %171 : vector<16x128xf32>
    %174 = arith.mulf %161, %173 : vector<16x128xf32>
    %175 = arith.truncf %174 : vector<16x128xf32> to vector<16x128xbf16>
    %c0_102 = arith.constant 0 : index
    %c0_103 = arith.constant 0 : index
    %c0_104 = arith.constant 0 : index
    %176 = vector.load %arg18[%c0_102, %c0_103, %c0_104] : memref<2x128x32xbf16, #tpu.memory_space<vmem>>, vector<1x128x32xbf16>
    %177 = vector.shape_cast %176 : vector<1x128x32xbf16> to vector<128x32xbf16>
    %cst_105 = arith.constant dense<0.000000e+00> : vector<16x32xf32>
    %178 = tpu.matmul %175, %177, %cst_105 {dimension_numbers = #tpu.dot_dimension_numbers<[1], [0], [0], [1], [0, 0, 1, 1], [], []>} : vector<16x128xbf16>, vector<128x32xbf16>, vector<16x32xf32> -> vector<16x32xf32>
    %c0_106 = arith.constant 0 : index
    %c0_107 = arith.constant 0 : index
    %c0_108 = arith.constant 0 : index
    %179 = vector.load %arg19[%c0_106, %c0_107, %c0_108] : memref<2x1x32xf32, #tpu.memory_space<vmem>>, vector<1x1x32xf32>
    %180 = vector.shape_cast %179 : vector<1x1x32xf32> to vector<1x32xf32>
    %181 = vector.broadcast %180 : vector<1x32xf32> to vector<16x32xf32>
    %182 = arith.addf %178, %181 : vector<16x32xf32>
    %183 = arith.addf %127, %182 : vector<16x32xf32>
    %c1_109 = arith.constant 1 : index
    %c0_110 = arith.constant 0 : index
    %c0_111 = arith.constant 0 : index
    %184 = vector.load %arg4[%c1_109, %c0_110, %c0_111] : memref<2x1x32xf32, #tpu.memory_space<vmem>>, vector<1x1x32xf32>
    %185 = vector.shape_cast %184 : vector<1x1x32xf32> to vector<1x32xf32>
    %c1_112 = arith.constant 1 : index
    %c0_113 = arith.constant 0 : index
    %c0_114 = arith.constant 0 : index
    %186 = vector.load %arg5[%c1_112, %c0_113, %c0_114] : memref<2x1x32xf32, #tpu.memory_space<vmem>>, vector<1x1x32xf32>
    %187 = vector.shape_cast %186 : vector<1x1x32xf32> to vector<1x32xf32>
    %cst_115 = arith.constant dense<0.000000e+00> : vector<16xf32>
    %188 = vector.multi_reduction <add>, %183, %cst_115 [1] : vector<16x32xf32> to vector<16xf32>
    %189 = vector.shape_cast %188 : vector<16xf32> to vector<16x1xf32>
    %cst_116 = arith.constant 3.200000e+01 : f32
    %190 = vector.broadcast %cst_116 : f32 to vector<16x1xf32>
    %191 = arith.divf %189, %190 : vector<16x1xf32>
    %192 = vector.broadcast %191 : vector<16x1xf32> to vector<16x32xf32>
    %193 = arith.subf %183, %192 : vector<16x32xf32>
    %194 = arith.mulf %193, %193 : vector<16x32xf32>
    %cst_117 = arith.constant dense<0.000000e+00> : vector<16xf32>
    %195 = vector.multi_reduction <add>, %194, %cst_117 [1] : vector<16x32xf32> to vector<16xf32>
    %196 = vector.shape_cast %195 : vector<16xf32> to vector<16x1xf32>
    %cst_118 = arith.constant 3.200000e+01 : f32
    %197 = vector.broadcast %cst_118 : f32 to vector<16x1xf32>
    %198 = arith.divf %196, %197 : vector<16x1xf32>
    %199 = vector.broadcast %191 : vector<16x1xf32> to vector<16x32xf32>
    %200 = arith.subf %183, %199 : vector<16x32xf32>
    %cst_119 = arith.constant 9.99999997E-7 : f32
    %201 = vector.broadcast %cst_119 : f32 to vector<16x1xf32>
    %202 = arith.addf %198, %201 : vector<16x1xf32>
    %203 = math.rsqrt %202 : vector<16x1xf32>
    %204 = vector.broadcast %203 : vector<16x1xf32> to vector<16x32xf32>
    %205 = arith.mulf %200, %204 : vector<16x32xf32>
    %206 = vector.broadcast %185 : vector<1x32xf32> to vector<16x32xf32>
    %207 = arith.mulf %205, %206 : vector<16x32xf32>
    %208 = vector.broadcast %187 : vector<1x32xf32> to vector<16x32xf32>
    %209 = arith.addf %207, %208 : vector<16x32xf32>
    %210 = arith.truncf %209 : vector<16x32xf32> to vector<16x32xbf16>
    %c2 = arith.constant 2 : index
    %c0_120 = arith.constant 0 : index
    %c0_121 = arith.constant 0 : index
    %211 = vector.load %arg6[%c2, %c0_120, %c0_121] : memref<4x32x16xbf16, #tpu.memory_space<vmem>>, vector<1x32x16xbf16>
    %212 = vector.shape_cast %211 : vector<1x32x16xbf16> to vector<32x16xbf16>
    %cst_122 = arith.constant dense<0.000000e+00> : vector<16x16xf32>
    %213 = tpu.matmul %210, %212, %cst_122 {dimension_numbers = #tpu.dot_dimension_numbers<[1], [0], [0], [1], [0, 0, 1, 1], [], []>} : vector<16x32xbf16>, vector<32x16xbf16>, vector<16x16xf32> -> vector<16x16xf32>
    %c2_123 = arith.constant 2 : index
    %c0_124 = arith.constant 0 : index
    %c0_125 = arith.constant 0 : index
    %214 = vector.load %arg7[%c2_123, %c0_124, %c0_125] : memref<4x1x16xf32, #tpu.memory_space<vmem>>, vector<1x1x16xf32>
    %215 = vector.shape_cast %214 : vector<1x1x16xf32> to vector<1x16xf32>
    %216 = vector.broadcast %215 : vector<1x16xf32> to vector<16x16xf32>
    %217 = arith.addf %213, %216 : vector<16x16xf32>
    %c2_126 = arith.constant 2 : index
    %c0_127 = arith.constant 0 : index
    %c0_128 = arith.constant 0 : index
    %218 = vector.load %arg8[%c2_126, %c0_127, %c0_128] : memref<4x32x16xbf16, #tpu.memory_space<vmem>>, vector<1x32x16xbf16>
    %219 = vector.shape_cast %218 : vector<1x32x16xbf16> to vector<32x16xbf16>
    %cst_129 = arith.constant dense<0.000000e+00> : vector<16x16xf32>
    %220 = tpu.matmul %210, %219, %cst_129 {dimension_numbers = #tpu.dot_dimension_numbers<[1], [0], [0], [1], [0, 0, 1, 1], [], []>} : vector<16x32xbf16>, vector<32x16xbf16>, vector<16x16xf32> -> vector<16x16xf32>
    %c2_130 = arith.constant 2 : index
    %c0_131 = arith.constant 0 : index
    %c0_132 = arith.constant 0 : index
    %221 = vector.load %arg9[%c2_130, %c0_131, %c0_132] : memref<4x1x16xf32, #tpu.memory_space<vmem>>, vector<1x1x16xf32>
    %222 = vector.shape_cast %221 : vector<1x1x16xf32> to vector<1x16xf32>
    %223 = vector.broadcast %222 : vector<1x16xf32> to vector<16x16xf32>
    %224 = arith.addf %220, %223 : vector<16x16xf32>
    %c2_133 = arith.constant 2 : index
    %c0_134 = arith.constant 0 : index
    %c0_135 = arith.constant 0 : index
    %225 = vector.load %arg10[%c2_133, %c0_134, %c0_135] : memref<4x32x16xbf16, #tpu.memory_space<vmem>>, vector<1x32x16xbf16>
    %226 = vector.shape_cast %225 : vector<1x32x16xbf16> to vector<32x16xbf16>
    %cst_136 = arith.constant dense<0.000000e+00> : vector<16x16xf32>
    %227 = tpu.matmul %210, %226, %cst_136 {dimension_numbers = #tpu.dot_dimension_numbers<[1], [0], [0], [1], [0, 0, 1, 1], [], []>} : vector<16x32xbf16>, vector<32x16xbf16>, vector<16x16xf32> -> vector<16x16xf32>
    %c2_137 = arith.constant 2 : index
    %c0_138 = arith.constant 0 : index
    %c0_139 = arith.constant 0 : index
    %228 = vector.load %arg11[%c2_137, %c0_138, %c0_139] : memref<4x1x16xf32, #tpu.memory_space<vmem>>, vector<1x1x16xf32>
    %229 = vector.shape_cast %228 : vector<1x1x16xf32> to vector<1x16xf32>
    %230 = vector.broadcast %229 : vector<1x16xf32> to vector<16x16xf32>
    %231 = arith.addf %227, %230 : vector<16x16xf32>
    %232 = arith.truncf %217 : vector<16x16xf32> to vector<16x16xbf16>
    %233 = arith.truncf %224 : vector<16x16xf32> to vector<16x16xbf16>
    %cst_140 = arith.constant dense<0.000000e+00> : vector<16x16xf32>
    %234 = tpu.matmul %232, %233, %cst_140 {dimension_numbers = #tpu.dot_dimension_numbers<[1], [1], [0], [0], [0, 0, 1, 0], [], []>} : vector<16x16xbf16>, vector<16x16xbf16>, vector<16x16xf32> -> vector<16x16xf32>
    %cst_141 = arith.constant 2.500000e-01 : f32
    %235 = vector.broadcast %cst_141 : f32 to vector<16x16xf32>
    %236 = arith.mulf %234, %235 : vector<16x16xf32>
    %237 = arith.addf %236, %6 : vector<16x16xf32>
    %cst_142 = arith.constant dense<0xFF800000> : vector<16xf32>
    %238 = vector.multi_reduction <maximumf>, %237, %cst_142 [1] : vector<16x16xf32> to vector<16xf32>
    %239 = vector.shape_cast %238 : vector<16xf32> to vector<16x1xf32>
    %240 = vector.broadcast %239 : vector<16x1xf32> to vector<16x16xf32>
    %241 = arith.subf %237, %240 : vector<16x16xf32>
    %242 = math.exp %241 : vector<16x16xf32>
    %cst_143 = arith.constant dense<0.000000e+00> : vector<16xf32>
    %243 = vector.multi_reduction <add>, %242, %cst_143 [1] : vector<16x16xf32> to vector<16xf32>
    %244 = vector.shape_cast %243 : vector<16xf32> to vector<16x1xf32>
    %245 = tpu.reciprocal %244 {approx = true} : vector<16x1xf32> -> vector<16x1xf32>
    %246 = vector.broadcast %245 : vector<16x1xf32> to vector<16x16xf32>
    %247 = arith.mulf %242, %246 : vector<16x16xf32>
    %248 = arith.truncf %247 : vector<16x16xf32> to vector<16x16xbf16>
    %249 = arith.truncf %231 : vector<16x16xf32> to vector<16x16xbf16>
    %cst_144 = arith.constant dense<0.000000e+00> : vector<16x16xf32>
    %250 = tpu.matmul %248, %249, %cst_144 {dimension_numbers = #tpu.dot_dimension_numbers<[1], [0], [0], [1], [0, 0, 1, 1], [], []>} : vector<16x16xbf16>, vector<16x16xbf16>, vector<16x16xf32> -> vector<16x16xf32>
    %251 = arith.truncf %250 : vector<16x16xf32> to vector<16x16xbf16>
    %c2_145 = arith.constant 2 : index
    %c0_146 = arith.constant 0 : index
    %c0_147 = arith.constant 0 : index
    %252 = vector.load %arg12[%c2_145, %c0_146, %c0_147] : memref<4x16x32xbf16, #tpu.memory_space<vmem>>, vector<1x16x32xbf16>
    %253 = vector.shape_cast %252 : vector<1x16x32xbf16> to vector<16x32xbf16>
    %cst_148 = arith.constant dense<0.000000e+00> : vector<16x32xf32>
    %254 = tpu.matmul %251, %253, %cst_148 {dimension_numbers = #tpu.dot_dimension_numbers<[1], [0], [0], [1], [0, 0, 1, 1], [], []>} : vector<16x16xbf16>, vector<16x32xbf16>, vector<16x32xf32> -> vector<16x32xf32>
    %c3 = arith.constant 3 : index
    %c0_149 = arith.constant 0 : index
    %c0_150 = arith.constant 0 : index
    %255 = vector.load %arg6[%c3, %c0_149, %c0_150] : memref<4x32x16xbf16, #tpu.memory_space<vmem>>, vector<1x32x16xbf16>
    %256 = vector.shape_cast %255 : vector<1x32x16xbf16> to vector<32x16xbf16>
    %cst_151 = arith.constant dense<0.000000e+00> : vector<16x16xf32>
    %257 = tpu.matmul %210, %256, %cst_151 {dimension_numbers = #tpu.dot_dimension_numbers<[1], [0], [0], [1], [0, 0, 1, 1], [], []>} : vector<16x32xbf16>, vector<32x16xbf16>, vector<16x16xf32> -> vector<16x16xf32>
    %c3_152 = arith.constant 3 : index
    %c0_153 = arith.constant 0 : index
    %c0_154 = arith.constant 0 : index
    %258 = vector.load %arg7[%c3_152, %c0_153, %c0_154] : memref<4x1x16xf32, #tpu.memory_space<vmem>>, vector<1x1x16xf32>
    %259 = vector.shape_cast %258 : vector<1x1x16xf32> to vector<1x16xf32>
    %260 = vector.broadcast %259 : vector<1x16xf32> to vector<16x16xf32>
    %261 = arith.addf %257, %260 : vector<16x16xf32>
    %c3_155 = arith.constant 3 : index
    %c0_156 = arith.constant 0 : index
    %c0_157 = arith.constant 0 : index
    %262 = vector.load %arg8[%c3_155, %c0_156, %c0_157] : memref<4x32x16xbf16, #tpu.memory_space<vmem>>, vector<1x32x16xbf16>
    %263 = vector.shape_cast %262 : vector<1x32x16xbf16> to vector<32x16xbf16>
    %cst_158 = arith.constant dense<0.000000e+00> : vector<16x16xf32>
    %264 = tpu.matmul %210, %263, %cst_158 {dimension_numbers = #tpu.dot_dimension_numbers<[1], [0], [0], [1], [0, 0, 1, 1], [], []>} : vector<16x32xbf16>, vector<32x16xbf16>, vector<16x16xf32> -> vector<16x16xf32>
    %c3_159 = arith.constant 3 : index
    %c0_160 = arith.constant 0 : index
    %c0_161 = arith.constant 0 : index
    %265 = vector.load %arg9[%c3_159, %c0_160, %c0_161] : memref<4x1x16xf32, #tpu.memory_space<vmem>>, vector<1x1x16xf32>
    %266 = vector.shape_cast %265 : vector<1x1x16xf32> to vector<1x16xf32>
    %267 = vector.broadcast %266 : vector<1x16xf32> to vector<16x16xf32>
    %268 = arith.addf %264, %267 : vector<16x16xf32>
    %c3_162 = arith.constant 3 : index
    %c0_163 = arith.constant 0 : index
    %c0_164 = arith.constant 0 : index
    %269 = vector.load %arg10[%c3_162, %c0_163, %c0_164] : memref<4x32x16xbf16, #tpu.memory_space<vmem>>, vector<1x32x16xbf16>
    %270 = vector.shape_cast %269 : vector<1x32x16xbf16> to vector<32x16xbf16>
    %cst_165 = arith.constant dense<0.000000e+00> : vector<16x16xf32>
    %271 = tpu.matmul %210, %270, %cst_165 {dimension_numbers = #tpu.dot_dimension_numbers<[1], [0], [0], [1], [0, 0, 1, 1], [], []>} : vector<16x32xbf16>, vector<32x16xbf16>, vector<16x16xf32> -> vector<16x16xf32>
    %c3_166 = arith.constant 3 : index
    %c0_167 = arith.constant 0 : index
    %c0_168 = arith.constant 0 : index
    %272 = vector.load %arg11[%c3_166, %c0_167, %c0_168] : memref<4x1x16xf32, #tpu.memory_space<vmem>>, vector<1x1x16xf32>
    %273 = vector.shape_cast %272 : vector<1x1x16xf32> to vector<1x16xf32>
    %274 = vector.broadcast %273 : vector<1x16xf32> to vector<16x16xf32>
    %275 = arith.addf %271, %274 : vector<16x16xf32>
    %276 = arith.truncf %261 : vector<16x16xf32> to vector<16x16xbf16>
    %277 = arith.truncf %268 : vector<16x16xf32> to vector<16x16xbf16>
    %cst_169 = arith.constant dense<0.000000e+00> : vector<16x16xf32>
    %278 = tpu.matmul %276, %277, %cst_169 {dimension_numbers = #tpu.dot_dimension_numbers<[1], [1], [0], [0], [0, 0, 1, 0], [], []>} : vector<16x16xbf16>, vector<16x16xbf16>, vector<16x16xf32> -> vector<16x16xf32>
    %cst_170 = arith.constant 2.500000e-01 : f32
    %279 = vector.broadcast %cst_170 : f32 to vector<16x16xf32>
    %280 = arith.mulf %278, %279 : vector<16x16xf32>
    %281 = arith.addf %280, %6 : vector<16x16xf32>
    %cst_171 = arith.constant dense<0xFF800000> : vector<16xf32>
    %282 = vector.multi_reduction <maximumf>, %281, %cst_171 [1] : vector<16x16xf32> to vector<16xf32>
    %283 = vector.shape_cast %282 : vector<16xf32> to vector<16x1xf32>
    %284 = vector.broadcast %283 : vector<16x1xf32> to vector<16x16xf32>
    %285 = arith.subf %281, %284 : vector<16x16xf32>
    %286 = math.exp %285 : vector<16x16xf32>
    %cst_172 = arith.constant dense<0.000000e+00> : vector<16xf32>
    %287 = vector.multi_reduction <add>, %286, %cst_172 [1] : vector<16x16xf32> to vector<16xf32>
    %288 = vector.shape_cast %287 : vector<16xf32> to vector<16x1xf32>
    %289 = tpu.reciprocal %288 {approx = true} : vector<16x1xf32> -> vector<16x1xf32>
    %290 = vector.broadcast %289 : vector<16x1xf32> to vector<16x16xf32>
    %291 = arith.mulf %286, %290 : vector<16x16xf32>
    %292 = arith.truncf %291 : vector<16x16xf32> to vector<16x16xbf16>
    %293 = arith.truncf %275 : vector<16x16xf32> to vector<16x16xbf16>
    %cst_173 = arith.constant dense<0.000000e+00> : vector<16x16xf32>
    %294 = tpu.matmul %292, %293, %cst_173 {dimension_numbers = #tpu.dot_dimension_numbers<[1], [0], [0], [1], [0, 0, 1, 1], [], []>} : vector<16x16xbf16>, vector<16x16xbf16>, vector<16x16xf32> -> vector<16x16xf32>
    %295 = arith.truncf %294 : vector<16x16xf32> to vector<16x16xbf16>
    %c3_174 = arith.constant 3 : index
    %c0_175 = arith.constant 0 : index
    %c0_176 = arith.constant 0 : index
    %296 = vector.load %arg12[%c3_174, %c0_175, %c0_176] : memref<4x16x32xbf16, #tpu.memory_space<vmem>>, vector<1x16x32xbf16>
    %297 = vector.shape_cast %296 : vector<1x16x32xbf16> to vector<16x32xbf16>
    %cst_177 = arith.constant dense<0.000000e+00> : vector<16x32xf32>
    %298 = tpu.matmul %295, %297, %cst_177 {dimension_numbers = #tpu.dot_dimension_numbers<[1], [0], [0], [1], [0, 0, 1, 1], [], []>} : vector<16x16xbf16>, vector<16x32xbf16>, vector<16x32xf32> -> vector<16x32xf32>
    %299 = arith.addf %254, %298 : vector<16x32xf32>
    %300 = arith.addf %183, %299 : vector<16x32xf32>
    %c1_178 = arith.constant 1 : index
    %c0_179 = arith.constant 0 : index
    %c0_180 = arith.constant 0 : index
    %301 = vector.load %arg13[%c1_178, %c0_179, %c0_180] : memref<2x1x32xf32, #tpu.memory_space<vmem>>, vector<1x1x32xf32>
    %302 = vector.shape_cast %301 : vector<1x1x32xf32> to vector<1x32xf32>
    %303 = vector.broadcast %302 : vector<1x32xf32> to vector<16x32xf32>
    %304 = arith.addf %300, %303 : vector<16x32xf32>
    %c1_181 = arith.constant 1 : index
    %c0_182 = arith.constant 0 : index
    %c0_183 = arith.constant 0 : index
    %305 = vector.load %arg14[%c1_181, %c0_182, %c0_183] : memref<2x1x32xf32, #tpu.memory_space<vmem>>, vector<1x1x32xf32>
    %306 = vector.shape_cast %305 : vector<1x1x32xf32> to vector<1x32xf32>
    %c1_184 = arith.constant 1 : index
    %c0_185 = arith.constant 0 : index
    %c0_186 = arith.constant 0 : index
    %307 = vector.load %arg15[%c1_184, %c0_185, %c0_186] : memref<2x1x32xf32, #tpu.memory_space<vmem>>, vector<1x1x32xf32>
    %308 = vector.shape_cast %307 : vector<1x1x32xf32> to vector<1x32xf32>
    %cst_187 = arith.constant dense<0.000000e+00> : vector<16xf32>
    %309 = vector.multi_reduction <add>, %304, %cst_187 [1] : vector<16x32xf32> to vector<16xf32>
    %310 = vector.shape_cast %309 : vector<16xf32> to vector<16x1xf32>
    %cst_188 = arith.constant 3.200000e+01 : f32
    %311 = vector.broadcast %cst_188 : f32 to vector<16x1xf32>
    %312 = arith.divf %310, %311 : vector<16x1xf32>
    %313 = vector.broadcast %312 : vector<16x1xf32> to vector<16x32xf32>
    %314 = arith.subf %304, %313 : vector<16x32xf32>
    %315 = arith.mulf %314, %314 : vector<16x32xf32>
    %cst_189 = arith.constant dense<0.000000e+00> : vector<16xf32>
    %316 = vector.multi_reduction <add>, %315, %cst_189 [1] : vector<16x32xf32> to vector<16xf32>
    %317 = vector.shape_cast %316 : vector<16xf32> to vector<16x1xf32>
    %cst_190 = arith.constant 3.200000e+01 : f32
    %318 = vector.broadcast %cst_190 : f32 to vector<16x1xf32>
    %319 = arith.divf %317, %318 : vector<16x1xf32>
    %320 = vector.broadcast %312 : vector<16x1xf32> to vector<16x32xf32>
    %321 = arith.subf %304, %320 : vector<16x32xf32>
    %cst_191 = arith.constant 9.99999997E-7 : f32
    %322 = vector.broadcast %cst_191 : f32 to vector<16x1xf32>
    %323 = arith.addf %319, %322 : vector<16x1xf32>
    %324 = math.rsqrt %323 : vector<16x1xf32>
    %325 = vector.broadcast %324 : vector<16x1xf32> to vector<16x32xf32>
    %326 = arith.mulf %321, %325 : vector<16x32xf32>
    %327 = vector.broadcast %306 : vector<1x32xf32> to vector<16x32xf32>
    %328 = arith.mulf %326, %327 : vector<16x32xf32>
    %329 = vector.broadcast %308 : vector<1x32xf32> to vector<16x32xf32>
    %330 = arith.addf %328, %329 : vector<16x32xf32>
    %331 = arith.truncf %330 : vector<16x32xf32> to vector<16x32xbf16>
    %c1_192 = arith.constant 1 : index
    %c0_193 = arith.constant 0 : index
    %c0_194 = arith.constant 0 : index
    %332 = vector.load %arg16[%c1_192, %c0_193, %c0_194] : memref<2x32x128xbf16, #tpu.memory_space<vmem>>, vector<1x32x128xbf16>
    %333 = vector.shape_cast %332 : vector<1x32x128xbf16> to vector<32x128xbf16>
    %cst_195 = arith.constant dense<0.000000e+00> : vector<16x128xf32>
    %334 = tpu.matmul %331, %333, %cst_195 {dimension_numbers = #tpu.dot_dimension_numbers<[1], [0], [0], [1], [0, 0, 1, 1], [], []>} : vector<16x32xbf16>, vector<32x128xbf16>, vector<16x128xf32> -> vector<16x128xf32>
    %c1_196 = arith.constant 1 : index
    %c0_197 = arith.constant 0 : index
    %c0_198 = arith.constant 0 : index
    %335 = vector.load %arg17[%c1_196, %c0_197, %c0_198] : memref<2x1x128xf32, #tpu.memory_space<vmem>>, vector<1x1x128xf32>
    %336 = vector.shape_cast %335 : vector<1x1x128xf32> to vector<1x128xf32>
    %337 = vector.broadcast %336 : vector<1x128xf32> to vector<16x128xf32>
    %338 = arith.addf %334, %337 : vector<16x128xf32>
    %339 = arith.mulf %338, %338 : vector<16x128xf32>
    %340 = arith.mulf %338, %339 : vector<16x128xf32>
    %cst_199 = arith.constant 4.471500e-02 : f32
    %341 = vector.broadcast %cst_199 : f32 to vector<16x128xf32>
    %342 = arith.mulf %341, %340 : vector<16x128xf32>
    %343 = arith.addf %338, %342 : vector<16x128xf32>
    %cst_200 = arith.constant 0.797884583 : f32
    %344 = vector.broadcast %cst_200 : f32 to vector<16x128xf32>
    %345 = arith.mulf %344, %343 : vector<16x128xf32>
    %346 = math.tanh %345 : vector<16x128xf32>
    %cst_201 = arith.constant 1.000000e+00 : f32
    %347 = vector.broadcast %cst_201 : f32 to vector<16x128xf32>
    %348 = arith.addf %347, %346 : vector<16x128xf32>
    %cst_202 = arith.constant 5.000000e-01 : f32
    %349 = vector.broadcast %cst_202 : f32 to vector<16x128xf32>
    %350 = arith.mulf %349, %348 : vector<16x128xf32>
    %351 = arith.mulf %338, %350 : vector<16x128xf32>
    %352 = arith.truncf %351 : vector<16x128xf32> to vector<16x128xbf16>
    %c1_203 = arith.constant 1 : index
    %c0_204 = arith.constant 0 : index
    %c0_205 = arith.constant 0 : index
    %353 = vector.load %arg18[%c1_203, %c0_204, %c0_205] : memref<2x128x32xbf16, #tpu.memory_space<vmem>>, vector<1x128x32xbf16>
    %354 = vector.shape_cast %353 : vector<1x128x32xbf16> to vector<128x32xbf16>
    %cst_206 = arith.constant dense<0.000000e+00> : vector<16x32xf32>
    %355 = tpu.matmul %352, %354, %cst_206 {dimension_numbers = #tpu.dot_dimension_numbers<[1], [0], [0], [1], [0, 0, 1, 1], [], []>} : vector<16x128xbf16>, vector<128x32xbf16>, vector<16x32xf32> -> vector<16x32xf32>
    %c1_207 = arith.constant 1 : index
    %c0_208 = arith.constant 0 : index
    %c0_209 = arith.constant 0 : index
    %356 = vector.load %arg19[%c1_207, %c0_208, %c0_209] : memref<2x1x32xf32, #tpu.memory_space<vmem>>, vector<1x1x32xf32>
    %357 = vector.shape_cast %356 : vector<1x1x32xf32> to vector<1x32xf32>
    %358 = vector.broadcast %357 : vector<1x32xf32> to vector<16x32xf32>
    %359 = arith.addf %355, %358 : vector<16x32xf32>
    %360 = arith.addf %304, %359 : vector<16x32xf32>
    %c0_210 = arith.constant 0 : index
    %c0_211 = arith.constant 0 : index
    %361 = vector.load %arg20[%c0_210, %c0_211] : memref<1x32xf32, #tpu.memory_space<vmem>>, vector<1x32xf32>
    %c0_212 = arith.constant 0 : index
    %c0_213 = arith.constant 0 : index
    %362 = vector.load %arg21[%c0_212, %c0_213] : memref<1x32xf32, #tpu.memory_space<vmem>>, vector<1x32xf32>
    %cst_214 = arith.constant dense<0.000000e+00> : vector<16xf32>
    %363 = vector.multi_reduction <add>, %360, %cst_214 [1] : vector<16x32xf32> to vector<16xf32>
    %364 = vector.shape_cast %363 : vector<16xf32> to vector<16x1xf32>
    %cst_215 = arith.constant 3.200000e+01 : f32
    %365 = vector.broadcast %cst_215 : f32 to vector<16x1xf32>
    %366 = arith.divf %364, %365 : vector<16x1xf32>
    %367 = vector.broadcast %366 : vector<16x1xf32> to vector<16x32xf32>
    %368 = arith.subf %360, %367 : vector<16x32xf32>
    %369 = arith.mulf %368, %368 : vector<16x32xf32>
    %cst_216 = arith.constant dense<0.000000e+00> : vector<16xf32>
    %370 = vector.multi_reduction <add>, %369, %cst_216 [1] : vector<16x32xf32> to vector<16xf32>
    %371 = vector.shape_cast %370 : vector<16xf32> to vector<16x1xf32>
    %cst_217 = arith.constant 3.200000e+01 : f32
    %372 = vector.broadcast %cst_217 : f32 to vector<16x1xf32>
    %373 = arith.divf %371, %372 : vector<16x1xf32>
    %374 = vector.broadcast %366 : vector<16x1xf32> to vector<16x32xf32>
    %375 = arith.subf %360, %374 : vector<16x32xf32>
    %cst_218 = arith.constant 9.99999997E-7 : f32
    %376 = vector.broadcast %cst_218 : f32 to vector<16x1xf32>
    %377 = arith.addf %373, %376 : vector<16x1xf32>
    %378 = math.rsqrt %377 : vector<16x1xf32>
    %379 = vector.broadcast %378 : vector<16x1xf32> to vector<16x32xf32>
    %380 = arith.mulf %375, %379 : vector<16x32xf32>
    %381 = vector.broadcast %361 : vector<1x32xf32> to vector<16x32xf32>
    %382 = arith.mulf %380, %381 : vector<16x32xf32>
    %383 = vector.broadcast %362 : vector<1x32xf32> to vector<16x32xf32>
    %384 = arith.addf %382, %383 : vector<16x32xf32>
    %385 = arith.truncf %384 : vector<16x32xf32> to vector<16x32xbf16>
    %c0_219 = arith.constant 0 : index
    %c0_220 = arith.constant 0 : index
    %386 = vector.load %arg22[%c0_219, %c0_220] : memref<32x128xbf16, #tpu.memory_space<vmem>>, vector<32x128xbf16>
    %cst_221 = arith.constant dense<0.000000e+00> : vector<16x128xf32>
    %387 = tpu.matmul %385, %386, %cst_221 {dimension_numbers = #tpu.dot_dimension_numbers<[1], [0], [0], [1], [0, 0, 1, 1], [], []>} : vector<16x32xbf16>, vector<32x128xbf16>, vector<16x128xf32> -> vector<16x128xf32>
    %c0_222 = arith.constant 0 : index
    %c0_223 = arith.constant 0 : index
    %388 = vector.load %arg23[%c0_222, %c0_223] : memref<1x128xf32, #tpu.memory_space<vmem>>, vector<1x128xf32>
    %389 = vector.broadcast %388 : vector<1x128xf32> to vector<16x128xf32>
    %390 = arith.addf %387, %389 : vector<16x128xf32>
    %c0_224 = arith.constant 0 : index
    %c0_225 = arith.constant 0 : index
    %391 = vector.load %arg24[%c0_224, %c0_225] : memref<16x128xf32, #tpu.memory_space<vmem>>, vector<16x128xf32>
    tpu.vector_store %arg24[%c0_224, %c0_225], %390 {strides = array<i32>} : memref<16x128xf32, #tpu.memory_space<vmem>>, vector<16x128xf32>,
    return
  }
}

</mosaic_0001>

<llo_original>
// kernel: isic_model_forward.1
$region0: #{isic_model_forward.1}
  #allocation0 [shape = 'u32[]', space=smem, size = 0x4, offset = 0x4, fixed_abs, tag = 'smem constant byte address 0x4 - core index']
  #allocation1 [shape = 'u32[144,128]{1,0:T(1,128)}', space=vmem, size = 0x12000, scoped, tag = 'internal scratch']
  %s0 = inlined_call_operand.vmem [shape: f32[16,256], index: 0, kind: input, shape index: {}]
  %s1 = inlined_call_operand.vmem [shape: bf16[256,32], index: 1, kind: input, shape index: {}]
  %s2 = inlined_call_operand.vmem [shape: f32[16,32], index: 2, kind: input, shape index: {}]
  %s3 = inlined_call_operand.vmem [shape: f32[16,16], index: 3, kind: input, shape index: {}]
  %s4 = inlined_call_operand.vmem [shape: f32[2,1,32], index: 4, kind: input, shape index: {}]
  %s5 = inlined_call_operand.vmem [shape: f32[2,1,32], index: 5, kind: input, shape index: {}]
  %s6 = inlined_call_operand.vmem [shape: bf16[4,32,16], index: 6, kind: input, shape index: {}]
  %s7 = inlined_call_operand.vmem [shape: f32[4,1,16], index: 7, kind: input, shape index: {}]
  %s8 = inlined_call_operand.vmem [shape: bf16[4,32,16], index: 8, kind: input, shape index: {}]
  %s9 = inlined_call_operand.vmem [shape: f32[4,1,16], index: 9, kind: input, shape index: {}]
  %s10 = inlined_call_operand.vmem [shape: bf16[4,32,16], index: 10, kind: input, shape index: {}]
  %s11 = inlined_call_operand.vmem [shape: f32[4,1,16], index: 11, kind: input, shape index: {}]
  %s12 = inlined_call_operand.vmem [shape: bf16[4,16,32], index: 12, kind: input, shape index: {}]
  %s13 = inlined_call_operand.vmem [shape: f32[2,1,32], index: 13, kind: input, shape index: {}]
  %s14 = inlined_call_operand.vmem [shape: f32[2,1,32], index: 14, kind: input, shape index: {}]
  %s15 = inlined_call_operand.vmem [shape: f32[2,1,32], index: 15, kind: input, shape index: {}]
  %s16 = inlined_call_operand.vmem [shape: bf16[2,32,128], index: 16, kind: input, shape index: {}]
  %s17 = inlined_call_operand.vmem [shape: f32[2,1,128], index: 17, kind: input, shape index: {}]
  %s18 = inlined_call_operand.vmem [shape: bf16[2,128,32], index: 18, kind: input, shape index: {}]
  %s19 = inlined_call_operand.vmem [shape: f32[2,1,32], index: 19, kind: input, shape index: {}]
  %s20 = inlined_call_operand.vmem [shape: f32[1,32], index: 20, kind: input, shape index: {}]
  %s21 = inlined_call_operand.vmem [shape: f32[1,32], index: 21, kind: input, shape index: {}]
  %s22 = inlined_call_operand.vmem [shape: bf16[32,128], index: 22, kind: input, shape index: {}]
  %s23 = inlined_call_operand.vmem [shape: f32[1,128], index: 23, kind: input, shape index: {}]
  %s24 = inlined_call_operand.vmem [shape: f32[16,128], index: 24, kind: output, shape index: {}]
  %s25 = sld [smem:[#allocation0]]
  $region106: #{isic_model_forward.1} parent=0
    _
  %s27 = ssub.s32 1, %s25
  %s28 = scalar_select 0, %s27, %s25
  // Predicated region
  $region2: #{isic_model_forward.1} parent=0 // pred_check
    _
  $region3: #{isic_model_forward.1} parent=0 // pred_check_branch
    %30 = sbr.rel (0) target = $region5
  $region4: #{isic_model_forward.1} parent=0 // pred_region
    _
  $region5: #{isic_model_forward.1} parent=0 // pred_fallthru
    _
  // Predicated region
  $region6: #{isic_model_forward.1} parent=0 // pred_check
    _
  $region7: #{isic_model_forward.1} parent=0 // pred_check_branch
    %32 = sbr.rel (0) target = $region9
  $region8: #{isic_model_forward.1} parent=0 // pred_region
    _
  $region9: #{isic_model_forward.1} parent=0 // pred_fallthru
    _
  // Predicated region
  $region10: #{isic_model_forward.1} parent=0 // pred_check
    _
  $region11: #{isic_model_forward.1} parent=0 // pred_check_branch
    %34 = sbr.rel (0) target = $region13
  $region12: #{isic_model_forward.1} parent=0 // pred_region
    _
  $region13: #{isic_model_forward.1} parent=0 // pred_fallthru
    _
  // Predicated region
  $region14: #{isic_model_forward.1} parent=0 // pred_check
    _
  $region15: #{isic_model_forward.1} parent=0 // pred_check_branch
    %36 = sbr.rel (0) target = $region17
  $region16: #{isic_model_forward.1} parent=0 // pred_region
    _
  $region17: #{isic_model_forward.1} parent=0 // pred_fallthru
    _
  // Predicated region
  $region18: #{isic_model_forward.1} parent=0 // pred_check
    _
  $region19: #{isic_model_forward.1} parent=0 // pred_check_branch
    %38 = sbr.rel (0) target = $region21
  $region20: #{isic_model_forward.1} parent=0 // pred_region
    _
  $region21: #{isic_model_forward.1} parent=0 // pred_fallthru
    _
  // Predicated region
  $region22: #{isic_model_forward.1} parent=0 // pred_check
    _
  $region23: #{isic_model_forward.1} parent=0 // pred_check_branch
    %40 = sbr.rel (0) target = $region25
  $region24: #{isic_model_forward.1} parent=0 // pred_region
    _
  $region25: #{isic_model_forward.1} parent=0 // pred_fallthru
    _
  // Predicated region
  $region26: #{isic_model_forward.1} parent=0 // pred_check
    _
  $region27: #{isic_model_forward.1} parent=0 // pred_check_branch
    %42 = sbr.rel (0) target = $region29
  $region28: #{isic_model_forward.1} parent=0 // pred_region
    _
  $region29: #{isic_model_forward.1} parent=0 // pred_fallthru
    _
  // Predicated region
  $region30: #{isic_model_forward.1} parent=0 // pred_check
    _
  $region31: #{isic_model_forward.1} parent=0 // pred_check_branch
    %44 = sbr.rel (0) target = $region33
  $region32: #{isic_model_forward.1} parent=0 // pred_region
    _
  $region33: #{isic_model_forward.1} parent=0 // pred_fallthru
    _
  // Predicated region
  $region34: #{isic_model_forward.1} parent=0 // pred_check
    _
  $region35: #{isic_model_forward.1} parent=0 // pred_check_branch
    %46 = sbr.rel (0) target = $region37
  $region36: #{isic_model_forward.1} parent=0 // pred_region
    _
  $region37: #{isic_model_forward.1} parent=0 // pred_fallthru
    _
  // Predicated region
  $region38: #{isic_model_forward.1} parent=0 // pred_check
    _
  $region39: #{isic_model_forward.1} parent=0 // pred_check_branch
    %48 = sbr.rel (0) target = $region41
  $region40: #{isic_model_forward.1} parent=0 // pred_region
    _
  $region41: #{isic_model_forward.1} parent=0 // pred_fallthru
    _
  // Predicated region
  $region42: #{isic_model_forward.1} parent=0 // pred_check
    _
  $region43: #{isic_model_forward.1} parent=0 // pred_check_branch
    %50 = sbr.rel (0) target = $region45
  $region44: #{isic_model_forward.1} parent=0 // pred_region
    _
  $region45: #{isic_model_forward.1} parent=0 // pred_fallthru
    _
  // Predicated region
  $region46: #{isic_model_forward.1} parent=0 // pred_check
    _
  $region47: #{isic_model_forward.1} parent=0 // pred_check_branch
    %52 = sbr.rel (0) target = $region49
  $region48: #{isic_model_forward.1} parent=0 // pred_region
    _
  $region49: #{isic_model_forward.1} parent=0 // pred_fallthru
    _
  // Predicated region
  $region50: #{isic_model_forward.1} parent=0 // pred_check
    _
  $region51: #{isic_model_forward.1} parent=0 // pred_check_branch
    %54 = sbr.rel (0) target = $region53
  $region52: #{isic_model_forward.1} parent=0 // pred_region
    _
  $region53: #{isic_model_forward.1} parent=0 // pred_fallthru
    _
  // Predicated region
  $region54: #{isic_model_forward.1} parent=0 // pred_check
    _
  $region55: #{isic_model_forward.1} parent=0 // pred_check_branch
    %56 = sbr.rel (0) target = $region57
  $region56: #{isic_model_forward.1} parent=0 // pred_region
    _
  $region57: #{isic_model_forward.1} parent=0 // pred_fallthru
    _
  // Predicated region
  $region58: #{isic_model_forward.1} parent=0 // pred_check
    _
  $region59: #{isic_model_forward.1} parent=0 // pred_check_branch
    %58 = sbr.rel (0) target = $region61
  $region60: #{isic_model_forward.1} parent=0 // pred_region
    _
  $region61: #{isic_model_forward.1} parent=0 // pred_fallthru
    _
  // Predicated region
  $region62: #{isic_model_forward.1} parent=0 // pred_check
    _
  $region63: #{isic_model_forward.1} parent=0 // pred_check_branch
    %60 = sbr.rel (0) target = $region65
  $region64: #{isic_model_forward.1} parent=0 // pred_region
    _
  $region65: #{isic_model_forward.1} parent=0 // pred_fallthru
    _
  // Predicated region
  $region66: #{isic_model_forward.1} parent=0 // pred_check
    _
  $region67: #{isic_model_forward.1} parent=0 // pred_check_branch
    %62 = sbr.rel (0) target = $region69
  $region68: #{isic_model_forward.1} parent=0 // pred_region
    _
  $region69: #{isic_model_forward.1} parent=0 // pred_fallthru
    _
  // Predicated region
  $region70: #{isic_model_forward.1} parent=0 // pred_check
    _
  $region71: #{isic_model_forward.1} parent=0 // pred_check_branch
    %64 = sbr.rel (0) target = $region73
  $region72: #{isic_model_forward.1} parent=0 // pred_region
    _
  $region73: #{isic_model_forward.1} parent=0 // pred_fallthru
    _
  // Predicated region
  $region74: #{isic_model_forward.1} parent=0 // pred_check
    _
  $region75: #{isic_model_forward.1} parent=0 // pred_check_branch
    %66 = sbr.rel (0) target = $region77
  $region76: #{isic_model_forward.1} parent=0 // pred_region
    _
  $region77: #{isic_model_forward.1} parent=0 // pred_fallthru
    _
  // Predicated region
  $region78: #{isic_model_forward.1} parent=0 // pred_check
    _
  $region79: #{isic_model_forward.1} parent=0 // pred_check_branch
    %68 = sbr.rel (0) target = $region81
  $region80: #{isic_model_forward.1} parent=0 // pred_region
    _
  $region81: #{isic_model_forward.1} parent=0 // pred_fallthru
    _
  // Predicated region
  $region82: #{isic_model_forward.1} parent=0 // pred_check
    _
  $region83: #{isic_model_forward.1} parent=0 // pred_check_branch
    %70 = sbr.rel (0) target = $region85
  $region84: #{isic_model_forward.1} parent=0 // pred_region
    _
  $region85: #{isic_model_forward.1} parent=0 // pred_fallthru
    _
  // Predicated region
  $region86: #{isic_model_forward.1} parent=0 // pred_check
    _
  $region87: #{isic_model_forward.1} parent=0 // pred_check_branch
    %72 = sbr.rel (0) target = $region89
  $region88: #{isic_model_forward.1} parent=0 // pred_region
    _
  $region89: #{isic_model_forward.1} parent=0 // pred_fallthru
    _
  // Predicated region
  $region90: #{isic_model_forward.1} parent=0 // pred_check
    _
  $region91: #{isic_model_forward.1} parent=0 // pred_check_branch
    %74 = sbr.rel (0) target = $region93
  $region92: #{isic_model_forward.1} parent=0 // pred_region
    _
  $region93: #{isic_model_forward.1} parent=0 // pred_fallthru
    _
  // Predicated region
  $region94: #{isic_model_forward.1} parent=0 // pred_check
    _
  $region95: #{isic_model_forward.1} parent=0 // pred_check_branch
    %76 = sbr.rel (0) target = $region97
  $region96: #{isic_model_forward.1} parent=0 // pred_region
    _
  $region97: #{isic_model_forward.1} parent=0 // pred_fallthru
    _
  %v78 = vld [vmem:[%s0] sm:$0xff]
  %v79 = vld [vmem:[%s0 + $0x8] sm:$0xff]
  %v80 = vld [vmem:[%s0 + $0x10] sm:$0xff]
  %v81 = vld [vmem:[%s0 + $0x18] sm:$0xff]
  %v82 = vpack.c.bf16 %v80, %v78
  %v83 = vpack.c.bf16 %v81, %v79
  %v84 = vld [vmem:[%s1] sm:$0xf]
  %v85 = vld [vmem:[%s1 + $0x4] sm:$0xf]
  %v86 = vld [vmem:[%s1 + $0x8] sm:$0xf]
  %v87 = vld [vmem:[%s1 + $0xc] sm:$0xf]
  %v88 = vld [vmem:[%s1 + $0x10] sm:$0xf]
  %v89 = vld [vmem:[%s1 + $0x14] sm:$0xf]
  %v90 = vld [vmem:[%s1 + $0x18] sm:$0xf]
  %v91 = vld [vmem:[%s1 + $0x1c] sm:$0xf]
  %v92 = vld [vmem:[%s1 + $0x20] sm:$0xf]
  %v93 = vld [vmem:[%s1 + $0x24] sm:$0xf]
  %v94 = vld [vmem:[%s1 + $0x28] sm:$0xf]
  %v95 = vld [vmem:[%s1 + $0x2c] sm:$0xf]
  %v96 = vld [vmem:[%s1 + $0x30] sm:$0xf]
  %v97 = vld [vmem:[%s1 + $0x34] sm:$0xf]
  %v98 = vld [vmem:[%s1 + $0x38] sm:$0xf]
  %v99 = vld [vmem:[%s1 + $0x3c] sm:$0xf]
  %v100 = vld [vmem:[%s1 + $0x40] sm:$0xf]
  %v101 = vld [vmem:[%s1 + $0x44] sm:$0xf]
  %v102 = vld [vmem:[%s1 + $0x48] sm:$0xf]
  %v103 = vld [vmem:[%s1 + $0x4c] sm:$0xf]
  %v104 = vld [vmem:[%s1 + $0x50] sm:$0xf]
  %v105 = vld [vmem:[%s1 + $0x54] sm:$0xf]
  %v106 = vld [vmem:[%s1 + $0x58] sm:$0xf]
  %v107 = vld [vmem:[%s1 + $0x5c] sm:$0xf]
  %v108 = vld [vmem:[%s1 + $0x60] sm:$0xf]
  %v109 = vld [vmem:[%s1 + $0x64] sm:$0xf]
  %v110 = vld [vmem:[%s1 + $0x68] sm:$0xf]
  %v111 = vld [vmem:[%s1 + $0x6c] sm:$0xf]
  %v112 = vld [vmem:[%s1 + $0x70] sm:$0xf]
  %v113 = vld [vmem:[%s1 + $0x74] sm:$0xf]
  %v114 = vld [vmem:[%s1 + $0x78] sm:$0xf]
  %v115 = vld [vmem:[%s1 + $0x7c] sm:$0xf]
  %v116 = vld [vmem:[%s2] sm:$0xff]
  %v117 = vld [vmem:[%s2 + $0x8] sm:$0xff]
  %v150 = vunpack.c.l.b16 %v84
  %v151 = vunpack.c.l.b16 %v85
  %v152 = vunpack.c.l.b16 %v86
  %v153 = vunpack.c.l.b16 %v87
  %v154 = vunpack.c.l.b16 %v88
  %v155 = vunpack.c.l.b16 %v89
  %v156 = vunpack.c.l.b16 %v90
  %v157 = vunpack.c.l.b16 %v91
  %v158 = vunpack.c.l.b16 %v92
  %v159 = vunpack.c.l.b16 %v93
  %v160 = vunpack.c.l.b16 %v94
  %v161 = vunpack.c.l.b16 %v95
  %v162 = vunpack.c.l.b16 %v96
  %v163 = vunpack.c.l.b16 %v97
  %v164 = vunpack.c.l.b16 %v98
  %v165 = vunpack.c.l.b16 %v99
  %v166 = vunpack.c.l.b16 %v100
  %v167 = vunpack.c.l.b16 %v101
  %v168 = vunpack.c.l.b16 %v102
  %v169 = vunpack.c.l.b16 %v103
  %v170 = vunpack.c.l.b16 %v104
  %v171 = vunpack.c.l.b16 %v105
  %v172 = vunpack.c.l.b16 %v106
  %v173 = vunpack.c.l.b16 %v107
  %v174 = vunpack.c.l.b16 %v108
  %v175 = vunpack.c.l.b16 %v109
  %v176 = vunpack.c.l.b16 %v110
  %v177 = vunpack.c.l.b16 %v111
  %v178 = vunpack.c.l.b16 %v112
  %v179 = vunpack.c.l.b16 %v113
  %v180 = vunpack.c.l.b16 %v114
  %v181 = vunpack.c.l.b16 %v115
  %v182 = vpack.c.b16 %v151, %v150
  %v183 = vpack.c.b16 %v153, %v152
  %v184 = vpack.c.b16 %v155, %v154
  %v185 = vpack.c.b16 %v157, %v156
  %v186 = vpack.c.b16 %v159, %v158
  %v187 = vpack.c.b16 %v161, %v160
  %v188 = vpack.c.b16 %v163, %v162
  %v189 = vpack.c.b16 %v165, %v164
  %v190 = vpack.c.b16 %v167, %v166
  %v191 = vpack.c.b16 %v169, %v168
  %v192 = vpack.c.b16 %v171, %v170
  %v193 = vpack.c.b16 %v173, %v172
  %v194 = vpack.c.b16 %v175, %v174
  %v195 = vpack.c.b16 %v177, %v176
  %v196 = vpack.c.b16 %v179, %v178
  %v197 = vpack.c.b16 %v181, %v180
  %214 = vmatprep.subr.bf16.mxu0 0
  %215 = vmatpush1.bf16.msra.mxu0 %v182
  %216 = vmatprep.subr.bf16.mxu0 0
  %217 = vmatpush1.bf16.msra.mxu0 %v183
  %218 = vmatprep.subr.bf16.mxu0 0
  %219 = vmatpush1.bf16.msra.mxu0 %v184
  %220 = vmatprep.subr.bf16.mxu0 0
  %221 = vmatpush1.bf16.msra.mxu0 %v185
  %222 = vmatprep.subr.bf16.mxu0 0
  %223 = vmatpush1.bf16.msra.mxu0 %v186
  %224 = vmatprep.subr.bf16.mxu0 0
  %225 = vmatpush1.bf16.msra.mxu0 %v187
  %226 = vmatprep.subr.bf16.mxu0 0
  %227 = vmatpush1.bf16.msra.mxu0 %v188
  %228 = vmatprep.subr.bf16.mxu0 0
  %229 = vmatpush1.bf16.msra.mxu0 %v189
  %230 = vmatprep.subr.bf16.mxu0 0
  %231 = vmatpush1.bf16.msra.mxu0 %v190
  %232 = vmatprep.subr.bf16.mxu0 0
  %233 = vmatpush1.bf16.msra.mxu0 %v191
  %234 = vmatprep.subr.bf16.mxu0 0
  %235 = vmatpush1.bf16.msra.mxu0 %v192
  %236 = vmatprep.subr.bf16.mxu0 0
  %237 = vmatpush1.bf16.msra.mxu0 %v193
  %238 = vmatprep.subr.bf16.mxu0 0
  %239 = vmatpush1.bf16.msra.mxu0 %v194
  %240 = vmatprep.subr.bf16.mxu0 0
  %241 = vmatpush1.bf16.msra.mxu0 %v195
  %242 = vmatprep.subr.bf16.mxu0 0
  %243 = vmatpush1.bf16.msra.mxu0 %v196
  %244 = vmatprep.subr.bf16.mxu0 0
  %245 = vmatpush1.bf16.msra.mxu0 %v197
  %246 = vmatprep.mubr.bf16.mxu0 %v83
  %247 = vmatmul.mubr.bf16.gmra.mrb[0].mxu0 %v82
  %v248 = vpop.f32.mrb[0].mxu0
  %v249 = vadd.f32 %v116, %v248
  %v250 = vpop.f32.mrb[0].mxu0
  %v251 = vpop.f32.mrb[0].mxu0
  %v252 = vadd.f32 %v117, %v251
  %v253 = vpop.f32.mrb[0].mxu0
  %254 = vdwg.mxu0
  %v255 = vld [vmem:[%s3] sm:$0xff]
  %v256 = vld [vmem:[%s3 + $0x8] sm:$0xff]
  %v257 = vld [vmem:[%s4] sm:$0x1]
  %v258 = vld [vmem:[%s5] sm:$0x1]
  %vm259 = vcmask 261120
  %v260 = vsel %vm259, %v249, 0.0
  %261 = vadd.xlane.f32.xlu0 %v260
  %v262 = vpop.xlane.xlu0 %261
  %v263 = vsel %vm259, %v252, 0.0
  %264 = vadd.xlane.f32.xlu0 %v263
  %v265 = vpop.xlane.xlu0 %264
  %v266 = vrcp.pop 32.0
  %v267 = vmul.f32 %v262, %v266
  %v268 = vmul.f32 %v265, %v266
  %v269 = vsub.f32 %v249, %v267
  %v270 = vsub.f32 %v252, %v268
  %v271 = vmul.f32 %v269, %v269
  %v272 = vmul.f32 %v270, %v270
  %v273 = vsel %vm259, %v271, 0.0
  %274 = vadd.xlane.f32.xlu0 %v273
  %v275 = vpop.xlane.xlu0 %274
  %v276 = vsel %vm259, %v272, 0.0
  %277 = vadd.xlane.f32.xlu0 %v276
  %v278 = vpop.xlane.xlu0 %277
  %v279 = vmul.f32 %v275, %v266
  %v280 = vmul.f32 %v278, %v266
  %v281 = vadd.f32 %v279, 1e-06
  %v282 = vadd.f32 %v280, 1e-06
  %v283 = vrsqrt.pop %v281
  %v284 = vrsqrt.pop %v282
  %v285 = vmul.f32 %v269, %v283
  %v286 = vmul.f32 %v270, %v284
  %v288 = vlaneseq
  %v289 = vshrl.u32 %v288, 7
  %v290 = vsub.s32 0, %v289
  %v291 = vrot.slane %v257, %v290
  %v293 = vmul.f32 %v285, %v291
  %v294 = vmul.f32 %v286, %v291
  %v296 = vlaneseq
  %v297 = vshrl.u32 %v296, 7
  %v298 = vsub.s32 0, %v297
  %v299 = vrot.slane %v258, %v298
  %v301 = vadd.f32 %v293, %v299
  %v302 = vadd.f32 %v294, %v299
  %v303 = vpack.c.bf16 %v302, %v301
  %v304 = vld [vmem:[%s6] sm:$0xf]
  %v305 = vld [vmem:[%s6 + $0x4] sm:$0xf]
  %v306 = vld [vmem:[%s6 + $0x8] sm:$0xf]
  %v307 = vld [vmem:[%s6 + $0xc] sm:$0xf]
  %v308 = vld [vmem:[%s7] sm:$0x1]
  %v310 = vlaneseq
  %v311 = vshrl.u32 %v310, 7
  %v312 = vsub.s32 0, %v311
  %v313 = vrot.slane %v308, %v312
  %v319 = vunpack.c.l.b16 %v304
  %v320 = vunpack.c.l.b16 %v305
  %v321 = vunpack.c.l.b16 %v306
  %v322 = vunpack.c.l.b16 %v307
  %v323 = vpack.c.b16 %v320, %v319
  %v324 = vpack.c.b16 %v322, %v321
  %v328 = vsel %vm259, %v303, 0
  %330 = vmatprep.subr.bf16.mxu0 0
  %331 = vmatpush1.bf16.msra.mxu0 %v323
  %332 = vmatprep.subr.bf16.mxu0 0
  %333 = vmatpush1.bf16.msra.mxu0 %v324
  %334 = vmatprep.subr.bf16.mxu0 0
  %335 = vmatpush1.bf16.msra.mxu0 0
  %336 = vmatprep.subr.bf16.mxu0 0
  %337 = vmatpush1.bf16.msra.mxu0 0
  %338 = vmatprep.subr.bf16.mxu0 0
  %339 = vmatpush1.bf16.msra.mxu0 0
  %340 = vmatprep.subr.bf16.mxu0 0
  %341 = vmatpush1.bf16.msra.mxu0 0
  %342 = vmatprep.subr.bf16.mxu0 0
  %343 = vmatpush1.bf16.msra.mxu0 0
  %344 = vmatprep.subr.bf16.mxu0 0
  %345 = vmatpush1.bf16.msra.mxu0 0
  %346 = vmatprep.subr.bf16.mxu0 0
  %347 = vmatpush1.bf16.msra.mxu0 0
  %348 = vmatprep.subr.bf16.mxu0 0
  %349 = vmatpush1.bf16.msra.mxu0 0
  %350 = vmatprep.subr.bf16.mxu0 0
  %351 = vmatpush1.bf16.msra.mxu0 0
  %352 = vmatprep.subr.bf16.mxu0 0
  %353 = vmatpush1.bf16.msra.mxu0 0
  %354 = vmatprep.subr.bf16.mxu0 0
  %355 = vmatpush1.bf16.msra.mxu0 0
  %356 = vmatprep.subr.bf16.mxu0 0
  %357 = vmatpush1.bf16.msra.mxu0 0
  %358 = vmatprep.subr.bf16.mxu0 0
  %359 = vmatpush1.bf16.msra.mxu0 0
  %360 = vmatprep.subr.bf16.mxu0 0
  %361 = vmatpush1.bf16.msra.mxu0 0
  %362 = vmatprep.mubr.bf16.mxu0 0
  %363 = vmatmul.mubr.bf16.gmra.mrb[0].mxu0 %v328
  %v364 = vpop.f32.mrb[0].mxu0
  %v365 = vadd.f32 %v313, %v364
  %v366 = vpop.f32.mrb[0].mxu0
  %v367 = vpop.f32.mrb[0].mxu0
  %v368 = vadd.f32 %v313, %v367
  %v369 = vpop.f32.mrb[0].mxu0
  %370 = vdwg.mxu0
  %v371 = vld [vmem:[%s8] sm:$0xf]
  %v372 = vld [vmem:[%s8 + $0x4] sm:$0xf]
  %v373 = vld [vmem:[%s8 + $0x8] sm:$0xf]
  %v374 = vld [vmem:[%s8 + $0xc] sm:$0xf]
  %v375 = vld [vmem:[%s9] sm:$0x1]
  %v377 = vlaneseq
  %v378 = vshrl.u32 %v377, 7
  %v379 = vsub.s32 0, %v378
  %v380 = vrot.slane %v375, %v379
  %v386 = vunpack.c.l.b16 %v371
  %v387 = vunpack.c.l.b16 %v372
  %v388 = vunpack.c.l.b16 %v373
  %v389 = vunpack.c.l.b16 %v374
  %v390 = vpack.c.b16 %v387, %v386
  %v391 = vpack.c.b16 %v389, %v388
  %394 = vmatprep.subr.bf16.mxu0 0
  %395 = vmatpush1.bf16.msra.mxu0 %v390
  %396 = vmatprep.subr.bf16.mxu0 0
  %397 = vmatpush1.bf16.msra.mxu0 %v391
  %398 = vmatprep.subr.bf16.mxu0 0
  %399 = vmatpush1.bf16.msra.mxu0 0
  %400 = vmatprep.subr.bf16.mxu0 0
  %401 = vmatpush1.bf16.msra.mxu0 0
  %402 = vmatprep.subr.bf16.mxu0 0
  %403 = vmatpush1.bf16.msra.mxu0 0
  %404 = vmatprep.subr.bf16.mxu0 0
  %405 = vmatpush1.bf16.msra.mxu0 0
  %406 = vmatprep.subr.bf16.mxu0 0
  %407 = vmatpush1.bf16.msra.mxu0 0
  %408 = vmatprep.subr.bf16.mxu0 0
  %409 = vmatpush1.bf16.msra.mxu0 0
  %410 = vmatprep.subr.bf16.mxu0 0
  %411 = vmatpush1.bf16.msra.mxu0 0
  %412 = vmatprep.subr.bf16.mxu0 0
  %413 = vmatpush1.bf16.msra.mxu0 0
  %414 = vmatprep.subr.bf16.mxu0 0
  %415 = vmatpush1.bf16.msra.mxu0 0
  %416 = vmatprep.subr.bf16.mxu0 0
  %417 = vmatpush1.bf16.msra.mxu0 0
  %418 = vmatprep.subr.bf16.mxu0 0
  %419 = vmatpush1.bf16.msra.mxu0 0
  %420 = vmatprep.subr.bf16.mxu0 0
  %421 = vmatpush1.bf16.msra.mxu0 0
  %422 = vmatprep.subr.bf16.mxu0 0
  %423 = vmatpush1.bf16.msra.mxu0 0
  %424 = vmatprep.subr.bf16.mxu0 0
  %425 = vmatpush1.bf16.msra.mxu0 0
  %426 = vmatprep.mubr.bf16.mxu0 0
  %427 = vmatmul.mubr.bf16.gmra.mrb[0].mxu0 %v328
  %v428 = vpop.f32.mrb[0].mxu0
  %v429 = vadd.f32 %v380, %v428
  %v430 = vpop.f32.mrb[0].mxu0
  %v431 = vpop.f32.mrb[0].mxu0
  %v432 = vadd.f32 %v380, %v431
  %v433 = vpop.f32.mrb[0].mxu0
  %434 = vdwg.mxu0
  %v435 = vld [vmem:[%s10] sm:$0xf]
  %v436 = vld [vmem:[%s10 + $0x4] sm:$0xf]
  %v437 = vld [vmem:[%s10 + $0x8] sm:$0xf]
  %v438 = vld [vmem:[%s10 + $0xc] sm:$0xf]
  %v439 = vld [vmem:[%s11] sm:$0x1]
  %v441 = vlaneseq
  %v442 = vshrl.u32 %v441, 7
  %v443 = vsub.s32 0, %v442
  %v444 = vrot.slane %v439, %v443
  %v450 = vunpack.c.l.b16 %v435
  %v451 = vunpack.c.l.b16 %v436
  %v452 = vunpack.c.l.b16 %v437
  %v453 = vunpack.c.l.b16 %v438
  %v454 = vpack.c.b16 %v451, %v450
  %v455 = vpack.c.b16 %v453, %v452
  %458 = vmatprep.subr.bf16.mxu0 0
  %459 = vmatpush1.bf16.msra.mxu0 %v454
  %460 = vmatprep.subr.bf16.mxu0 0
  %461 = vmatpush1.bf16.msra.mxu0 %v455
  %462 = vmatprep.subr.bf16.mxu0 0
  %463 = vmatpush1.bf16.msra.mxu0 0
  %464 = vmatprep.subr.bf16.mxu0 0
  %465 = vmatpush1.bf16.msra.mxu0 0
  %466 = vmatprep.subr.bf16.mxu0 0
  %467 = vmatpush1.bf16.msra.mxu0 0
  %468 = vmatprep.subr.bf16.mxu0 0
  %469 = vmatpush1.bf16.msra.mxu0 0
  %470 = vmatprep.subr.bf16.mxu0 0
  %471 = vmatpush1.bf16.msra.mxu0 0
  %472 = vmatprep.subr.bf16.mxu0 0
  %473 = vmatpush1.bf16.msra.mxu0 0
  %474 = vmatprep.subr.bf16.mxu0 0
  %475 = vmatpush1.bf16.msra.mxu0 0
  %476 = vmatprep.subr.bf16.mxu0 0
  %477 = vmatpush1.bf16.msra.mxu0 0
  %478 = vmatprep.subr.bf16.mxu0 0
  %479 = vmatpush1.bf16.msra.mxu0 0
  %480 = vmatprep.subr.bf16.mxu0 0
  %481 = vmatpush1.bf16.msra.mxu0 0
  %482 = vmatprep.subr.bf16.mxu0 0
  %483 = vmatpush1.bf16.msra.mxu0 0
  %484 = vmatprep.subr.bf16.mxu0 0
  %485 = vmatpush1.bf16.msra.mxu0 0
  %486 = vmatprep.subr.bf16.mxu0 0
  %487 = vmatpush1.bf16.msra.mxu0 0
  %488 = vmatprep.subr.bf16.mxu0 0
  %489 = vmatpush1.bf16.msra.mxu0 0
  %490 = vmatprep.mubr.bf16.mxu0 0
  %491 = vmatmul.mubr.bf16.gmra.mrb[0].mxu0 %v328
  %v492 = vpop.f32.mrb[0].mxu0
  %v493 = vadd.f32 %v444, %v492
  %v494 = vpop.f32.mrb[0].mxu0
  %v495 = vpop.f32.mrb[0].mxu0
  %v496 = vadd.f32 %v444, %v495
  %v497 = vpop.f32.mrb[0].mxu0
  %498 = vdwg.mxu0
  %v499 = vpack.c.bf16 %v368, %v365
  %v500 = vpack.c.bf16 %v432, %v429
  %vm501 = vcmask 130048
  %v503 = vsel %vm501, %v499, 0
  %v506 = vsel %vm501, %v500, 0
  %508 = vmatprep.subr.bf16.mxu0 0
  %509 = vmatpush1.bf16.xpose.msra.mxu0 %v506
  %510 = vmatprep.subr.bf16.mxu0 0
  %511 = vmatpush1.bf16.xpose.msra.mxu0 0
  %512 = vmatprep.subr.bf16.mxu0 0
  %513 = vmatpush1.bf16.xpose.msra.mxu0 0
  %514 = vmatprep.subr.bf16.mxu0 0
  %515 = vmatpush1.bf16.xpose.msra.mxu0 0
  %516 = vmatprep.subr.bf16.mxu0 0
  %517 = vmatpush1.bf16.xpose.msra.mxu0 0
  %518 = vmatprep.subr.bf16.mxu0 0
  %519 = vmatpush1.bf16.xpose.msra.mxu0 0
  %520 = vmatprep.subr.bf16.mxu0 0
  %521 = vmatpush1.bf16.xpose.msra.mxu0 0
  %522 = vmatprep.subr.bf16.mxu0 0
  %523 = vmatpush1.bf16.xpose.msra.mxu0 0
  %524 = vmatprep.subr.bf16.mxu0 0
  %525 = vmatpush1.bf16.xpose.msra.mxu0 0
  %526 = vmatprep.subr.bf16.mxu0 0
  %527 = vmatpush1.bf16.xpose.msra.mxu0 0
  %528 = vmatprep.subr.bf16.mxu0 0
  %529 = vmatpush1.bf16.xpose.msra.mxu0 0
  %530 = vmatprep.subr.bf16.mxu0 0
  %531 = vmatpush1.bf16.xpose.msra.mxu0 0
  %532 = vmatprep.subr.bf16.mxu0 0
  %533 = vmatpush1.bf16.xpose.msra.mxu0 0
  %534 = vmatprep.subr.bf16.mxu0 0
  %535 = vmatpush1.bf16.xpose.msra.mxu0 0
  %536 = vmatprep.subr.bf16.mxu0 0
  %537 = vmatpush1.bf16.xpose.msra.mxu0 0
  %538 = vmatprep.subr.bf16.mxu0 0
  %539 = vmatpush1.bf16.xpose.msra.mxu0 0
  %540 = vmatprep.mubr.bf16.mxu0 0
  %541 = vmatmul.mubr.bf16.gmra.mrb[0].mxu0 %v503
  %v542 = vpop.f32.mrb[0].mxu0
  %v543 = vadd.f32 0.0, %v542
  %v544 = vpop.f32.mrb[0].mxu0
  %v545 = vpop.f32.mrb[0].mxu0
  %v546 = vadd.f32 0.0, %v545
  %v547 = vpop.f32.mrb[0].mxu0
  %548 = vdwg.mxu0
  %v549 = vmul.f32 %v543, 0.25
  %v550 = vmul.f32 %v546, 0.25
  %v551 = vadd.f32 %v549, %v255
  %v552 = vadd.f32 %v550, %v256
  %v553 = vsel %vm501, %v551, -inf
  %554 = vmax.xlane.f32.xlu0 %v553
  %v555 = vpop.xlane.xlu0 %554
  %v556 = vsel %vm501, %v552, -inf
  %557 = vmax.xlane.f32.xlu0 %v556
  %v558 = vpop.xlane.xlu0 %557
  %v559 = vsub.f32 %v551, %v555
  %v560 = vsub.f32 %v552, %v558
  %v561 = vmul.f32 %v559, 1.442695
  %v562 = vpow.pop %v561
  %v563 = vmul.f32 %v560, 1.442695
  %v564 = vpow.pop %v563
  %v565 = vsel %vm501, %v562, 0.0
  %566 = vadd.xlane.f32.xlu0 %v565
  %v567 = vpop.xlane.xlu0 %566
  %v568 = vsel %vm501, %v564, 0.0
  %569 = vadd.xlane.f32.xlu0 %v568
  %v570 = vpop.xlane.xlu0 %569
  %v571 = vrcp.pop %v567
  %v572 = vrcp.pop %v570
  %v573 = vmul.f32 %v562, %v571
  %v574 = vmul.f32 %v564, %v572
  %v575 = vpack.c.bf16 %v574, %v573
  %v576 = vpack.c.bf16 %v496, %v493
  %v578 = vsel %vm501, %v575, 0
  %580 = vmatprep.subr.bf16.mxu0 0
  %581 = vmatpush1.bf16.msra.mxu0 %v576
  %582 = vmatprep.subr.bf16.mxu0 0
  %583 = vmatpush1.bf16.msra.mxu0 0
  %584 = vmatprep.subr.bf16.mxu0 0
  %585 = vmatpush1.bf16.msra.mxu0 0
  %586 = vmatprep.subr.bf16.mxu0 0
  %587 = vmatpush1.bf16.msra.mxu0 0
  %588 = vmatprep.subr.bf16.mxu0 0
  %589 = vmatpush1.bf16.msra.mxu0 0
  %590 = vmatprep.subr.bf16.mxu0 0
  %591 = vmatpush1.bf16.msra.mxu0 0
  %592 = vmatprep.subr.bf16.mxu0 0
  %593 = vmatpush1.bf16.msra.mxu0 0
  %594 = vmatprep.subr.bf16.mxu0 0
  %595 = vmatpush1.bf16.msra.mxu0 0
  %596 = vmatprep.subr.bf16.mxu0 0
  %597 = vmatpush1.bf16.msra.mxu0 0
  %598 = vmatprep.subr.bf16.mxu0 0
  %599 = vmatpush1.bf16.msra.mxu0 0
  %600 = vmatprep.subr.bf16.mxu0 0
  %601 = vmatpush1.bf16.msra.mxu0 0
  %602 = vmatprep.subr.bf16.mxu0 0
  %603 = vmatpush1.bf16.msra.mxu0 0
  %604 = vmatprep.subr.bf16.mxu0 0
  %605 = vmatpush1.bf16.msra.mxu0 0
  %606 = vmatprep.subr.bf16.mxu0 0
  %607 = vmatpush1.bf16.msra.mxu0 0
  %608 = vmatprep.subr.bf16.mxu0 0
  %609 = vmatpush1.bf16.msra.mxu0 0
  %610 = vmatprep.subr.bf16.mxu0 0
  %611 = vmatpush1.bf16.msra.mxu0 0
  %612 = vmatprep.mubr.bf16.mxu0 0
  %613 = vmatmul.mubr.bf16.gmra.mrb[0].mxu0 %v578
  %v614 = vpop.f32.mrb[0].mxu0
  %v615 = vadd.f32 0.0, %v614
  %v616 = vpop.f32.mrb[0].mxu0
  %v617 = vpop.f32.mrb[0].mxu0
  %v618 = vadd.f32 0.0, %v617
  %v619 = vpop.f32.mrb[0].mxu0
  %620 = vdwg.mxu0
  %v621 = vpack.c.bf16 %v618, %v615
  %v622 = vld [vmem:[%s12] sm:$0xf]
  %v623 = vld [vmem:[%s12 + $0x4] sm:$0xf]
  %s624 = scalar_lea.vmem %s6, 16
  %v625 = vld [vmem:[%s624] sm:$0xf]
  %v626 = vld [vmem:[%s624 + $0x4] sm:$0xf]
  %v627 = vld [vmem:[%s624 + $0x8] sm:$0xf]
  %v628 = vld [vmem:[%s624 + $0xc] sm:$0xf]
  %s629 = scalar_lea.vmem %s7, 1
  %v630 = vld [vmem:[%s629] sm:$0x1]
  %v632 = vlaneseq
  %v633 = vshrl.u32 %v632, 7
  %v634 = vsub.s32 0, %v633
  %v635 = vrot.slane %v630, %v634
  %v641 = vunpack.c.l.b16 %v625
  %v642 = vunpack.c.l.b16 %v626
  %v643 = vunpack.c.l.b16 %v627
  %v644 = vunpack.c.l.b16 %v628
  %v645 = vpack.c.b16 %v642, %v641
  %v646 = vpack.c.b16 %v644, %v643
  %649 = vmatprep.subr.bf16.mxu0 0
  %650 = vmatpush1.bf16.msra.mxu0 %v645
  %651 = vmatprep.subr.bf16.mxu0 0
  %652 = vmatpush1.bf16.msra.mxu0 %v646
  %653 = vmatprep.subr.bf16.mxu0 0
  %654 = vmatpush1.bf16.msra.mxu0 0
  %655 = vmatprep.subr.bf16.mxu0 0
  %656 = vmatpush1.bf16.msra.mxu0 0
  %657 = vmatprep.subr.bf16.mxu0 0
  %658 = vmatpush1.bf16.msra.mxu0 0
  %659 = vmatprep.subr.bf16.mxu0 0
  %660 = vmatpush1.bf16.msra.mxu0 0
  %661 = vmatprep.subr.bf16.mxu0 0
  %662 = vmatpush1.bf16.msra.mxu0 0
  %663 = vmatprep.subr.bf16.mxu0 0
  %664 = vmatpush1.bf16.msra.mxu0 0
  %665 = vmatprep.subr.bf16.mxu0 0
  %666 = vmatpush1.bf16.msra.mxu0 0
  %667 = vmatprep.subr.bf16.mxu0 0
  %668 = vmatpush1.bf16.msra.mxu0 0
  %669 = vmatprep.subr.bf16.mxu0 0
  %670 = vmatpush1.bf16.msra.mxu0 0
  %671 = vmatprep.subr.bf16.mxu0 0
  %672 = vmatpush1.bf16.msra.mxu0 0
  %673 = vmatprep.subr.bf16.mxu0 0
  %674 = vmatpush1.bf16.msra.mxu0 0
  %675 = vmatprep.subr.bf16.mxu0 0
  %676 = vmatpush1.bf16.msra.mxu0 0
  %677 = vmatprep.subr.bf16.mxu0 0
  %678 = vmatpush1.bf16.msra.mxu0 0
  %679 = vmatprep.subr.bf16.mxu0 0
  %680 = vmatpush1.bf16.msra.mxu0 0
  %681 = vmatprep.mubr.bf16.mxu0 0
  %682 = vmatmul.mubr.bf16.gmra.mrb[0].mxu0 %v328
  %v683 = vpop.f32.mrb[0].mxu0
  %v684 = vadd.f32 %v635, %v683
  %v685 = vpop.f32.mrb[0].mxu0
  %v686 = vpop.f32.mrb[0].mxu0
  %v687 = vadd.f32 %v635, %v686
  %v688 = vpop.f32.mrb[0].mxu0
  %689 = vdwg.mxu0
  %s690 = scalar_lea.vmem %s8, 16
  %v691 = vld [vmem:[%s690] sm:$0xf]
  %v692 = vld [vmem:[%s690 + $0x4] sm:$0xf]
  %v693 = vld [vmem:[%s690 + $0x8] sm:$0xf]
  %v694 = vld [vmem:[%s690 + $0xc] sm:$0xf]
  %s695 = scalar_lea.vmem %s9, 1
  %v696 = vld [vmem:[%s695] sm:$0x1]
  %v698 = vlaneseq
  %v699 = vshrl.u32 %v698, 7
  %v700 = vsub.s32 0, %v699
  %v701 = vrot.slane %v696, %v700
  %v707 = vunpack.c.l.b16 %v691
  %v708 = vunpack.c.l.b16 %v692
  %v709 = vunpack.c.l.b16 %v693
  %v710 = vunpack.c.l.b16 %v694
  %v711 = vpack.c.b16 %v708, %v707
  %v712 = vpack.c.b16 %v710, %v709
  %715 = vmatprep.subr.bf16.mxu0 0
  %716 = vmatpush1.bf16.msra.mxu0 %v711
  %717 = vmatprep.subr.bf16.mxu0 0
  %718 = vmatpush1.bf16.msra.mxu0 %v712
  %719 = vmatprep.subr.bf16.mxu0 0
  %720 = vmatpush1.bf16.msra.mxu0 0
  %721 = vmatprep.subr.bf16.mxu0 0
  %722 = vmatpush1.bf16.msra.mxu0 0
  %723 = vmatprep.subr.bf16.mxu0 0
  %724 = vmatpush1.bf16.msra.mxu0 0
  %725 = vmatprep.subr.bf16.mxu0 0
  %726 = vmatpush1.bf16.msra.mxu0 0
  %727 = vmatprep.subr.bf16.mxu0 0
  %728 = vmatpush1.bf16.msra.mxu0 0
  %729 = vmatprep.subr.bf16.mxu0 0
  %730 = vmatpush1.bf16.msra.mxu0 0
  %731 = vmatprep.subr.bf16.mxu0 0
  %732 = vmatpush1.bf16.msra.mxu0 0
  %733 = vmatprep.subr.bf16.mxu0 0
  %734 = vmatpush1.bf16.msra.mxu0 0
  %735 = vmatprep.subr.bf16.mxu0 0
  %736 = vmatpush1.bf16.msra.mxu0 0
  %737 = vmatprep.subr.bf16.mxu0 0
  %738 = vmatpush1.bf16.msra.mxu0 0
  %739 = vmatprep.subr.bf16.mxu0 0
  %740 = vmatpush1.bf16.msra.mxu0 0
  %741 = vmatprep.subr.bf16.mxu0 0
  %742 = vmatpush1.bf16.msra.mxu0 0
  %743 = vmatprep.subr.bf16.mxu0 0
  %744 = vmatpush1.bf16.msra.mxu0 0
  %745 = vmatprep.subr.bf16.mxu0 0
  %746 = vmatpush1.bf16.msra.mxu0 0
  %747 = vmatprep.mubr.bf16.mxu0 0
  %748 = vmatmul.mubr.bf16.gmra.mrb[0].mxu0 %v328
  %v749 = vpop.f32.mrb[0].mxu0
  %v750 = vadd.f32 %v701, %v749
  %v751 = vpop.f32.mrb[0].mxu0
  %v752 = vpop.f32.mrb[0].mxu0
  %v753 = vadd.f32 %v701, %v752
  %v754 = vpop.f32.mrb[0].mxu0
  %755 = vdwg.mxu0
  %s756 = scalar_lea.vmem %s10, 16
  %v757 = vld [vmem:[%s756] sm:$0xf]
  %v758 = vld [vmem:[%s756 + $0x4] sm:$0xf]
  %v759 = vld [vmem:[%s756 + $0x8] sm:$0xf]
  %v760 = vld [vmem:[%s756 + $0xc] sm:$0xf]
  %s761 = scalar_lea.vmem %s11, 1
  %v762 = vld [vmem:[%s761] sm:$0x1]
  %v764 = vlaneseq
  %v765 = vshrl.u32 %v764, 7
  %v766 = vsub.s32 0, %v765
  %v767 = vrot.slane %v762, %v766
  %v773 = vunpack.c.l.b16 %v757
  %v774 = vunpack.c.l.b16 %v758
  %v775 = vunpack.c.l.b16 %v759
  %v776 = vunpack.c.l.b16 %v760
  %v777 = vpack.c.b16 %v774, %v773
  %v778 = vpack.c.b16 %v776, %v775
  %781 = vmatprep.subr.bf16.mxu0 0
  %782 = vmatpush1.bf16.msra.mxu0 %v777
  %783 = vmatprep.subr.bf16.mxu0 0
  %784 = vmatpush1.bf16.msra.mxu0 %v778
  %785 = vmatprep.subr.bf16.mxu0 0
  %786 = vmatpush1.bf16.msra.mxu0 0
  %787 = vmatprep.subr.bf16.mxu0 0
  %788 = vmatpush1.bf16.msra.mxu0 0
  %789 = vmatprep.subr.bf16.mxu0 0
  %790 = vmatpush1.bf16.msra.mxu0 0
  %791 = vmatprep.subr.bf16.mxu0 0
  %792 = vmatpush1.bf16.msra.mxu0 0
  %793 = vmatprep.subr.bf16.mxu0 0
  %794 = vmatpush1.bf16.msra.mxu0 0
  %795 = vmatprep.subr.bf16.mxu0 0
  %796 = vmatpush1.bf16.msra.mxu0 0
  %797 = vmatprep.subr.bf16.mxu0 0
  %798 = vmatpush1.bf16.msra.mxu0 0
  %799 = vmatprep.subr.bf16.mxu0 0
  %800 = vmatpush1.bf16.msra.mxu0 0
  %801 = vmatprep.subr.bf16.mxu0 0
  %802 = vmatpush1.bf16.msra.mxu0 0
  %803 = vmatprep.subr.bf16.mxu0 0
  %804 = vmatpush1.bf16.msra.mxu0 0
  %805 = vmatprep.subr.bf16.mxu0 0
  %806 = vmatpush1.bf16.msra.mxu0 0
  %807 = vmatprep.subr.bf16.mxu0 0
  %808 = vmatpush1.bf16.msra.mxu0 0
  %809 = vmatprep.subr.bf16.mxu0 0
  %810 = vmatpush1.bf16.msra.mxu0 0
  %811 = vmatprep.subr.bf16.mxu0 0
  %812 = vmatpush1.bf16.msra.mxu0 0
  %813 = vmatprep.mubr.bf16.mxu0 0
  %814 = vmatmul.mubr.bf16.gmra.mrb[0].mxu0 %v328
  %v815 = vpop.f32.mrb[0].mxu0
  %v816 = vadd.f32 %v767, %v815
  %v817 = vpop.f32.mrb[0].mxu0
  %v818 = vpop.f32.mrb[0].mxu0
  %v819 = vadd.f32 %v767, %v818
  %v820 = vpop.f32.mrb[0].mxu0
  %821 = vdwg.mxu0
  %v822 = vpack.c.bf16 %v687, %v684
  %v823 = vpack.c.bf16 %v753, %v750
  %v825 = vsel %vm501, %v822, 0
  %v828 = vsel %vm501, %v823, 0
  %830 = vmatprep.subr.bf16.mxu0 0
  %831 = vmatpush1.bf16.xpose.msra.mxu0 %v828
  %832 = vmatprep.subr.bf16.mxu0 0
  %833 = vmatpush1.bf16.xpose.msra.mxu0 0
  %834 = vmatprep.subr.bf16.mxu0 0
  %835 = vmatpush1.bf16.xpose.msra.mxu0 0
  %836 = vmatprep.subr.bf16.mxu0 0
  %837 = vmatpush1.bf16.xpose.msra.mxu0 0
  %838 = vmatprep.subr.bf16.mxu0 0
  %839 = vmatpush1.bf16.xpose.msra.mxu0 0
  %840 = vmatprep.subr.bf16.mxu0 0
  %841 = vmatpush1.bf16.xpose.msra.mxu0 0
  %842 = vmatprep.subr.bf16.mxu0 0
  %843 = vmatpush1.bf16.xpose.msra.mxu0 0
  %844 = vmatprep.subr.bf16.mxu0 0
  %845 = vmatpush1.bf16.xpose.msra.mxu0 0
  %846 = vmatprep.subr.bf16.mxu0 0
  %847 = vmatpush1.bf16.xpose.msra.mxu0 0
  %848 = vmatprep.subr.bf16.mxu0 0
  %849 = vmatpush1.bf16.xpose.msra.mxu0 0
  %850 = vmatprep.subr.bf16.mxu0 0
  %851 = vmatpush1.bf16.xpose.msra.mxu0 0
  %852 = vmatprep.subr.bf16.mxu0 0
  %853 = vmatpush1.bf16.xpose.msra.mxu0 0
  %854 = vmatprep.subr.bf16.mxu0 0
  %855 = vmatpush1.bf16.xpose.msra.mxu0 0
  %856 = vmatprep.subr.bf16.mxu0 0
  %857 = vmatpush1.bf16.xpose.msra.mxu0 0
  %858 = vmatprep.subr.bf16.mxu0 0
  %859 = vmatpush1.bf16.xpose.msra.mxu0 0
  %860 = vmatprep.subr.bf16.mxu0 0
  %861 = vmatpush1.bf16.xpose.msra.mxu0 0
  %862 = vmatprep.mubr.bf16.mxu0 0
  %863 = vmatmul.mubr.bf16.gmra.mrb[0].mxu0 %v825
  %v864 = vpop.f32.mrb[0].mxu0
  %v865 = vadd.f32 0.0, %v864
  %v866 = vpop.f32.mrb[0].mxu0
  %v867 = vpop.f32.mrb[0].mxu0
  %v868 = vadd.f32 0.0, %v867
  %v869 = vpop.f32.mrb[0].mxu0
  %870 = vdwg.mxu0
  %v871 = vmul.f32 %v865, 0.25
  %v872 = vmul.f32 %v868, 0.25
  %v873 = vadd.f32 %v871, %v255
  %v874 = vadd.f32 %v872, %v256
  %v875 = vsel %vm501, %v873, -inf
  %876 = vmax.xlane.f32.xlu0 %v875
  %v877 = vpop.xlane.xlu0 %876
  %v878 = vsel %vm501, %v874, -inf
  %879 = vmax.xlane.f32.xlu0 %v878
  %v880 = vpop.xlane.xlu0 %879
  %v881 = vsub.f32 %v873, %v877
  %v882 = vsub.f32 %v874, %v880
  %v883 = vmul.f32 %v881, 1.442695
  %v884 = vpow.pop %v883
  %v885 = vmul.f32 %v882, 1.442695
  %v886 = vpow.pop %v885
  %v887 = vsel %vm501, %v884, 0.0
  %888 = vadd.xlane.f32.xlu0 %v887
  %v889 = vpop.xlane.xlu0 %888
  %v890 = vsel %vm501, %v886, 0.0
  %891 = vadd.xlane.f32.xlu0 %v890
  %v892 = vpop.xlane.xlu0 %891
  %v893 = vrcp.pop %v889
  %v894 = vrcp.pop %v892
  %v895 = vmul.f32 %v884, %v893
  %v896 = vmul.f32 %v886, %v894
  %v897 = vpack.c.bf16 %v896, %v895
  %v898 = vpack.c.bf16 %v819, %v816
  %v900 = vsel %vm501, %v897, 0
  %902 = vmatprep.subr.bf16.mxu0 0
  %903 = vmatpush1.bf16.msra.mxu0 %v898
  %904 = vmatprep.subr.bf16.mxu0 0
  %905 = vmatpush1.bf16.msra.mxu0 0
  %906 = vmatprep.subr.bf16.mxu0 0
  %907 = vmatpush1.bf16.msra.mxu0 0
  %908 = vmatprep.subr.bf16.mxu0 0
  %909 = vmatpush1.bf16.msra.mxu0 0
  %910 = vmatprep.subr.bf16.mxu0 0
  %911 = vmatpush1.bf16.msra.mxu0 0
  %912 = vmatprep.subr.bf16.mxu0 0
  %913 = vmatpush1.bf16.msra.mxu0 0
  %914 = vmatprep.subr.bf16.mxu0 0
  %915 = vmatpush1.bf16.msra.mxu0 0
  %916 = vmatprep.subr.bf16.mxu0 0
  %917 = vmatpush1.bf16.msra.mxu0 0
  %918 = vmatprep.subr.bf16.mxu0 0
  %919 = vmatpush1.bf16.msra.mxu0 0
  %920 = vmatprep.subr.bf16.mxu0 0
  %921 = vmatpush1.bf16.msra.mxu0 0
  %922 = vmatprep.subr.bf16.mxu0 0
  %923 = vmatpush1.bf16.msra.mxu0 0
  %924 = vmatprep.subr.bf16.mxu0 0
  %925 = vmatpush1.bf16.msra.mxu0 0
  %926 = vmatprep.subr.bf16.mxu0 0
  %927 = vmatpush1.bf16.msra.mxu0 0
  %928 = vmatprep.subr.bf16.mxu0 0
  %929 = vmatpush1.bf16.msra.mxu0 0
  %930 = vmatprep.subr.bf16.mxu0 0
  %931 = vmatpush1.bf16.msra.mxu0 0
  %932 = vmatprep.subr.bf16.mxu0 0
  %933 = vmatpush1.bf16.msra.mxu0 0
  %934 = vmatprep.mubr.bf16.mxu0 0
  %935 = vmatmul.mubr.bf16.gmra.mrb[0].mxu0 %v900
  %v936 = vpop.f32.mrb[0].mxu0
  %v937 = vadd.f32 0.0, %v936
  %v938 = vpop.f32.mrb[0].mxu0
  %v939 = vpop.f32.mrb[0].mxu0
  %v940 = vadd.f32 0.0, %v939
  %v941 = vpop.f32.mrb[0].mxu0
  %942 = vdwg.mxu0
  %v943 = vpack.c.bf16 %v940, %v937
  %s944 = scalar_lea.vmem %s12, 8
  %v945 = vld [vmem:[%s944] sm:$0xf]
  %v946 = vld [vmem:[%s944 + $0x4] sm:$0xf]
  %v949 = vunpack.c.l.b16 %v945
  %v950 = vunpack.c.l.b16 %v946
  %v951 = vpack.c.b16 %v950, %v949
  %v954 = vsel %vm501, %v943, 0
  %956 = vmatprep.subr.bf16.mxu0 0
  %957 = vmatpush1.bf16.msra.mxu0 %v951
  %958 = vmatprep.subr.bf16.mxu0 0
  %959 = vmatpush1.bf16.msra.mxu0 0
  %960 = vmatprep.subr.bf16.mxu0 0
  %961 = vmatpush1.bf16.msra.mxu0 0
  %962 = vmatprep.subr.bf16.mxu0 0
  %963 = vmatpush1.bf16.msra.mxu0 0
  %964 = vmatprep.subr.bf16.mxu0 0
  %965 = vmatpush1.bf16.msra.mxu0 0
  %966 = vmatprep.subr.bf16.mxu0 0
  %967 = vmatpush1.bf16.msra.mxu0 0
  %968 = vmatprep.subr.bf16.mxu0 0
  %969 = vmatpush1.bf16.msra.mxu0 0
  %970 = vmatprep.subr.bf16.mxu0 0
  %971 = vmatpush1.bf16.msra.mxu0 0
  %972 = vmatprep.subr.bf16.mxu0 0
  %973 = vmatpush1.bf16.msra.mxu0 0
  %974 = vmatprep.subr.bf16.mxu0 0
  %975 = vmatpush1.bf16.msra.mxu0 0
  %976 = vmatprep.subr.bf16.mxu0 0
  %977 = vmatpush1.bf16.msra.mxu0 0
  %978 = vmatprep.subr.bf16.mxu0 0
  %979 = vmatpush1.bf16.msra.mxu0 0
  %980 = vmatprep.subr.bf16.mxu0 0
  %981 = vmatpush1.bf16.msra.mxu0 0
  %982 = vmatprep.subr.bf16.mxu0 0
  %983 = vmatpush1.bf16.msra.mxu0 0
  %984 = vmatprep.subr.bf16.mxu0 0
  %985 = vmatpush1.bf16.msra.mxu0 0
  %986 = vmatprep.subr.bf16.mxu0 0
  %987 = vmatpush1.bf16.msra.mxu0 0
  %988 = vmatprep.mubr.bf16.mxu0 0
  %989 = vmatmul.mubr.bf16.gmra.mrb[0].mxu0 %v954
  %v990 = vpop.f32.mrb[0].mxu0
  %v991 = vadd.f32 0.0, %v990
  %v992 = vpop.f32.mrb[0].mxu0
  %v993 = vpop.f32.mrb[0].mxu0
  %v994 = vadd.f32 0.0, %v993
  %v995 = vpop.f32.mrb[0].mxu0
  %996 = vdwg.mxu0
  %v999 = vunpack.c.l.b16 %v622
  %v1000 = vunpack.c.l.b16 %v623
  %v1001 = vpack.c.b16 %v1000, %v999
  %v1004 = vsel %vm501, %v621, 0
  %1006 = vmatprep.subr.bf16.mxu0 0
  %1007 = vmatpush1.bf16.msra.mxu0 %v1001
  %1008 = vmatprep.subr.bf16.mxu0 0
  %1009 = vmatpush1.bf16.msra.mxu0 0
  %1010 = vmatprep.subr.bf16.mxu0 0
  %1011 = vmatpush1.bf16.msra.mxu0 0
  %1012 = vmatprep.subr.bf16.mxu0 0
  %1013 = vmatpush1.bf16.msra.mxu0 0
  %1014 = vmatprep.subr.bf16.mxu0 0
  %1015 = vmatpush1.bf16.msra.mxu0 0
  %1016 = vmatprep.subr.bf16.mxu0 0
  %1017 = vmatpush1.bf16.msra.mxu0 0
  %1018 = vmatprep.subr.bf16.mxu0 0
  %1019 = vmatpush1.bf16.msra.mxu0 0
  %1020 = vmatprep.subr.bf16.mxu0 0
  %1021 = vmatpush1.bf16.msra.mxu0 0
  %1022 = vmatprep.subr.bf16.mxu0 0
  %1023 = vmatpush1.bf16.msra.mxu0 0
  %1024 = vmatprep.subr.bf16.mxu0 0
  %1025 = vmatpush1.bf16.msra.mxu0 0
  %1026 = vmatprep.subr.bf16.mxu0 0
  %1027 = vmatpush1.bf16.msra.mxu0 0
  %1028 = vmatprep.subr.bf16.mxu0 0
  %1029 = vmatpush1.bf16.msra.mxu0 0
  %1030 = vmatprep.subr.bf16.mxu0 0
  %1031 = vmatpush1.bf16.msra.mxu0 0
  %1032 = vmatprep.subr.bf16.mxu0 0
  %1033 = vmatpush1.bf16.msra.mxu0 0
  %1034 = vmatprep.subr.bf16.mxu0 0
  %1035 = vmatpush1.bf16.msra.mxu0 0
  %1036 = vmatprep.subr.bf16.mxu0 0
  %1037 = vmatpush1.bf16.msra.mxu0 0
  %1038 = vmatprep.mubr.bf16.mxu0 0
  %1039 = vmatmul.mubr.bf16.gmra.mrb[0].mxu0 %v1004
  %v1040 = vpop.f32.mrb[0].mxu0
  %v1041 = vadd.f32 %v991, %v1040
  %v1042 = vpop.f32.mrb[0].mxu0
  %v1043 = vpop.f32.mrb[0].mxu0
  %v1044 = vadd.f32 %v994, %v1043
  %v1045 = vpop.f32.mrb[0].mxu0
  %1046 = vdwg.mxu0
  %v1047 = vadd.f32 %v249, %v1041
  %v1048 = vadd.f32 %v252, %v1044
  %v1049 = vld [vmem:[%s13] sm:$0x1]
  %v1051 = vlaneseq
  %v1052 = vshrl.u32 %v1051, 7
  %v1053 = vsub.s32 0, %v1052
  %v1054 = vrot.slane %v1049, %v1053
  %v1056 = vadd.f32 %v1047, %v1054
  %v1057 = vadd.f32 %v1048, %v1054
  %v1058 = vld [vmem:[%s14] sm:$0x1]
  %v1059 = vld [vmem:[%s15] sm:$0x1]
  %v1060 = vsel %vm259, %v1056, 0.0
  %1061 = vadd.xlane.f32.xlu0 %v1060
  %v1062 = vpop.xlane.xlu0 %1061
  %v1063 = vsel %vm259, %v1057, 0.0
  %1064 = vadd.xlane.f32.xlu0 %v1063
  %v1065 = vpop.xlane.xlu0 %1064
  %v1066 = vmul.f32 %v1062, %v266
  %v1067 = vmul.f32 %v1065, %v266
  %v1068 = vsub.f32 %v1056, %v1066
  %v1069 = vsub.f32 %v1057, %v1067
  %v1070 = vmul.f32 %v1068, %v1068
  %v1071 = vmul.f32 %v1069, %v1069
  %v1072 = vsel %vm259, %v1070, 0.0
  %1073 = vadd.xlane.f32.xlu0 %v1072
  %v1074 = vpop.xlane.xlu0 %1073
  %v1075 = vsel %vm259, %v1071, 0.0
  %1076 = vadd.xlane.f32.xlu0 %v1075
  %v1077 = vpop.xlane.xlu0 %1076
  %v1078 = vmul.f32 %v1074, %v266
  %v1079 = vmul.f32 %v1077, %v266
  %v1080 = vadd.f32 %v1078, 1e-06
  %v1081 = vadd.f32 %v1079, 1e-06
  %v1082 = vrsqrt.pop %v1080
  %v1083 = vrsqrt.pop %v1081
  %v1084 = vmul.f32 %v1068, %v1082
  %v1085 = vmul.f32 %v1069, %v1083
  %v1087 = vlaneseq
  %v1088 = vshrl.u32 %v1087, 7
  %v1089 = vsub.s32 0, %v1088
  %v1090 = vrot.slane %v1058, %v1089
  %v1092 = vmul.f32 %v1084, %v1090
  %v1093 = vmul.f32 %v1085, %v1090
  %v1095 = vlaneseq
  %v1096 = vshrl.u32 %v1095, 7
  %v1097 = vsub.s32 0, %v1096
  %v1098 = vrot.slane %v1059, %v1097
  %v1100 = vadd.f32 %v1092, %v1098
  %v1101 = vadd.f32 %v1093, %v1098
  %v1102 = vpack.c.bf16 %v1101, %v1100
  %v1103 = vld [vmem:[%s16] sm:$0xf]
  %v1104 = vld [vmem:[%s16 + $0x4] sm:$0xf]
  %v1105 = vld [vmem:[%s16 + $0x8] sm:$0xf]
  %v1106 = vld [vmem:[%s16 + $0xc] sm:$0xf]
  %v1107 = vld [vmem:[%s17] sm:$0x1]
  %v1109 = vlaneseq
  %v1110 = vshrl.u32 %v1109, 7
  %v1111 = vsub.s32 0, %v1110
  %v1112 = vrot.slane %v1107, %v1111
  %v1118 = vunpack.c.l.b16 %v1103
  %v1119 = vunpack.c.l.b16 %v1104
  %v1120 = vunpack.c.l.b16 %v1105
  %v1121 = vunpack.c.l.b16 %v1106
  %v1122 = vpack.c.b16 %v1119, %v1118
  %v1123 = vpack.c.b16 %v1121, %v1120
  %v1127 = vsel %vm259, %v1102, 0
  %1129 = vmatprep.subr.bf16.mxu0 0
  %1130 = vmatpush1.bf16.msra.mxu0 %v1122
  %1131 = vmatprep.subr.bf16.mxu0 0
  %1132 = vmatpush1.bf16.msra.mxu0 %v1123
  %1133 = vmatprep.subr.bf16.mxu0 0
  %1134 = vmatpush1.bf16.msra.mxu0 0
  %1135 = vmatprep.subr.bf16.mxu0 0
  %1136 = vmatpush1.bf16.msra.mxu0 0
  %1137 = vmatprep.subr.bf16.mxu0 0
  %1138 = vmatpush1.bf16.msra.mxu0 0
  %1139 = vmatprep.subr.bf16.mxu0 0
  %1140 = vmatpush1.bf16.msra.mxu0 0
  %1141 = vmatprep.subr.bf16.mxu0 0
  %1142 = vmatpush1.bf16.msra.mxu0 0
  %1143 = vmatprep.subr.bf16.mxu0 0
  %1144 = vmatpush1.bf16.msra.mxu0 0
  %1145 = vmatprep.subr.bf16.mxu0 0
  %1146 = vmatpush1.bf16.msra.mxu0 0
  %1147 = vmatprep.subr.bf16.mxu0 0
  %1148 = vmatpush1.bf16.msra.mxu0 0
  %1149 = vmatprep.subr.bf16.mxu0 0
  %1150 = vmatpush1.bf16.msra.mxu0 0
  %1151 = vmatprep.subr.bf16.mxu0 0
  %1152 = vmatpush1.bf16.msra.mxu0 0
  %1153 = vmatprep.subr.bf16.mxu0 0
  %1154 = vmatpush1.bf16.msra.mxu0 0
  %1155 = vmatprep.subr.bf16.mxu0 0
  %1156 = vmatpush1.bf16.msra.mxu0 0
  %1157 = vmatprep.subr.bf16.mxu0 0
  %1158 = vmatpush1.bf16.msra.mxu0 0
  %1159 = vmatprep.subr.bf16.mxu0 0
  %1160 = vmatpush1.bf16.msra.mxu0 0
  %1161 = vmatprep.mubr.bf16.mxu0 0
  %1162 = vmatmul.mubr.bf16.gmra.mrb[0].mxu0 %v1127
  %v1163 = vpop.f32.mrb[0].mxu0
  %v1164 = vadd.f32 %v1112, %v1163
  %v1165 = vpop.f32.mrb[0].mxu0
  %v1166 = vpop.f32.mrb[0].mxu0
  %v1167 = vadd.f32 %v1112, %v1166
  %v1168 = vpop.f32.mrb[0].mxu0
  %1169 = vdwg.mxu0
  %v1170 = vmul.f32 %v1164, %v1164
  %v1171 = vmul.f32 %v1167, %v1167
  %v1172 = vmul.f32 %v1164, %v1170
  %v1173 = vmul.f32 %v1167, %v1171
  %v1174 = vmul.f32 %v1172, 0.044715
  %v1175 = vmul.f32 %v1173, 0.044715
  %v1176 = vadd.f32 %v1164, %v1174
  %v1177 = vadd.f32 %v1167, %v1175
  %v1178 = vmul.f32 %v1176, 0.7978846
  %v1179 = vmul.f32 %v1177, 0.7978846
  %v1180 = vtanh.pop %v1178
  %v1181 = vtanh.pop %v1179
  %v1182 = vadd.f32 %v1180, 1.0
  %v1183 = vadd.f32 %v1181, 1.0
  %v1184 = vmul.f32 %v1182, 0.5
  %v1185 = vmul.f32 %v1183, 0.5
  %v1186 = vmul.f32 %v1164, %v1184
  %v1187 = vmul.f32 %v1167, %v1185
  %v1188 = vpack.c.bf16 %v1187, %v1186
  %v1189 = vld [vmem:[%s18] sm:$0xf]
  %v1190 = vld [vmem:[%s18 + $0x4] sm:$0xf]
  %v1191 = vld [vmem:[%s18 + $0x8] sm:$0xf]
  %v1192 = vld [vmem:[%s18 + $0xc] sm:$0xf]
  %v1193 = vld [vmem:[%s18 + $0x10] sm:$0xf]
  %v1194 = vld [vmem:[%s18 + $0x14] sm:$0xf]
  %v1195 = vld [vmem:[%s18 + $0x18] sm:$0xf]
  %v1196 = vld [vmem:[%s18 + $0x1c] sm:$0xf]
  %v1197 = vld [vmem:[%s18 + $0x20] sm:$0xf]
  %v1198 = vld [vmem:[%s18 + $0x24] sm:$0xf]
  %v1199 = vld [vmem:[%s18 + $0x28] sm:$0xf]
  %v1200 = vld [vmem:[%s18 + $0x2c] sm:$0xf]
  %v1201 = vld [vmem:[%s18 + $0x30] sm:$0xf]
  %v1202 = vld [vmem:[%s18 + $0x34] sm:$0xf]
  %v1203 = vld [vmem:[%s18 + $0x38] sm:$0xf]
  %v1204 = vld [vmem:[%s18 + $0x3c] sm:$0xf]
  %v1205 = vld [vmem:[%s19] sm:$0x1]
  %v1207 = vlaneseq
  %v1208 = vshrl.u32 %v1207, 7
  %v1209 = vsub.s32 0, %v1208
  %v1210 = vrot.slane %v1205, %v1209
  %v1228 = vunpack.c.l.b16 %v1189
  %v1229 = vunpack.c.l.b16 %v1190
  %v1230 = vunpack.c.l.b16 %v1191
  %v1231 = vunpack.c.l.b16 %v1192
  %v1232 = vunpack.c.l.b16 %v1193
  %v1233 = vunpack.c.l.b16 %v1194
  %v1234 = vunpack.c.l.b16 %v1195
  %v1235 = vunpack.c.l.b16 %v1196
  %v1236 = vunpack.c.l.b16 %v1197
  %v1237 = vunpack.c.l.b16 %v1198
  %v1238 = vunpack.c.l.b16 %v1199
  %v1239 = vunpack.c.l.b16 %v1200
  %v1240 = vunpack.c.l.b16 %v1201
  %v1241 = vunpack.c.l.b16 %v1202
  %v1242 = vunpack.c.l.b16 %v1203
  %v1243 = vunpack.c.l.b16 %v1204
  %v1244 = vpack.c.b16 %v1229, %v1228
  %v1245 = vpack.c.b16 %v1231, %v1230
  %v1246 = vpack.c.b16 %v1233, %v1232
  %v1247 = vpack.c.b16 %v1235, %v1234
  %v1248 = vpack.c.b16 %v1237, %v1236
  %v1249 = vpack.c.b16 %v1239, %v1238
  %v1250 = vpack.c.b16 %v1241, %v1240
  %v1251 = vpack.c.b16 %v1243, %v1242
  %1260 = vmatprep.subr.bf16.mxu0 0
  %1261 = vmatpush1.bf16.msra.mxu0 %v1244
  %1262 = vmatprep.subr.bf16.mxu0 0
  %1263 = vmatpush1.bf16.msra.mxu0 %v1245
  %1264 = vmatprep.subr.bf16.mxu0 0
  %1265 = vmatpush1.bf16.msra.mxu0 %v1246
  %1266 = vmatprep.subr.bf16.mxu0 0
  %1267 = vmatpush1.bf16.msra.mxu0 %v1247
  %1268 = vmatprep.subr.bf16.mxu0 0
  %1269 = vmatpush1.bf16.msra.mxu0 %v1248
  %1270 = vmatprep.subr.bf16.mxu0 0
  %1271 = vmatpush1.bf16.msra.mxu0 %v1249
  %1272 = vmatprep.subr.bf16.mxu0 0
  %1273 = vmatpush1.bf16.msra.mxu0 %v1250
  %1274 = vmatprep.subr.bf16.mxu0 0
  %1275 = vmatpush1.bf16.msra.mxu0 %v1251
  %1276 = vmatprep.subr.bf16.mxu0 0
  %1277 = vmatpush1.bf16.msra.mxu0 0
  %1278 = vmatprep.subr.bf16.mxu0 0
  %1279 = vmatpush1.bf16.msra.mxu0 0
  %1280 = vmatprep.subr.bf16.mxu0 0
  %1281 = vmatpush1.bf16.msra.mxu0 0
  %1282 = vmatprep.subr.bf16.mxu0 0
  %1283 = vmatpush1.bf16.msra.mxu0 0
  %1284 = vmatprep.subr.bf16.mxu0 0
  %1285 = vmatpush1.bf16.msra.mxu0 0
  %1286 = vmatprep.subr.bf16.mxu0 0
  %1287 = vmatpush1.bf16.msra.mxu0 0
  %1288 = vmatprep.subr.bf16.mxu0 0
  %1289 = vmatpush1.bf16.msra.mxu0 0
  %1290 = vmatprep.subr.bf16.mxu0 0
  %1291 = vmatpush1.bf16.msra.mxu0 0
  %1292 = vmatprep.mubr.bf16.mxu0 0
  %1293 = vmatmul.mubr.bf16.gmra.mrb[0].mxu0 %v1188
  %v1294 = vpop.f32.mrb[0].mxu0
  %v1295 = vadd.f32 %v1210, %v1294
  %v1296 = vpop.f32.mrb[0].mxu0
  %v1297 = vpop.f32.mrb[0].mxu0
  %v1298 = vadd.f32 %v1210, %v1297
  %v1299 = vpop.f32.mrb[0].mxu0
  %1300 = vdwg.mxu0
  %v1301 = vadd.f32 %v1056, %v1295
  %v1302 = vadd.f32 %v1057, %v1298
  %s1303 = scalar_lea.vmem %s4, 1
  %v1304 = vld [vmem:[%s1303] sm:$0x1]
  %s1305 = scalar_lea.vmem %s5, 1
  %v1306 = vld [vmem:[%s1305] sm:$0x1]
  %v1307 = vsel %vm259, %v1301, 0.0
  %1308 = vadd.xlane.f32.xlu0 %v1307
  %v1309 = vpop.xlane.xlu0 %1308
  %v1310 = vsel %vm259, %v1302, 0.0
  %1311 = vadd.xlane.f32.xlu0 %v1310
  %v1312 = vpop.xlane.xlu0 %1311
  %v1313 = vmul.f32 %v1309, %v266
  %v1314 = vmul.f32 %v1312, %v266
  %v1315 = vsub.f32 %v1301, %v1313
  %v1316 = vsub.f32 %v1302, %v1314
  %v1317 = vmul.f32 %v1315, %v1315
  %v1318 = vmul.f32 %v1316, %v1316
  %v1319 = vsel %vm259, %v1317, 0.0
  %1320 = vadd.xlane.f32.xlu0 %v1319
  %v1321 = vpop.xlane.xlu0 %1320
  %v1322 = vsel %vm259, %v1318, 0.0
  %1323 = vadd.xlane.f32.xlu0 %v1322
  %v1324 = vpop.xlane.xlu0 %1323
  %v1325 = vmul.f32 %v1321, %v266
  %v1326 = vmul.f32 %v1324, %v266
  %v1327 = vadd.f32 %v1325, 1e-06
  %v1328 = vadd.f32 %v1326, 1e-06
  %v1329 = vrsqrt.pop %v1327
  %v1330 = vrsqrt.pop %v1328
  %v1331 = vmul.f32 %v1315, %v1329
  %v1332 = vmul.f32 %v1316, %v1330
  %v1334 = vlaneseq
  %v1335 = vshrl.u32 %v1334, 7
  %v1336 = vsub.s32 0, %v1335
  %v1337 = vrot.slane %v1304, %v1336
  %v1339 = vmul.f32 %v1331, %v1337
  %v1340 = vmul.f32 %v1332, %v1337
  %v1342 = vlaneseq
  %v1343 = vshrl.u32 %v1342, 7
  %v1344 = vsub.s32 0, %v1343
  %v1345 = vrot.slane %v1306, %v1344
  %v1347 = vadd.f32 %v1339, %v1345
  %v1348 = vadd.f32 %v1340, %v1345
  %v1349 = vpack.c.bf16 %v1348, %v1347
  %s1350 = scalar_lea.vmem %s6, 32
  %v1351 = vld [vmem:[%s1350] sm:$0xf]
  %v1352 = vld [vmem:[%s1350 + $0x4] sm:$0xf]
  %v1353 = vld [vmem:[%s1350 + $0x8] sm:$0xf]
  %v1354 = vld [vmem:[%s1350 + $0xc] sm:$0xf]
  %s1355 = scalar_lea.vmem %s7, 2
  %v1356 = vld [vmem:[%s1355] sm:$0x1]
  %v1358 = vlaneseq
  %v1359 = vshrl.u32 %v1358, 7
  %v1360 = vsub.s32 0, %v1359
  %v1361 = vrot.slane %v1356, %v1360
  %v1367 = vunpack.c.l.b16 %v1351
  %v1368 = vunpack.c.l.b16 %v1352
  %v1369 = vunpack.c.l.b16 %v1353
  %v1370 = vunpack.c.l.b16 %v1354
  %v1371 = vpack.c.b16 %v1368, %v1367
  %v1372 = vpack.c.b16 %v1370, %v1369
  %v1376 = vsel %vm259, %v1349, 0
  %1378 = vmatprep.subr.bf16.mxu0 0
  %1379 = vmatpush1.bf16.msra.mxu0 %v1371
  %1380 = vmatprep.subr.bf16.mxu0 0
  %1381 = vmatpush1.bf16.msra.mxu0 %v1372
  %1382 = vmatprep.subr.bf16.mxu0 0
  %1383 = vmatpush1.bf16.msra.mxu0 0
  %1384 = vmatprep.subr.bf16.mxu0 0
  %1385 = vmatpush1.bf16.msra.mxu0 0
  %1386 = vmatprep.subr.bf16.mxu0 0
  %1387 = vmatpush1.bf16.msra.mxu0 0
  %1388 = vmatprep.subr.bf16.mxu0 0
  %1389 = vmatpush1.bf16.msra.mxu0 0
  %1390 = vmatprep.subr.bf16.mxu0 0
  %1391 = vmatpush1.bf16.msra.mxu0 0
  %1392 = vmatprep.subr.bf16.mxu0 0
  %1393 = vmatpush1.bf16.msra.mxu0 0
  %1394 = vmatprep.subr.bf16.mxu0 0
  %1395 = vmatpush1.bf16.msra.mxu0 0
  %1396 = vmatprep.subr.bf16.mxu0 0
  %1397 = vmatpush1.bf16.msra.mxu0 0
  %1398 = vmatprep.subr.bf16.mxu0 0
  %1399 = vmatpush1.bf16.msra.mxu0 0
  %1400 = vmatprep.subr.bf16.mxu0 0
  %1401 = vmatpush1.bf16.msra.mxu0 0
  %1402 = vmatprep.subr.bf16.mxu0 0
  %1403 = vmatpush1.bf16.msra.mxu0 0
  %1404 = vmatprep.subr.bf16.mxu0 0
  %1405 = vmatpush1.bf16.msra.mxu0 0
  %1406 = vmatprep.subr.bf16.mxu0 0
  %1407 = vmatpush1.bf16.msra.mxu0 0
  %1408 = vmatprep.subr.bf16.mxu0 0
  %1409 = vmatpush1.bf16.msra.mxu0 0
  %1410 = vmatprep.mubr.bf16.mxu0 0
  %1411 = vmatmul.mubr.bf16.gmra.mrb[0].mxu0 %v1376
  %v1412 = vpop.f32.mrb[0].mxu0
  %v1413 = vadd.f32 %v1361, %v1412
  %v1414 = vpop.f32.mrb[0].mxu0
  %v1415 = vpop.f32.mrb[0].mxu0
  %v1416 = vadd.f32 %v1361, %v1415
  %v1417 = vpop.f32.mrb[0].mxu0
  %1418 = vdwg.mxu0
  %s1419 = scalar_lea.vmem %s8, 32
  %v1420 = vld [vmem:[%s1419] sm:$0xf]
  %v1421 = vld [vmem:[%s1419 + $0x4] sm:$0xf]
  %v1422 = vld [vmem:[%s1419 + $0x8] sm:$0xf]
  %v1423 = vld [vmem:[%s1419 + $0xc] sm:$0xf]
  %s1424 = scalar_lea.vmem %s9, 2
  %v1425 = vld [vmem:[%s1424] sm:$0x1]
  %v1427 = vlaneseq
  %v1428 = vshrl.u32 %v1427, 7
  %v1429 = vsub.s32 0, %v1428
  %v1430 = vrot.slane %v1425, %v1429
  %v1436 = vunpack.c.l.b16 %v1420
  %v1437 = vunpack.c.l.b16 %v1421
  %v1438 = vunpack.c.l.b16 %v1422
  %v1439 = vunpack.c.l.b16 %v1423
  %v1440 = vpack.c.b16 %v1437, %v1436
  %v1441 = vpack.c.b16 %v1439, %v1438
  %1444 = vmatprep.subr.bf16.mxu0 0
  %1445 = vmatpush1.bf16.msra.mxu0 %v1440
  %1446 = vmatprep.subr.bf16.mxu0 0
  %1447 = vmatpush1.bf16.msra.mxu0 %v1441
  %1448 = vmatprep.subr.bf16.mxu0 0
  %1449 = vmatpush1.bf16.msra.mxu0 0
  %1450 = vmatprep.subr.bf16.mxu0 0
  %1451 = vmatpush1.bf16.msra.mxu0 0
  %1452 = vmatprep.subr.bf16.mxu0 0
  %1453 = vmatpush1.bf16.msra.mxu0 0
  %1454 = vmatprep.subr.bf16.mxu0 0
  %1455 = vmatpush1.bf16.msra.mxu0 0
  %1456 = vmatprep.subr.bf16.mxu0 0
  %1457 = vmatpush1.bf16.msra.mxu0 0
  %1458 = vmatprep.subr.bf16.mxu0 0
  %1459 = vmatpush1.bf16.msra.mxu0 0
  %1460 = vmatprep.subr.bf16.mxu0 0
  %1461 = vmatpush1.bf16.msra.mxu0 0
  %1462 = vmatprep.subr.bf16.mxu0 0
  %1463 = vmatpush1.bf16.msra.mxu0 0
  %1464 = vmatprep.subr.bf16.mxu0 0
  %1465 = vmatpush1.bf16.msra.mxu0 0
  %1466 = vmatprep.subr.bf16.mxu0 0
  %1467 = vmatpush1.bf16.msra.mxu0 0
  %1468 = vmatprep.subr.bf16.mxu0 0
  %1469 = vmatpush1.bf16.msra.mxu0 0
  %1470 = vmatprep.subr.bf16.mxu0 0
  %1471 = vmatpush1.bf16.msra.mxu0 0
  %1472 = vmatprep.subr.bf16.mxu0 0
  %1473 = vmatpush1.bf16.msra.mxu0 0
  %1474 = vmatprep.subr.bf16.mxu0 0
  %1475 = vmatpush1.bf16.msra.mxu0 0
  %1476 = vmatprep.mubr.bf16.mxu0 0
  %1477 = vmatmul.mubr.bf16.gmra.mrb[0].mxu0 %v1376
  %v1478 = vpop.f32.mrb[0].mxu0
  %v1479 = vadd.f32 %v1430, %v1478
  %v1480 = vpop.f32.mrb[0].mxu0
  %v1481 = vpop.f32.mrb[0].mxu0
  %v1482 = vadd.f32 %v1430, %v1481
  %v1483 = vpop.f32.mrb[0].mxu0
  %1484 = vdwg.mxu0
  %s1485 = scalar_lea.vmem %s10, 32
  %v1486 = vld [vmem:[%s1485] sm:$0xf]
  %v1487 = vld [vmem:[%s1485 + $0x4] sm:$0xf]
  %v1488 = vld [vmem:[%s1485 + $0x8] sm:$0xf]
  %v1489 = vld [vmem:[%s1485 + $0xc] sm:$0xf]
  %s1490 = scalar_lea.vmem %s11, 2
  %v1491 = vld [vmem:[%s1490] sm:$0x1]
  %v1493 = vlaneseq
  %v1494 = vshrl.u32 %v1493, 7
  %v1495 = vsub.s32 0, %v1494
  %v1496 = vrot.slane %v1491, %v1495
  %v1502 = vunpack.c.l.b16 %v1486
  %v1503 = vunpack.c.l.b16 %v1487
  %v1504 = vunpack.c.l.b16 %v1488
  %v1505 = vunpack.c.l.b16 %v1489
  %v1506 = vpack.c.b16 %v1503, %v1502
  %v1507 = vpack.c.b16 %v1505, %v1504
  %1510 = vmatprep.subr.bf16.mxu0 0
  %1511 = vmatpush1.bf16.msra.mxu0 %v1506
  %1512 = vmatprep.subr.bf16.mxu0 0
  %1513 = vmatpush1.bf16.msra.mxu0 %v1507
  %1514 = vmatprep.subr.bf16.mxu0 0
  %1515 = vmatpush1.bf16.msra.mxu0 0
  %1516 = vmatprep.subr.bf16.mxu0 0
  %1517 = vmatpush1.bf16.msra.mxu0 0
  %1518 = vmatprep.subr.bf16.mxu0 0
  %1519 = vmatpush1.bf16.msra.mxu0 0
  %1520 = vmatprep.subr.bf16.mxu0 0
  %1521 = vmatpush1.bf16.msra.mxu0 0
  %1522 = vmatprep.subr.bf16.mxu0 0
  %1523 = vmatpush1.bf16.msra.mxu0 0
  %1524 = vmatprep.subr.bf16.mxu0 0
  %1525 = vmatpush1.bf16.msra.mxu0 0
  %1526 = vmatprep.subr.bf16.mxu0 0
  %1527 = vmatpush1.bf16.msra.mxu0 0
  %1528 = vmatprep.subr.bf16.mxu0 0
  %1529 = vmatpush1.bf16.msra.mxu0 0
  %1530 = vmatprep.subr.bf16.mxu0 0
  %1531 = vmatpush1.bf16.msra.mxu0 0
  %1532 = vmatprep.subr.bf16.mxu0 0
  %1533 = vmatpush1.bf16.msra.mxu0 0
  %1534 = vmatprep.subr.bf16.mxu0 0
  %1535 = vmatpush1.bf16.msra.mxu0 0
  %1536 = vmatprep.subr.bf16.mxu0 0
  %1537 = vmatpush1.bf16.msra.mxu0 0
  %1538 = vmatprep.subr.bf16.mxu0 0
  %1539 = vmatpush1.bf16.msra.mxu0 0
  %1540 = vmatprep.subr.bf16.mxu0 0
  %1541 = vmatpush1.bf16.msra.mxu0 0
  %1542 = vmatprep.mubr.bf16.mxu0 0
  %1543 = vmatmul.mubr.bf16.gmra.mrb[0].mxu0 %v1376
  %v1544 = vpop.f32.mrb[0].mxu0
  %v1545 = vadd.f32 %v1496, %v1544
  %v1546 = vpop.f32.mrb[0].mxu0
  %v1547 = vpop.f32.mrb[0].mxu0
  %v1548 = vadd.f32 %v1496, %v1547
  %v1549 = vpop.f32.mrb[0].mxu0
  %1550 = vdwg.mxu0
  %v1551 = vpack.c.bf16 %v1416, %v1413
  %v1552 = vpack.c.bf16 %v1482, %v1479
  %v1554 = vsel %vm501, %v1551, 0
  %v1557 = vsel %vm501, %v1552, 0
  %1559 = vmatprep.subr.bf16.mxu0 0
  %1560 = vmatpush1.bf16.xpose.msra.mxu0 %v1557
  %1561 = vmatprep.subr.bf16.mxu0 0
  %1562 = vmatpush1.bf16.xpose.msra.mxu0 0
  %1563 = vmatprep.subr.bf16.mxu0 0
  %1564 = vmatpush1.bf16.xpose.msra.mxu0 0
  %1565 = vmatprep.subr.bf16.mxu0 0
  %1566 = vmatpush1.bf16.xpose.msra.mxu0 0
  %1567 = vmatprep.subr.bf16.mxu0 0
  %1568 = vmatpush1.bf16.xpose.msra.mxu0 0
  %1569 = vmatprep.subr.bf16.mxu0 0
  %1570 = vmatpush1.bf16.xpose.msra.mxu0 0
  %1571 = vmatprep.subr.bf16.mxu0 0
  %1572 = vmatpush1.bf16.xpose.msra.mxu0 0
  %1573 = vmatprep.subr.bf16.mxu0 0
  %1574 = vmatpush1.bf16.xpose.msra.mxu0 0
  %1575 = vmatprep.subr.bf16.mxu0 0
  %1576 = vmatpush1.bf16.xpose.msra.mxu0 0
  %1577 = vmatprep.subr.bf16.mxu0 0
  %1578 = vmatpush1.bf16.xpose.msra.mxu0 0
  %1579 = vmatprep.subr.bf16.mxu0 0
  %1580 = vmatpush1.bf16.xpose.msra.mxu0 0
  %1581 = vmatprep.subr.bf16.mxu0 0
  %1582 = vmatpush1.bf16.xpose.msra.mxu0 0
  %1583 = vmatprep.subr.bf16.mxu0 0
  %1584 = vmatpush1.bf16.xpose.msra.mxu0 0
  %1585 = vmatprep.subr.bf16.mxu0 0
  %1586 = vmatpush1.bf16.xpose.msra.mxu0 0
  %1587 = vmatprep.subr.bf16.mxu0 0
  %1588 = vmatpush1.bf16.xpose.msra.mxu0 0
  %1589 = vmatprep.subr.bf16.mxu0 0
  %1590 = vmatpush1.bf16.xpose.msra.mxu0 0
  %1591 = vmatprep.mubr.bf16.mxu0 0
  %1592 = vmatmul.mubr.bf16.gmra.mrb[0].mxu0 %v1554
  %v1593 = vpop.f32.mrb[0].mxu0
  %v1594 = vadd.f32 0.0, %v1593
  %v1595 = vpop.f32.mrb[0].mxu0
  %v1596 = vpop.f32.mrb[0].mxu0
  %v1597 = vadd.f32 0.0, %v1596
  %v1598 = vpop.f32.mrb[0].mxu0
  %1599 = vdwg.mxu0
  %v1600 = vmul.f32 %v1594, 0.25
  %v1601 = vmul.f32 %v1597, 0.25
  %v1602 = vadd.f32 %v1600, %v255
  %v1603 = vadd.f32 %v1601, %v256
  %v1604 = vsel %vm501, %v1602, -inf
  %1605 = vmax.xlane.f32.xlu0 %v1604
  %v1606 = vpop.xlane.xlu0 %1605
  %v1607 = vsel %vm501, %v1603, -inf
  %1608 = vmax.xlane.f32.xlu0 %v1607
  %v1609 = vpop.xlane.xlu0 %1608
  %v1610 = vsub.f32 %v1602, %v1606
  %v1611 = vsub.f32 %v1603, %v1609
  %v1612 = vmul.f32 %v1610, 1.442695
  %v1613 = vpow.pop %v1612
  %v1614 = vmul.f32 %v1611, 1.442695
  %v1615 = vpow.pop %v1614
  %v1616 = vsel %vm501, %v1613, 0.0
  %1617 = vadd.xlane.f32.xlu0 %v1616
  %v1618 = vpop.xlane.xlu0 %1617
  %v1619 = vsel %vm501, %v1615, 0.0
  %1620 = vadd.xlane.f32.xlu0 %v1619
  %v1621 = vpop.xlane.xlu0 %1620
  %v1622 = vrcp.pop %v1618
  %v1623 = vrcp.pop %v1621
  %v1624 = vmul.f32 %v1613, %v1622
  %v1625 = vmul.f32 %v1615, %v1623
  %v1626 = vpack.c.bf16 %v1625, %v1624
  %v1627 = vpack.c.bf16 %v1548, %v1545
  %v1629 = vsel %vm501, %v1626, 0
  %1631 = vmatprep.subr.bf16.mxu0 0
  %1632 = vmatpush1.bf16.msra.mxu0 %v1627
  %1633 = vmatprep.subr.bf16.mxu0 0
  %1634 = vmatpush1.bf16.msra.mxu0 0
  %1635 = vmatprep.subr.bf16.mxu0 0
  %1636 = vmatpush1.bf16.msra.mxu0 0
  %1637 = vmatprep.subr.bf16.mxu0 0
  %1638 = vmatpush1.bf16.msra.mxu0 0
  %1639 = vmatprep.subr.bf16.mxu0 0
  %1640 = vmatpush1.bf16.msra.mxu0 0
  %1641 = vmatprep.subr.bf16.mxu0 0
  %1642 = vmatpush1.bf16.msra.mxu0 0
  %1643 = vmatprep.subr.bf16.mxu0 0
  %1644 = vmatpush1.bf16.msra.mxu0 0
  %1645 = vmatprep.subr.bf16.mxu0 0
  %1646 = vmatpush1.bf16.msra.mxu0 0
  %1647 = vmatprep.subr.bf16.mxu0 0
  %1648 = vmatpush1.bf16.msra.mxu0 0
  %1649 = vmatprep.subr.bf16.mxu0 0
  %1650 = vmatpush1.bf16.msra.mxu0 0
  %1651 = vmatprep.subr.bf16.mxu0 0
  %1652 = vmatpush1.bf16.msra.mxu0 0
  %1653 = vmatprep.subr.bf16.mxu0 0
  %1654 = vmatpush1.bf16.msra.mxu0 0
  %1655 = vmatprep.subr.bf16.mxu0 0
  %1656 = vmatpush1.bf16.msra.mxu0 0
  %1657 = vmatprep.subr.bf16.mxu0 0
  %1658 = vmatpush1.bf16.msra.mxu0 0
  %1659 = vmatprep.subr.bf16.mxu0 0
  %1660 = vmatpush1.bf16.msra.mxu0 0
  %1661 = vmatprep.subr.bf16.mxu0 0
  %1662 = vmatpush1.bf16.msra.mxu0 0
  %1663 = vmatprep.mubr.bf16.mxu0 0
  %1664 = vmatmul.mubr.bf16.gmra.mrb[0].mxu0 %v1629
  %v1665 = vpop.f32.mrb[0].mxu0
  %v1666 = vadd.f32 0.0, %v1665
  %v1667 = vpop.f32.mrb[0].mxu0
  %v1668 = vpop.f32.mrb[0].mxu0
  %v1669 = vadd.f32 0.0, %v1668
  %v1670 = vpop.f32.mrb[0].mxu0
  %1671 = vdwg.mxu0
  %v1672 = vpack.c.bf16 %v1669, %v1666
  %s1673 = scalar_lea.vmem %s12, 16
  %v1674 = vld [vmem:[%s1673] sm:$0xf]
  %v1675 = vld [vmem:[%s1673 + $0x4] sm:$0xf]
  %s1676 = scalar_lea.vmem %s6, 48
  %v1677 = vld [vmem:[%s1676] sm:$0xf]
  %v1678 = vld [vmem:[%s1676 + $0x4] sm:$0xf]
  %v1679 = vld [vmem:[%s1676 + $0x8] sm:$0xf]
  %v1680 = vld [vmem:[%s1676 + $0xc] sm:$0xf]
  %s1681 = scalar_lea.vmem %s7, 3
  %v1682 = vld [vmem:[%s1681] sm:$0x1]
  %v1684 = vlaneseq
  %v1685 = vshrl.u32 %v1684, 7
  %v1686 = vsub.s32 0, %v1685
  %v1687 = vrot.slane %v1682, %v1686
  %v1693 = vunpack.c.l.b16 %v1677
  %v1694 = vunpack.c.l.b16 %v1678
  %v1695 = vunpack.c.l.b16 %v1679
  %v1696 = vunpack.c.l.b16 %v1680
  %v1697 = vpack.c.b16 %v1694, %v1693
  %v1698 = vpack.c.b16 %v1696, %v1695
  %1701 = vmatprep.subr.bf16.mxu0 0
  %1702 = vmatpush1.bf16.msra.mxu0 %v1697
  %1703 = vmatprep.subr.bf16.mxu0 0
  %1704 = vmatpush1.bf16.msra.mxu0 %v1698
  %1705 = vmatprep.subr.bf16.mxu0 0
  %1706 = vmatpush1.bf16.msra.mxu0 0
  %1707 = vmatprep.subr.bf16.mxu0 0
  %1708 = vmatpush1.bf16.msra.mxu0 0
  %1709 = vmatprep.subr.bf16.mxu0 0
  %1710 = vmatpush1.bf16.msra.mxu0 0
  %1711 = vmatprep.subr.bf16.mxu0 0
  %1712 = vmatpush1.bf16.msra.mxu0 0
  %1713 = vmatprep.subr.bf16.mxu0 0
  %1714 = vmatpush1.bf16.msra.mxu0 0
  %1715 = vmatprep.subr.bf16.mxu0 0
  %1716 = vmatpush1.bf16.msra.mxu0 0
  %1717 = vmatprep.subr.bf16.mxu0 0
  %1718 = vmatpush1.bf16.msra.mxu0 0
  %1719 = vmatprep.subr.bf16.mxu0 0
  %1720 = vmatpush1.bf16.msra.mxu0 0
  %1721 = vmatprep.subr.bf16.mxu0 0
  %1722 = vmatpush1.bf16.msra.mxu0 0
  %1723 = vmatprep.subr.bf16.mxu0 0
  %1724 = vmatpush1.bf16.msra.mxu0 0
  %1725 = vmatprep.subr.bf16.mxu0 0
  %1726 = vmatpush1.bf16.msra.mxu0 0
  %1727 = vmatprep.subr.bf16.mxu0 0
  %1728 = vmatpush1.bf16.msra.mxu0 0
  %1729 = vmatprep.subr.bf16.mxu0 0
  %1730 = vmatpush1.bf16.msra.mxu0 0
  %1731 = vmatprep.subr.bf16.mxu0 0
  %1732 = vmatpush1.bf16.msra.mxu0 0
  %1733 = vmatprep.mubr.bf16.mxu0 0
  %1734 = vmatmul.mubr.bf16.gmra.mrb[0].mxu0 %v1376
  %v1735 = vpop.f32.mrb[0].mxu0
  %v1736 = vadd.f32 %v1687, %v1735
  %v1737 = vpop.f32.mrb[0].mxu0
  %v1738 = vpop.f32.mrb[0].mxu0
  %v1739 = vadd.f32 %v1687, %v1738
  %v1740 = vpop.f32.mrb[0].mxu0
  %1741 = vdwg.mxu0
  %s1742 = scalar_lea.vmem %s8, 48
  %v1743 = vld [vmem:[%s1742] sm:$0xf]
  %v1744 = vld [vmem:[%s1742 + $0x4] sm:$0xf]
  %v1745 = vld [vmem:[%s1742 + $0x8] sm:$0xf]
  %v1746 = vld [vmem:[%s1742 + $0xc] sm:$0xf]
  %s1747 = scalar_lea.vmem %s9, 3
  %v1748 = vld [vmem:[%s1747] sm:$0x1]
  %v1750 = vlaneseq
  %v1751 = vshrl.u32 %v1750, 7
  %v1752 = vsub.s32 0, %v1751
  %v1753 = vrot.slane %v1748, %v1752
  %v1759 = vunpack.c.l.b16 %v1743
  %v1760 = vunpack.c.l.b16 %v1744
  %v1761 = vunpack.c.l.b16 %v1745
  %v1762 = vunpack.c.l.b16 %v1746
  %v1763 = vpack.c.b16 %v1760, %v1759
  %v1764 = vpack.c.b16 %v1762, %v1761
  %1767 = vmatprep.subr.bf16.mxu0 0
  %1768 = vmatpush1.bf16.msra.mxu0 %v1763
  %1769 = vmatprep.subr.bf16.mxu0 0
  %1770 = vmatpush1.bf16.msra.mxu0 %v1764
  %1771 = vmatprep.subr.bf16.mxu0 0
  %1772 = vmatpush1.bf16.msra.mxu0 0
  %1773 = vmatprep.subr.bf16.mxu0 0
  %1774 = vmatpush1.bf16.msra.mxu0 0
  %1775 = vmatprep.subr.bf16.mxu0 0
  %1776 = vmatpush1.bf16.msra.mxu0 0
  %1777 = vmatprep.subr.bf16.mxu0 0
  %1778 = vmatpush1.bf16.msra.mxu0 0
  %1779 = vmatprep.subr.bf16.mxu0 0
  %1780 = vmatpush1.bf16.msra.mxu0 0
  %1781 = vmatprep.subr.bf16.mxu0 0
  %1782 = vmatpush1.bf16.msra.mxu0 0
  %1783 = vmatprep.subr.bf16.mxu0 0
  %1784 = vmatpush1.bf16.msra.mxu0 0
  %1785 = vmatprep.subr.bf16.mxu0 0
  %1786 = vmatpush1.bf16.msra.mxu0 0
  %1787 = vmatprep.subr.bf16.mxu0 0
  %1788 = vmatpush1.bf16.msra.mxu0 0
  %1789 = vmatprep.subr.bf16.mxu0 0
  %1790 = vmatpush1.bf16.msra.mxu0 0
  %1791 = vmatprep.subr.bf16.mxu0 0
  %1792 = vmatpush1.bf16.msra.mxu0 0
  %1793 = vmatprep.subr.bf16.mxu0 0
  %1794 = vmatpush1.bf16.msra.mxu0 0
  %1795 = vmatprep.subr.bf16.mxu0 0
  %1796 = vmatpush1.bf16.msra.mxu0 0
  %1797 = vmatprep.subr.bf16.mxu0 0
  %1798 = vmatpush1.bf16.msra.mxu0 0
  %1799 = vmatprep.mubr.bf16.mxu0 0
  %1800 = vmatmul.mubr.bf16.gmra.mrb[0].mxu0 %v1376
  %v1801 = vpop.f32.mrb[0].mxu0
  %v1802 = vadd.f32 %v1753, %v1801
  %v1803 = vpop.f32.mrb[0].mxu0
  %v1804 = vpop.f32.mrb[0].mxu0
  %v1805 = vadd.f32 %v1753, %v1804
  %v1806 = vpop.f32.mrb[0].mxu0
  %1807 = vdwg.mxu0
  %s1808 = scalar_lea.vmem %s10, 48
  %v1809 = vld [vmem:[%s1808] sm:$0xf]
  %v1810 = vld [vmem:[%s1808 + $0x4] sm:$0xf]
  %v1811 = vld [vmem:[%s1808 + $0x8] sm:$0xf]
  %v1812 = vld [vmem:[%s1808 + $0xc] sm:$0xf]
  %s1813 = scalar_lea.vmem %s11, 3
  %v1814 = vld [vmem:[%s1813] sm:$0x1]
  %v1816 = vlaneseq
  %v1817 = vshrl.u32 %v1816, 7
  %v1818 = vsub.s32 0, %v1817
  %v1819 = vrot.slane %v1814, %v1818
  %v1825 = vunpack.c.l.b16 %v1809
  %v1826 = vunpack.c.l.b16 %v1810
  %v1827 = vunpack.c.l.b16 %v1811
  %v1828 = vunpack.c.l.b16 %v1812
  %v1829 = vpack.c.b16 %v1826, %v1825
  %v1830 = vpack.c.b16 %v1828, %v1827
  %1833 = vmatprep.subr.bf16.mxu0 0
  %1834 = vmatpush1.bf16.msra.mxu0 %v1829
  %1835 = vmatprep.subr.bf16.mxu0 0
  %1836 = vmatpush1.bf16.msra.mxu0 %v1830
  %1837 = vmatprep.subr.bf16.mxu0 0
  %1838 = vmatpush1.bf16.msra.mxu0 0
  %1839 = vmatprep.subr.bf16.mxu0 0
  %1840 = vmatpush1.bf16.msra.mxu0 0
  %1841 = vmatprep.subr.bf16.mxu0 0
  %1842 = vmatpush1.bf16.msra.mxu0 0
  %1843 = vmatprep.subr.bf16.mxu0 0
  %1844 = vmatpush1.bf16.msra.mxu0 0
  %1845 = vmatprep.subr.bf16.mxu0 0
  %1846 = vmatpush1.bf16.msra.mxu0 0
  %1847 = vmatprep.subr.bf16.mxu0 0
  %1848 = vmatpush1.bf16.msra.mxu0 0
  %1849 = vmatprep.subr.bf16.mxu0 0
  %1850 = vmatpush1.bf16.msra.mxu0 0
  %1851 = vmatprep.subr.bf16.mxu0 0
  %1852 = vmatpush1.bf16.msra.mxu0 0
  %1853 = vmatprep.subr.bf16.mxu0 0
  %1854 = vmatpush1.bf16.msra.mxu0 0
  %1855 = vmatprep.subr.bf16.mxu0 0
  %1856 = vmatpush1.bf16.msra.mxu0 0
  %1857 = vmatprep.subr.bf16.mxu0 0
  %1858 = vmatpush1.bf16.msra.mxu0 0
  %1859 = vmatprep.subr.bf16.mxu0 0
  %1860 = vmatpush1.bf16.msra.mxu0 0
  %1861 = vmatprep.subr.bf16.mxu0 0
  %1862 = vmatpush1.bf16.msra.mxu0 0
  %1863 = vmatprep.subr.bf16.mxu0 0
  %1864 = vmatpush1.bf16.msra.mxu0 0
  %1865 = vmatprep.mubr.bf16.mxu0 0
  %1866 = vmatmul.mubr.bf16.gmra.mrb[0].mxu0 %v1376
  %v1867 = vpop.f32.mrb[0].mxu0
  %v1868 = vadd.f32 %v1819, %v1867
  %v1869 = vpop.f32.mrb[0].mxu0
  %v1870 = vpop.f32.mrb[0].mxu0
  %v1871 = vadd.f32 %v1819, %v1870
  %v1872 = vpop.f32.mrb[0].mxu0
  %1873 = vdwg.mxu0
  %v1874 = vpack.c.bf16 %v1739, %v1736
  %v1875 = vpack.c.bf16 %v1805, %v1802
  %v1877 = vsel %vm501, %v1874, 0
  %v1880 = vsel %vm501, %v1875, 0
  %1882 = vmatprep.subr.bf16.mxu0 0
  %1883 = vmatpush1.bf16.xpose.msra.mxu0 %v1880
  %1884 = vmatprep.subr.bf16.mxu0 0
  %1885 = vmatpush1.bf16.xpose.msra.mxu0 0
  %1886 = vmatprep.subr.bf16.mxu0 0
  %1887 = vmatpush1.bf16.xpose.msra.mxu0 0
  %1888 = vmatprep.subr.bf16.mxu0 0
  %1889 = vmatpush1.bf16.xpose.msra.mxu0 0
  %1890 = vmatprep.subr.bf16.mxu0 0
  %1891 = vmatpush1.bf16.xpose.msra.mxu0 0
  %1892 = vmatprep.subr.bf16.mxu0 0
  %1893 = vmatpush1.bf16.xpose.msra.mxu0 0
  %1894 = vmatprep.subr.bf16.mxu0 0
  %1895 = vmatpush1.bf16.xpose.msra.mxu0 0
  %1896 = vmatprep.subr.bf16.mxu0 0
  %1897 = vmatpush1.bf16.xpose.msra.mxu0 0
  %1898 = vmatprep.subr.bf16.mxu0 0
  %1899 = vmatpush1.bf16.xpose.msra.mxu0 0
  %1900 = vmatprep.subr.bf16.mxu0 0
  %1901 = vmatpush1.bf16.xpose.msra.mxu0 0
  %1902 = vmatprep.subr.bf16.mxu0 0
  %1903 = vmatpush1.bf16.xpose.msra.mxu0 0
  %1904 = vmatprep.subr.bf16.mxu0 0
  %1905 = vmatpush1.bf16.xpose.msra.mxu0 0
  %1906 = vmatprep.subr.bf16.mxu0 0
  %1907 = vmatpush1.bf16.xpose.msra.mxu0 0
  %1908 = vmatprep.subr.bf16.mxu0 0
  %1909 = vmatpush1.bf16.xpose.msra.mxu0 0
  %1910 = vmatprep.subr.bf16.mxu0 0
  %1911 = vmatpush1.bf16.xpose.msra.mxu0 0
  %1912 = vmatprep.subr.bf16.mxu0 0
  %1913 = vmatpush1.bf16.xpose.msra.mxu0 0
  %1914 = vmatprep.mubr.bf16.mxu0 0
  %1915 = vmatmul.mubr.bf16.gmra.mrb[0].mxu0 %v1877
  %v1916 = vpop.f32.mrb[0].mxu0
  %v1917 = vadd.f32 0.0, %v1916
  %v1918 = vpop.f32.mrb[0].mxu0
  %v1919 = vpop.f32.mrb[0].mxu0
  %v1920 = vadd.f32 0.0, %v1919
  %v1921 = vpop.f32.mrb[0].mxu0
  %1922 = vdwg.mxu0
  %v1923 = vmul.f32 %v1917, 0.25
  %v1924 = vmul.f32 %v1920, 0.25
  %v1925 = vadd.f32 %v1923, %v255
  %v1926 = vadd.f32 %v1924, %v256
  %v1927 = vsel %vm501, %v1925, -inf
  %1928 = vmax.xlane.f32.xlu0 %v1927
  %v1929 = vpop.xlane.xlu0 %1928
  %v1930 = vsel %vm501, %v1926, -inf
  %1931 = vmax.xlane.f32.xlu0 %v1930
  %v1932 = vpop.xlane.xlu0 %1931
  %v1933 = vsub.f32 %v1925, %v1929
  %v1934 = vsub.f32 %v1926, %v1932
  %v1935 = vmul.f32 %v1933, 1.442695
  %v1936 = vpow.pop %v1935
  %v1937 = vmul.f32 %v1934, 1.442695
  %v1938 = vpow.pop %v1937
  %v1939 = vsel %vm501, %v1936, 0.0
  %1940 = vadd.xlane.f32.xlu0 %v1939
  %v1941 = vpop.xlane.xlu0 %1940
  %v1942 = vsel %vm501, %v1938, 0.0
  %1943 = vadd.xlane.f32.xlu0 %v1942
  %v1944 = vpop.xlane.xlu0 %1943
  %v1945 = vrcp.pop %v1941
  %v1946 = vrcp.pop %v1944
  %v1947 = vmul.f32 %v1936, %v1945
  %v1948 = vmul.f32 %v1938, %v1946
  %v1949 = vpack.c.bf16 %v1948, %v1947
  %v1950 = vpack.c.bf16 %v1871, %v1868
  %v1952 = vsel %vm501, %v1949, 0
  %1954 = vmatprep.subr.bf16.mxu0 0
  %1955 = vmatpush1.bf16.msra.mxu0 %v1950
  %1956 = vmatprep.subr.bf16.mxu0 0
  %1957 = vmatpush1.bf16.msra.mxu0 0
  %1958 = vmatprep.subr.bf16.mxu0 0
  %1959 = vmatpush1.bf16.msra.mxu0 0
  %1960 = vmatprep.subr.bf16.mxu0 0
  %1961 = vmatpush1.bf16.msra.mxu0 0
  %1962 = vmatprep.subr.bf16.mxu0 0
  %1963 = vmatpush1.bf16.msra.mxu0 0
  %1964 = vmatprep.subr.bf16.mxu0 0
  %1965 = vmatpush1.bf16.msra.mxu0 0
  %1966 = vmatprep.subr.bf16.mxu0 0
  %1967 = vmatpush1.bf16.msra.mxu0 0
  %1968 = vmatprep.subr.bf16.mxu0 0
  %1969 = vmatpush1.bf16.msra.mxu0 0
  %1970 = vmatprep.subr.bf16.mxu0 0
  %1971 = vmatpush1.bf16.msra.mxu0 0
  %1972 = vmatprep.subr.bf16.mxu0 0
  %1973 = vmatpush1.bf16.msra.mxu0 0
  %1974 = vmatprep.subr.bf16.mxu0 0
  %1975 = vmatpush1.bf16.msra.mxu0 0
  %1976 = vmatprep.subr.bf16.mxu0 0
  %1977 = vmatpush1.bf16.msra.mxu0 0
  %1978 = vmatprep.subr.bf16.mxu0 0
  %1979 = vmatpush1.bf16.msra.mxu0 0
  %1980 = vmatprep.subr.bf16.mxu0 0
  %1981 = vmatpush1.bf16.msra.mxu0 0
  %1982 = vmatprep.subr.bf16.mxu0 0
  %1983 = vmatpush1.bf16.msra.mxu0 0
  %1984 = vmatprep.subr.bf16.mxu0 0
  %1985 = vmatpush1.bf16.msra.mxu0 0
  %1986 = vmatprep.mubr.bf16.mxu0 0
  %1987 = vmatmul.mubr.bf16.gmra.mrb[0].mxu0 %v1952
  %v1988 = vpop.f32.mrb[0].mxu0
  %v1989 = vadd.f32 0.0, %v1988
  %v1990 = vpop.f32.mrb[0].mxu0
  %v1991 = vpop.f32.mrb[0].mxu0
  %v1992 = vadd.f32 0.0, %v1991
  %v1993 = vpop.f32.mrb[0].mxu0
  %1994 = vdwg.mxu0
  %v1995 = vpack.c.bf16 %v1992, %v1989
  %s1996 = scalar_lea.vmem %s12, 24
  %v1997 = vld [vmem:[%s1996] sm:$0xf]
  %v1998 = vld [vmem:[%s1996 + $0x4] sm:$0xf]
  %v2001 = vunpack.c.l.b16 %v1997
  %v2002 = vunpack.c.l.b16 %v1998
  %v2003 = vpack.c.b16 %v2002, %v2001
  %v2006 = vsel %vm501, %v1995, 0
  %2008 = vmatprep.subr.bf16.mxu0 0
  %2009 = vmatpush1.bf16.msra.mxu0 %v2003
  %2010 = vmatprep.subr.bf16.mxu0 0
  %2011 = vmatpush1.bf16.msra.mxu0 0
  %2012 = vmatprep.subr.bf16.mxu0 0
  %2013 = vmatpush1.bf16.msra.mxu0 0
  %2014 = vmatprep.subr.bf16.mxu0 0
  %2015 = vmatpush1.bf16.msra.mxu0 0
  %2016 = vmatprep.subr.bf16.mxu0 0
  %2017 = vmatpush1.bf16.msra.mxu0 0
  %2018 = vmatprep.subr.bf16.mxu0 0
  %2019 = vmatpush1.bf16.msra.mxu0 0
  %2020 = vmatprep.subr.bf16.mxu0 0
  %2021 = vmatpush1.bf16.msra.mxu0 0
  %2022 = vmatprep.subr.bf16.mxu0 0
  %2023 = vmatpush1.bf16.msra.mxu0 0
  %2024 = vmatprep.subr.bf16.mxu0 0
  %2025 = vmatpush1.bf16.msra.mxu0 0
  %2026 = vmatprep.subr.bf16.mxu0 0
  %2027 = vmatpush1.bf16.msra.mxu0 0
  %2028 = vmatprep.subr.bf16.mxu0 0
  %2029 = vmatpush1.bf16.msra.mxu0 0
  %2030 = vmatprep.subr.bf16.mxu0 0
  %2031 = vmatpush1.bf16.msra.mxu0 0
  %2032 = vmatprep.subr.bf16.mxu0 0
  %2033 = vmatpush1.bf16.msra.mxu0 0
  %2034 = vmatprep.subr.bf16.mxu0 0
  %2035 = vmatpush1.bf16.msra.mxu0 0
  %2036 = vmatprep.subr.bf16.mxu0 0
  %2037 = vmatpush1.bf16.msra.mxu0 0
  %2038 = vmatprep.subr.bf16.mxu0 0
  %2039 = vmatpush1.bf16.msra.mxu0 0
  %2040 = vmatprep.mubr.bf16.mxu0 0
  %2041 = vmatmul.mubr.bf16.gmra.mrb[0].mxu0 %v2006
  %v2042 = vpop.f32.mrb[0].mxu0
  %v2043 = vadd.f32 0.0, %v2042
  %v2044 = vpop.f32.mrb[0].mxu0
  %v2045 = vpop.f32.mrb[0].mxu0
  %v2046 = vadd.f32 0.0, %v2045
  %v2047 = vpop.f32.mrb[0].mxu0
  %2048 = vdwg.mxu0
  %v2051 = vunpack.c.l.b16 %v1674
  %v2052 = vunpack.c.l.b16 %v1675
  %v2053 = vpack.c.b16 %v2052, %v2051
  %v2056 = vsel %vm501, %v1672, 0
  %2058 = vmatprep.subr.bf16.mxu0 0
  %2059 = vmatpush1.bf16.msra.mxu0 %v2053
  %2060 = vmatprep.subr.bf16.mxu0 0
  %2061 = vmatpush1.bf16.msra.mxu0 0
  %2062 = vmatprep.subr.bf16.mxu0 0
  %2063 = vmatpush1.bf16.msra.mxu0 0
  %2064 = vmatprep.subr.bf16.mxu0 0
  %2065 = vmatpush1.bf16.msra.mxu0 0
  %2066 = vmatprep.subr.bf16.mxu0 0
  %2067 = vmatpush1.bf16.msra.mxu0 0
  %2068 = vmatprep.subr.bf16.mxu0 0
  %2069 = vmatpush1.bf16.msra.mxu0 0
  %2070 = vmatprep.subr.bf16.mxu0 0
  %2071 = vmatpush1.bf16.msra.mxu0 0
  %2072 = vmatprep.subr.bf16.mxu0 0
  %2073 = vmatpush1.bf16.msra.mxu0 0
  %2074 = vmatprep.subr.bf16.mxu0 0
  %2075 = vmatpush1.bf16.msra.mxu0 0
  %2076 = vmatprep.subr.bf16.mxu0 0
  %2077 = vmatpush1.bf16.msra.mxu0 0
  %2078 = vmatprep.subr.bf16.mxu0 0
  %2079 = vmatpush1.bf16.msra.mxu0 0
  %2080 = vmatprep.subr.bf16.mxu0 0
  %2081 = vmatpush1.bf16.msra.mxu0 0
  %2082 = vmatprep.subr.bf16.mxu0 0
  %2083 = vmatpush1.bf16.msra.mxu0 0
  %2084 = vmatprep.subr.bf16.mxu0 0
  %2085 = vmatpush1.bf16.msra.mxu0 0
  %2086 = vmatprep.subr.bf16.mxu0 0
  %2087 = vmatpush1.bf16.msra.mxu0 0
  %2088 = vmatprep.subr.bf16.mxu0 0
  %2089 = vmatpush1.bf16.msra.mxu0 0
  %2090 = vmatprep.mubr.bf16.mxu0 0
  %2091 = vmatmul.mubr.bf16.gmra.mrb[0].mxu0 %v2056
  %v2092 = vpop.f32.mrb[0].mxu0
  %v2093 = vadd.f32 %v2043, %v2092
  %v2094 = vpop.f32.mrb[0].mxu0
  %v2095 = vpop.f32.mrb[0].mxu0
  %v2096 = vadd.f32 %v2046, %v2095
  %v2097 = vpop.f32.mrb[0].mxu0
  %2098 = vdwg.mxu0
  %v2099 = vadd.f32 %v1301, %v2093
  %v2100 = vadd.f32 %v1302, %v2096
  %s2101 = scalar_lea.vmem %s13, 1
  %v2102 = vld [vmem:[%s2101] sm:$0x1]
  %v2104 = vlaneseq
  %v2105 = vshrl.u32 %v2104, 7
  %v2106 = vsub.s32 0, %v2105
  %v2107 = vrot.slane %v2102, %v2106
  %v2109 = vadd.f32 %v2099, %v2107
  %v2110 = vadd.f32 %v2100, %v2107
  %s2111 = scalar_lea.vmem %s14, 1
  %v2112 = vld [vmem:[%s2111] sm:$0x1]
  %s2113 = scalar_lea.vmem %s15, 1
  %v2114 = vld [vmem:[%s2113] sm:$0x1]
  %v2115 = vsel %vm259, %v2109, 0.0
  %2116 = vadd.xlane.f32.xlu0 %v2115
  %v2117 = vpop.xlane.xlu0 %2116
  %v2118 = vsel %vm259, %v2110, 0.0
  %2119 = vadd.xlane.f32.xlu0 %v2118
  %v2120 = vpop.xlane.xlu0 %2119
  %v2121 = vmul.f32 %v2117, %v266
  %v2122 = vmul.f32 %v2120, %v266
  %v2123 = vsub.f32 %v2109, %v2121
  %v2124 = vsub.f32 %v2110, %v2122
  %v2125 = vmul.f32 %v2123, %v2123
  %v2126 = vmul.f32 %v2124, %v2124
  %v2127 = vsel %vm259, %v2125, 0.0
  %2128 = vadd.xlane.f32.xlu0 %v2127
  %v2129 = vpop.xlane.xlu0 %2128
  %v2130 = vsel %vm259, %v2126, 0.0
  %2131 = vadd.xlane.f32.xlu0 %v2130
  %v2132 = vpop.xlane.xlu0 %2131
  %v2133 = vmul.f32 %v2129, %v266
  %v2134 = vmul.f32 %v2132, %v266
  %v2135 = vadd.f32 %v2133, 1e-06
  %v2136 = vadd.f32 %v2134, 1e-06
  %v2137 = vrsqrt.pop %v2135
  %v2138 = vrsqrt.pop %v2136
  %v2139 = vmul.f32 %v2123, %v2137
  %v2140 = vmul.f32 %v2124, %v2138
  %v2142 = vlaneseq
  %v2143 = vshrl.u32 %v2142, 7
  %v2144 = vsub.s32 0, %v2143
  %v2145 = vrot.slane %v2112, %v2144
  %v2147 = vmul.f32 %v2139, %v2145
  %v2148 = vmul.f32 %v2140, %v2145
  %v2150 = vlaneseq
  %v2151 = vshrl.u32 %v2150, 7
  %v2152 = vsub.s32 0, %v2151
  %v2153 = vrot.slane %v2114, %v2152
  %v2155 = vadd.f32 %v2147, %v2153
  %v2156 = vadd.f32 %v2148, %v2153
  %v2157 = vpack.c.bf16 %v2156, %v2155
  %s2158 = scalar_lea.vmem %s16, 16
  %v2159 = vld [vmem:[%s2158] sm:$0xf]
  %v2160 = vld [vmem:[%s2158 + $0x4] sm:$0xf]
  %v2161 = vld [vmem:[%s2158 + $0x8] sm:$0xf]
  %v2162 = vld [vmem:[%s2158 + $0xc] sm:$0xf]
  %s2163 = scalar_lea.vmem %s17, 1
  %v2164 = vld [vmem:[%s2163] sm:$0x1]
  %v2166 = vlaneseq
  %v2167 = vshrl.u32 %v2166, 7
  %v2168 = vsub.s32 0, %v2167
  %v2169 = vrot.slane %v2164, %v2168
  %v2175 = vunpack.c.l.b16 %v2159
  %v2176 = vunpack.c.l.b16 %v2160
  %v2177 = vunpack.c.l.b16 %v2161
  %v2178 = vunpack.c.l.b16 %v2162
  %v2179 = vpack.c.b16 %v2176, %v2175
  %v2180 = vpack.c.b16 %v2178, %v2177
  %v2184 = vsel %vm259, %v2157, 0
  %2186 = vmatprep.subr.bf16.mxu0 0
  %2187 = vmatpush1.bf16.msra.mxu0 %v2179
  %2188 = vmatprep.subr.bf16.mxu0 0
  %2189 = vmatpush1.bf16.msra.mxu0 %v2180
  %2190 = vmatprep.subr.bf16.mxu0 0
  %2191 = vmatpush1.bf16.msra.mxu0 0
  %2192 = vmatprep.subr.bf16.mxu0 0
  %2193 = vmatpush1.bf16.msra.mxu0 0
  %2194 = vmatprep.subr.bf16.mxu0 0
  %2195 = vmatpush1.bf16.msra.mxu0 0
  %2196 = vmatprep.subr.bf16.mxu0 0
  %2197 = vmatpush1.bf16.msra.mxu0 0
  %2198 = vmatprep.subr.bf16.mxu0 0
  %2199 = vmatpush1.bf16.msra.mxu0 0
  %2200 = vmatprep.subr.bf16.mxu0 0
  %2201 = vmatpush1.bf16.msra.mxu0 0
  %2202 = vmatprep.subr.bf16.mxu0 0
  %2203 = vmatpush1.bf16.msra.mxu0 0
  %2204 = vmatprep.subr.bf16.mxu0 0
  %2205 = vmatpush1.bf16.msra.mxu0 0
  %2206 = vmatprep.subr.bf16.mxu0 0
  %2207 = vmatpush1.bf16.msra.mxu0 0
  %2208 = vmatprep.subr.bf16.mxu0 0
  %2209 = vmatpush1.bf16.msra.mxu0 0
  %2210 = vmatprep.subr.bf16.mxu0 0
  %2211 = vmatpush1.bf16.msra.mxu0 0
  %2212 = vmatprep.subr.bf16.mxu0 0
  %2213 = vmatpush1.bf16.msra.mxu0 0
  %2214 = vmatprep.subr.bf16.mxu0 0
  %2215 = vmatpush1.bf16.msra.mxu0 0
  %2216 = vmatprep.subr.bf16.mxu0 0
  %2217 = vmatpush1.bf16.msra.mxu0 0
  %2218 = vmatprep.mubr.bf16.mxu0 0
  %2219 = vmatmul.mubr.bf16.gmra.mrb[0].mxu0 %v2184
  %v2220 = vpop.f32.mrb[0].mxu0
  %v2221 = vadd.f32 %v2169, %v2220
  %v2222 = vpop.f32.mrb[0].mxu0
  %v2223 = vpop.f32.mrb[0].mxu0
  %v2224 = vadd.f32 %v2169, %v2223
  %v2225 = vpop.f32.mrb[0].mxu0
  %2226 = vdwg.mxu0
  %v2227 = vmul.f32 %v2221, %v2221
  %v2228 = vmul.f32 %v2224, %v2224
  %v2229 = vmul.f32 %v2221, %v2227
  %v2230 = vmul.f32 %v2224, %v2228
  %v2231 = vmul.f32 %v2229, 0.044715
  %v2232 = vmul.f32 %v2230, 0.044715
  %v2233 = vadd.f32 %v2221, %v2231
  %v2234 = vadd.f32 %v2224, %v2232
  %v2235 = vmul.f32 %v2233, 0.7978846
  %v2236 = vmul.f32 %v2234, 0.7978846
  %v2237 = vtanh.pop %v2235
  %v2238 = vtanh.pop %v2236
  %v2239 = vadd.f32 %v2237, 1.0
  %v2240 = vadd.f32 %v2238, 1.0
  %v2241 = vmul.f32 %v2239, 0.5
  %v2242 = vmul.f32 %v2240, 0.5
  %v2243 = vmul.f32 %v2221, %v2241
  %v2244 = vmul.f32 %v2224, %v2242
  %v2245 = vpack.c.bf16 %v2244, %v2243
  %s2246 = scalar_lea.vmem %s18, 64
  %v2247 = vld [vmem:[%s2246] sm:$0xf]
  %v2248 = vld [vmem:[%s2246 + $0x4] sm:$0xf]
  %v2249 = vld [vmem:[%s2246 + $0x8] sm:$0xf]
  %v2250 = vld [vmem:[%s2246 + $0xc] sm:$0xf]
  %v2251 = vld [vmem:[%s2246 + $0x10] sm:$0xf]
  %v2252 = vld [vmem:[%s2246 + $0x14] sm:$0xf]
  %v2253 = vld [vmem:[%s2246 + $0x18] sm:$0xf]
  %v2254 = vld [vmem:[%s2246 + $0x1c] sm:$0xf]
  %v2255 = vld [vmem:[%s2246 + $0x20] sm:$0xf]
  %v2256 = vld [vmem:[%s2246 + $0x24] sm:$0xf]
  %v2257 = vld [vmem:[%s2246 + $0x28] sm:$0xf]
  %v2258 = vld [vmem:[%s2246 + $0x2c] sm:$0xf]
  %v2259 = vld [vmem:[%s2246 + $0x30] sm:$0xf]
  %v2260 = vld [vmem:[%s2246 + $0x34] sm:$0xf]
  %v2261 = vld [vmem:[%s2246 + $0x38] sm:$0xf]
  %v2262 = vld [vmem:[%s2246 + $0x3c] sm:$0xf]
  %s2263 = scalar_lea.vmem %s19, 1
  %v2264 = vld [vmem:[%s2263] sm:$0x1]
  %v2266 = vlaneseq
  %v2267 = vshrl.u32 %v2266, 7
  %v2268 = vsub.s32 0, %v2267
  %v2269 = vrot.slane %v2264, %v2268
  %v2287 = vunpack.c.l.b16 %v2247
  %v2288 = vunpack.c.l.b16 %v2248
  %v2289 = vunpack.c.l.b16 %v2249
  %v2290 = vunpack.c.l.b16 %v2250
  %v2291 = vunpack.c.l.b16 %v2251
  %v2292 = vunpack.c.l.b16 %v2252
  %v2293 = vunpack.c.l.b16 %v2253
  %v2294 = vunpack.c.l.b16 %v2254
  %v2295 = vunpack.c.l.b16 %v2255
  %v2296 = vunpack.c.l.b16 %v2256
  %v2297 = vunpack.c.l.b16 %v2257
  %v2298 = vunpack.c.l.b16 %v2258
  %v2299 = vunpack.c.l.b16 %v2259
  %v2300 = vunpack.c.l.b16 %v2260
  %v2301 = vunpack.c.l.b16 %v2261
  %v2302 = vunpack.c.l.b16 %v2262
  %v2303 = vpack.c.b16 %v2288, %v2287
  %v2304 = vpack.c.b16 %v2290, %v2289
  %v2305 = vpack.c.b16 %v2292, %v2291
  %v2306 = vpack.c.b16 %v2294, %v2293
  %v2307 = vpack.c.b16 %v2296, %v2295
  %v2308 = vpack.c.b16 %v2298, %v2297
  %v2309 = vpack.c.b16 %v2300, %v2299
  %v2310 = vpack.c.b16 %v2302, %v2301
  %2319 = vmatprep.subr.bf16.mxu0 0
  %2320 = vmatpush1.bf16.msra.mxu0 %v2303
  %2321 = vmatprep.subr.bf16.mxu0 0
  %2322 = vmatpush1.bf16.msra.mxu0 %v2304
  %2323 = vmatprep.subr.bf16.mxu0 0
  %2324 = vmatpush1.bf16.msra.mxu0 %v2305
  %2325 = vmatprep.subr.bf16.mxu0 0
  %2326 = vmatpush1.bf16.msra.mxu0 %v2306
  %2327 = vmatprep.subr.bf16.mxu0 0
  %2328 = vmatpush1.bf16.msra.mxu0 %v2307
  %2329 = vmatprep.subr.bf16.mxu0 0
  %2330 = vmatpush1.bf16.msra.mxu0 %v2308
  %2331 = vmatprep.subr.bf16.mxu0 0
  %2332 = vmatpush1.bf16.msra.mxu0 %v2309
  %2333 = vmatprep.subr.bf16.mxu0 0
  %2334 = vmatpush1.bf16.msra.mxu0 %v2310
  %2335 = vmatprep.subr.bf16.mxu0 0
  %2336 = vmatpush1.bf16.msra.mxu0 0
  %2337 = vmatprep.subr.bf16.mxu0 0
  %2338 = vmatpush1.bf16.msra.mxu0 0
  %2339 = vmatprep.subr.bf16.mxu0 0
  %2340 = vmatpush1.bf16.msra.mxu0 0
  %2341 = vmatprep.subr.bf16.mxu0 0
  %2342 = vmatpush1.bf16.msra.mxu0 0
  %2343 = vmatprep.subr.bf16.mxu0 0
  %2344 = vmatpush1.bf16.msra.mxu0 0
  %2345 = vmatprep.subr.bf16.mxu0 0
  %2346 = vmatpush1.bf16.msra.mxu0 0
  %2347 = vmatprep.subr.bf16.mxu0 0
  %2348 = vmatpush1.bf16.msra.mxu0 0
  %2349 = vmatprep.subr.bf16.mxu0 0
  %2350 = vmatpush1.bf16.msra.mxu0 0
  %2351 = vmatprep.mubr.bf16.mxu0 0
  %2352 = vmatmul.mubr.bf16.gmra.mrb[0].mxu0 %v2245
  %v2353 = vpop.f32.mrb[0].mxu0
  %v2354 = vadd.f32 %v2269, %v2353
  %v2355 = vpop.f32.mrb[0].mxu0
  %v2356 = vpop.f32.mrb[0].mxu0
  %v2357 = vadd.f32 %v2269, %v2356
  %v2358 = vpop.f32.mrb[0].mxu0
  %2359 = vdwg.mxu0
  %v2360 = vadd.f32 %v2109, %v2354
  %v2361 = vadd.f32 %v2110, %v2357
  %v2362 = vld [vmem:[%s20] sm:$0x1]
  %v2363 = vld [vmem:[%s21] sm:$0x1]
  %v2364 = vsel %vm259, %v2360, 0.0
  %2365 = vadd.xlane.f32.xlu0 %v2364
  %v2366 = vpop.xlane.xlu0 %2365
  %v2367 = vsel %vm259, %v2361, 0.0
  %2368 = vadd.xlane.f32.xlu0 %v2367
  %v2369 = vpop.xlane.xlu0 %2368
  %v2370 = vmul.f32 %v2366, %v266
  %v2371 = vmul.f32 %v2369, %v266
  %v2372 = vsub.f32 %v2360, %v2370
  %v2373 = vsub.f32 %v2361, %v2371
  %v2374 = vmul.f32 %v2372, %v2372
  %v2375 = vmul.f32 %v2373, %v2373
  %v2376 = vsel %vm259, %v2374, 0.0
  %2377 = vadd.xlane.f32.xlu0 %v2376
  %v2378 = vpop.xlane.xlu0 %2377
  %v2379 = vsel %vm259, %v2375, 0.0
  %2380 = vadd.xlane.f32.xlu0 %v2379
  %v2381 = vpop.xlane.xlu0 %2380
  %v2382 = vmul.f32 %v2378, %v266
  %v2383 = vmul.f32 %v2381, %v266
  %v2384 = vadd.f32 %v2382, 1e-06
  %v2385 = vadd.f32 %v2383, 1e-06
  %v2386 = vrsqrt.pop %v2384
  %v2387 = vrsqrt.pop %v2385
  %v2388 = vmul.f32 %v2372, %v2386
  %v2389 = vmul.f32 %v2373, %v2387
  %v2391 = vlaneseq
  %v2392 = vshrl.u32 %v2391, 7
  %v2393 = vsub.s32 0, %v2392
  %v2394 = vrot.slane %v2362, %v2393
  %v2396 = vmul.f32 %v2388, %v2394
  %v2397 = vmul.f32 %v2389, %v2394
  %v2399 = vlaneseq
  %v2400 = vshrl.u32 %v2399, 7
  %v2401 = vsub.s32 0, %v2400
  %v2402 = vrot.slane %v2363, %v2401
  %v2404 = vadd.f32 %v2396, %v2402
  %v2405 = vadd.f32 %v2397, %v2402
  %v2406 = vpack.c.bf16 %v2405, %v2404
  %v2407 = vld [vmem:[%s22] sm:$0xf]
  %v2408 = vld [vmem:[%s22 + $0x4] sm:$0xf]
  %v2409 = vld [vmem:[%s22 + $0x8] sm:$0xf]
  %v2410 = vld [vmem:[%s22 + $0xc] sm:$0xf]
  %v2411 = vld [vmem:[%s23] sm:$0x1]
  %v2413 = vlaneseq
  %v2414 = vshrl.u32 %v2413, 7
  %v2415 = vsub.s32 0, %v2414
  %v2416 = vrot.slane %v2411, %v2415
  %v2422 = vunpack.c.l.b16 %v2407
  %v2423 = vunpack.c.l.b16 %v2408
  %v2424 = vunpack.c.l.b16 %v2409
  %v2425 = vunpack.c.l.b16 %v2410
  %v2426 = vpack.c.b16 %v2423, %v2422
  %v2427 = vpack.c.b16 %v2425, %v2424
  %v2431 = vsel %vm259, %v2406, 0
  %2433 = vmatprep.subr.bf16.mxu0 0
  %2434 = vmatpush1.bf16.msra.mxu0 %v2426
  %2435 = vmatprep.subr.bf16.mxu0 0
  %2436 = vmatpush1.bf16.msra.mxu0 %v2427
  %2437 = vmatprep.subr.bf16.mxu0 0
  %2438 = vmatpush1.bf16.msra.mxu0 0
  %2439 = vmatprep.subr.bf16.mxu0 0
  %2440 = vmatpush1.bf16.msra.mxu0 0
  %2441 = vmatprep.subr.bf16.mxu0 0
  %2442 = vmatpush1.bf16.msra.mxu0 0
  %2443 = vmatprep.subr.bf16.mxu0 0
  %2444 = vmatpush1.bf16.msra.mxu0 0
  %2445 = vmatprep.subr.bf16.mxu0 0
  %2446 = vmatpush1.bf16.msra.mxu0 0
  %2447 = vmatprep.subr.bf16.mxu0 0
  %2448 = vmatpush1.bf16.msra.mxu0 0
  %2449 = vmatprep.subr.bf16.mxu0 0
  %2450 = vmatpush1.bf16.msra.mxu0 0
  %2451 = vmatprep.subr.bf16.mxu0 0
  %2452 = vmatpush1.bf16.msra.mxu0 0
  %2453 = vmatprep.subr.bf16.mxu0 0
  %2454 = vmatpush1.bf16.msra.mxu0 0
  %2455 = vmatprep.subr.bf16.mxu0 0
  %2456 = vmatpush1.bf16.msra.mxu0 0
  %2457 = vmatprep.subr.bf16.mxu0 0
  %2458 = vmatpush1.bf16.msra.mxu0 0
  %2459 = vmatprep.subr.bf16.mxu0 0
  %2460 = vmatpush1.bf16.msra.mxu0 0
  %2461 = vmatprep.subr.bf16.mxu0 0
  %2462 = vmatpush1.bf16.msra.mxu0 0
  %2463 = vmatprep.subr.bf16.mxu0 0
  %2464 = vmatpush1.bf16.msra.mxu0 0
  %2465 = vmatprep.mubr.bf16.mxu0 0
  %2466 = vmatmul.mubr.bf16.gmra.mrb[0].mxu0 %v2431
  %v2467 = vpop.f32.mrb[0].mxu0
  %v2468 = vadd.f32 %v2416, %v2467
  %v2469 = vpop.f32.mrb[0].mxu0
  %v2470 = vpop.f32.mrb[0].mxu0
  %v2471 = vadd.f32 %v2416, %v2470
  %v2472 = vpop.f32.mrb[0].mxu0
  %2473 = vdwg.mxu0
  %2474 = vst [vmem:[%s24] sm:$0xff] %v2468
  %2475 = vst [vmem:[%s24 + $0x8] sm:$0xff] %v2471
  // Predicated region
  $region98: #{isic_model_forward.1} parent=0 // pred_check
    _
  $region99: #{isic_model_forward.1} parent=0 // pred_check_branch
    %2477 = sbr.rel (0) target = $region101
  $region100: #{isic_model_forward.1} parent=0 // pred_region
    _
  $region101: #{isic_model_forward.1} parent=0 // pred_fallthru
    _
  // Predicated region
  $region102: #{isic_model_forward.1} parent=0 // pred_check
    _
  $region103: #{isic_model_forward.1} parent=0 // pred_check_branch
    %2479 = sbr.rel (0) target = $region105
  $region104: #{isic_model_forward.1} parent=0 // pred_region
    _
  $region105: #{isic_model_forward.1} parent=0 // pred_fallthru
    _

</llo_original>
